<compile_context>
chip_gen: v7x
topology: tpu7x:2x2x1
jax: 0.10.0
libtpu: 0.0.40
codegen_flags: <defaults>
</compile_context>

<pallas_src>
import functools

import jax
import jax.numpy as jnp
from jax.experimental import pallas as pl
from jax.experimental.pallas import tpu as pltpu


# ----------------------------------------------------------------------------
# Single fused kernel: 3 stacked LSTM layers (h0 = c0 = 0) followed by
# Linear(hidden -> num_classes) + sigmoid on the last timestep's hidden state.
# Gate order matches PyTorch nn.LSTM: [i, f, g, o] along the 4H dimension.
# ----------------------------------------------------------------------------
def _fused_rnn_kernel(x_ref, w0_ref, b0_ref, w1_ref, b1_ref, w2_ref, b2_ref,
                      fcw_ref, fcb_ref, out_ref, hseq_ref, h_st, c_st):
    T = x_ref.shape[0]
    H = h_st.shape[1]

    def run_layer(read_in, w_ref, b_ref):
        # Zero initial state per layer (matches h0 = c0 = 0 in the module).
        h_st[...] = jnp.zeros_like(h_st)
        c_st[...] = jnp.zeros_like(c_st)
        w = w_ref[...]          # (D_in + H, 4H), fused & pre-transposed
        b = b_ref[...]          # (1, 4H), b_ih + b_hh (hoisted out of the loop)

        def step(t, carry):
            x_t = read_in(t)                                  # (B, D_in)
            h_prev = h_st[...]                                # (B, H)
            xh = jnp.concatenate([x_t, h_prev], axis=1)       # (B, D_in + H)
            # One fused matmul per timestep instead of two.
            gates = jnp.dot(xh, w, preferred_element_type=jnp.float32) + b
            # Whole-tile transcendentals (EUP), then static lane slices.
            sg = jax.nn.sigmoid(gates)
            tg = jnp.tanh(gates)
            i_g = sg[:, 0 * H:1 * H]
            f_g = sg[:, 1 * H:2 * H]
            g_g = tg[:, 2 * H:3 * H]
            o_g = sg[:, 3 * H:4 * H]
            c_new = f_g * c_st[...] + i_g * g_g
            h_new = o_g * jnp.tanh(c_new)
            c_st[...] = c_new
            h_st[...] = h_new
            hseq_ref[t] = h_new      # next layer's input (read-before-write safe)
            return carry

        jax.lax.fori_loop(0, T, step, 0, unroll=True)

    run_layer(lambda t: x_ref[t], w0_ref, b0_ref)
    run_layer(lambda t: hseq_ref[t], w1_ref, b1_ref)
    run_layer(lambda t: hseq_ref[t], w2_ref, b2_ref)

    # Final classifier on the last hidden state (still in VMEM scratch) + sigmoid.
    logits = jnp.dot(h_st[...], fcw_ref[...],
                     preferred_element_type=jnp.float32) + fcb_ref[...]
    out_ref[...] = jax.nn.sigmoid(logits)


def rnn_forward(x_bsd, params):
    """x_bsd: (B, S, D) batch_first input -> (B, num_classes) sigmoid output."""
    B, S, D = x_bsd.shape
    (w0, b0), (w1, b1), (w2, b2) = params["lstm"]
    H = w0.shape[1] // 4
    C = params["fc_w"].shape[1]

    # batch_first -> time-major; pad batch to a sublane multiple of 8.
    x = jnp.transpose(x_bsd, (1, 0, 2)).astype(jnp.float32)   # (S, B, D)
    b_pad = max(8, ((B + 7) // 8) * 8)
    if b_pad != B:
        x = jnp.pad(x, ((0, 0), (0, b_pad - B), (0, 0)))

    vmem = pltpu.MemorySpace.VMEM
    out = pl.pallas_call(
        _fused_rnn_kernel,
        out_shape=jax.ShapeDtypeStruct((b_pad, C), jnp.float32),
        in_specs=[pl.BlockSpec(memory_space=vmem)] * 9,
        out_specs=pl.BlockSpec(memory_space=vmem),
        scratch_shapes=[
            pltpu.VMEM((S, b_pad, H), jnp.float32),   # inter-layer hidden sequence
            pltpu.VMEM((b_pad, H), jnp.float32),      # h state
            pltpu.VMEM((b_pad, H), jnp.float32),      # c state
        ],
    )(x, w0, b0, w1, b1, w2, b2, params["fc_w"], params["fc_b"])
    return out[:B]


# ----------------------------------------------------------------------------
# Parameter init (PyTorch nn.LSTM / nn.Linear uniform init), with the one-time
# weight fusion + transpose done here so the kernel never relayouts weights.
# ----------------------------------------------------------------------------
def init_params(key, input_size, hidden_size, num_layers, num_classes):
    params = {"lstm": []}
    bound = 1.0 / jnp.sqrt(hidden_size)
    for layer in range(num_layers):
        d_in = input_size if layer == 0 else hidden_size
        key, k1, k2, k3, k4 = jax.random.split(key, 5)
        w_ih = jax.random.uniform(k1, (4 * hidden_size, d_in),
                                  jnp.float32, -bound, bound)
        w_hh = jax.random.uniform(k2, (4 * hidden_size, hidden_size),
                                  jnp.float32, -bound, bound)
        b_ih = jax.random.uniform(k3, (4 * hidden_size,),
                                  jnp.float32, -bound, bound)
        b_hh = jax.random.uniform(k4, (4 * hidden_size,),
                                  jnp.float32, -bound, bound)
        # Fuse [W_ih ; W_hh] and pre-transpose once: (d_in + H, 4H).
        w_cat = jnp.concatenate([w_ih, w_hh], axis=1).T
        b = (b_ih + b_hh).reshape(1, 4 * hidden_size)
        params["lstm"].append((w_cat, b))
    key, k5, k6 = jax.random.split(key, 3)
    fc_w = jax.random.uniform(k5, (num_classes, hidden_size),
                              jnp.float32, -bound, bound)
    fc_b = jax.random.uniform(k6, (1, num_classes),
                              jnp.float32, -bound, bound)
    params["fc_w"] = fc_w.T          # (H, C), pre-transposed
    params["fc_b"] = fc_b            # (1, C)
    return params


# ----------------------------------------------------------------------------
# Pure-JAX reference (same math) for a correctness check.
# ----------------------------------------------------------------------------
def rnn_reference(x_bsd, params):
    x = jnp.transpose(x_bsd, (1, 0, 2)).astype(jnp.float32)   # (T, B, D)
    _, B, _ = x.shape
    seq = x
    for (w_cat, b) in params["lstm"]:
        H = w_cat.shape[1] // 4

        def step(carry, x_t, w_cat=w_cat, b=b, H=H):
            h, c = carry
            gates = jnp.concatenate([x_t, h], axis=1) @ w_cat + b
            i = jax.nn.sigmoid(gates[:, 0 * H:1 * H])
            f = jax.nn.sigmoid(gates[:, 1 * H:2 * H])
            g = jnp.tanh(gates[:, 2 * H:3 * H])
            o = jax.nn.sigmoid(gates[:, 3 * H:4 * H])
            c = f * c + i * g
            h = o * jnp.tanh(c)
            return (h, c), h

        h0 = jnp.zeros((B, H), jnp.float32)
        (_, _), seq = jax.lax.scan(step, (h0, h0), seq)
    h_last = seq[-1]
    return jax.nn.sigmoid(h_last @ params["fc_w"] + params["fc_b"])


if __name__ == "__main__":
    # Small shapes consistent with the module's forward (batch_first LSTM input).
    batch, seq_len = 2, 8
    input_size, hidden_size, num_layers, num_classes = 32, 32, 3, 1

    key = jax.random.PRNGKey(0)
    key, kx = jax.random.split(key)
    x = jax.random.normal(kx, (batch, seq_len, input_size), jnp.float32)

    params = init_params(key, input_size, hidden_size, num_layers, num_classes)

    fwd = jax.jit(functools.partial(rnn_forward, params=params))
    out = jax.block_until_ready(fwd(x))
    assert out.shape == (batch, num_classes), out.shape

    ref = jax.block_until_ready(rnn_reference(x, params))
    assert jnp.allclose(out, ref, atol=1e-4, rtol=1e-4), \
        float(jnp.max(jnp.abs(out - ref)))

    print("KERNEL_OK")
</pallas_src>

<mosaic_0001>
module attributes {stable_mosaic.version = 11 : i64} {
  func.func @_fused_rnn_kernel(%arg0: memref<8x8x32xf32, #tpu.memory_space<vmem>>, %arg1: memref<64x128xf32, #tpu.memory_space<vmem>>, %arg2: memref<1x128xf32, #tpu.memory_space<vmem>>, %arg3: memref<64x128xf32, #tpu.memory_space<vmem>>, %arg4: memref<1x128xf32, #tpu.memory_space<vmem>>, %arg5: memref<64x128xf32, #tpu.memory_space<vmem>>, %arg6: memref<1x128xf32, #tpu.memory_space<vmem>>, %arg7: memref<32x1xf32, #tpu.memory_space<vmem>>, %arg8: memref<1x1xf32, #tpu.memory_space<vmem>>, %arg9: memref<8x1xf32, #tpu.memory_space<vmem>>, %arg10: memref<8x8x32xf32, #tpu.memory_space<vmem>>, %arg11: memref<8x32xf32, #tpu.memory_space<vmem>>, %arg12: memref<8x32xf32, #tpu.memory_space<vmem>>) attributes {dimension_semantics = [], scalar_prefetch = 0 : i64, scratch_operands = 3 : i64, tpu.core_type = #tpu.core_type<tc>} {
    %cst = arith.constant 0.000000e+00 : f32
    %0 = vector.broadcast %cst : f32 to vector<8x32xf32>
    %c0 = arith.constant 0 : index
    %c0_0 = arith.constant 0 : index
    %1 = vector.load %arg11[%c0, %c0_0] : memref<8x32xf32, #tpu.memory_space<vmem>>, vector<8x32xf32>
    tpu.vector_store %arg11[%c0, %c0_0], %0 {strides = array<i32>} : memref<8x32xf32, #tpu.memory_space<vmem>>, vector<8x32xf32>,
    %cst_1 = arith.constant 0.000000e+00 : f32
    %2 = vector.broadcast %cst_1 : f32 to vector<8x32xf32>
    %c0_2 = arith.constant 0 : index
    %c0_3 = arith.constant 0 : index
    %3 = vector.load %arg12[%c0_2, %c0_3] : memref<8x32xf32, #tpu.memory_space<vmem>>, vector<8x32xf32>
    tpu.vector_store %arg12[%c0_2, %c0_3], %2 {strides = array<i32>} : memref<8x32xf32, #tpu.memory_space<vmem>>, vector<8x32xf32>,
    %c0_4 = arith.constant 0 : index
    %c0_5 = arith.constant 0 : index
    %4 = vector.load %arg1[%c0_4, %c0_5] : memref<64x128xf32, #tpu.memory_space<vmem>>, vector<64x128xf32>
    %c0_6 = arith.constant 0 : index
    %c0_7 = arith.constant 0 : index
    %5 = vector.load %arg2[%c0_6, %c0_7] : memref<1x128xf32, #tpu.memory_space<vmem>>, vector<1x128xf32>
    %c0_i32 = arith.constant 0 : i32
    %6 = arith.index_cast %c0_i32 : i32 to index
    %c0_8 = arith.constant 0 : index
    %c0_9 = arith.constant 0 : index
    %7 = vector.load %arg0[%6, %c0_8, %c0_9] : memref<8x8x32xf32, #tpu.memory_space<vmem>>, vector<1x8x32xf32>
    %8 = vector.shape_cast %7 : vector<1x8x32xf32> to vector<8x32xf32>
    %c0_10 = arith.constant 0 : index
    %c0_11 = arith.constant 0 : index
    %9 = vector.load %arg11[%c0_10, %c0_11] : memref<8x32xf32, #tpu.memory_space<vmem>>, vector<8x32xf32>
    %10 = tpu.concatenate %8, %9 in 1 : vector<8x32xf32>, vector<8x32xf32> -> vector<8x64xf32>
    %cst_12 = arith.constant dense<0.000000e+00> : vector<8x128xf32>
    %11 = tpu.matmul %10, %4, %cst_12 {dimension_numbers = #tpu.dot_dimension_numbers<[1], [0], [0], [1], [0, 0, 1, 1], [], []>} : vector<8x64xf32>, vector<64x128xf32>, vector<8x128xf32> -> vector<8x128xf32>
    %12 = vector.broadcast %5 : vector<1x128xf32> to vector<8x128xf32>
    %13 = arith.addf %11, %12 : vector<8x128xf32>
    %14 = arith.negf %13 : vector<8x128xf32>
    %15 = math.exp %14 : vector<8x128xf32>
    %cst_13 = arith.constant 1.000000e+00 : f32
    %16 = vector.broadcast %cst_13 : f32 to vector<8x128xf32>
    %17 = arith.addf %16, %15 : vector<8x128xf32>
    %18 = arith.divf %16, %17 : vector<8x128xf32>
    %19 = math.tanh %13 : vector<8x128xf32>
    %20 = vector.extract_strided_slice %18 {offsets = [0, 0], sizes = [8, 32], strides = [1, 1]} : vector<8x128xf32> to vector<8x32xf32>
    %21 = vector.extract_strided_slice %18 {offsets = [0, 32], sizes = [8, 32], strides = [1, 1]} : vector<8x128xf32> to vector<8x32xf32>
    %22 = vector.extract_strided_slice %19 {offsets = [0, 64], sizes = [8, 32], strides = [1, 1]} : vector<8x128xf32> to vector<8x32xf32>
    %23 = vector.extract_strided_slice %18 {offsets = [0, 96], sizes = [8, 32], strides = [1, 1]} : vector<8x128xf32> to vector<8x32xf32>
    %c0_14 = arith.constant 0 : index
    %c0_15 = arith.constant 0 : index
    %24 = vector.load %arg12[%c0_14, %c0_15] : memref<8x32xf32, #tpu.memory_space<vmem>>, vector<8x32xf32>
    %25 = arith.mulf %21, %24 : vector<8x32xf32>
    %26 = arith.mulf %20, %22 : vector<8x32xf32>
    %27 = arith.addf %25, %26 : vector<8x32xf32>
    %28 = math.tanh %27 : vector<8x32xf32>
    %29 = arith.mulf %23, %28 : vector<8x32xf32>
    %c0_16 = arith.constant 0 : index
    %c0_17 = arith.constant 0 : index
    %30 = vector.load %arg12[%c0_16, %c0_17] : memref<8x32xf32, #tpu.memory_space<vmem>>, vector<8x32xf32>
    tpu.vector_store %arg12[%c0_16, %c0_17], %27 {strides = array<i32>} : memref<8x32xf32, #tpu.memory_space<vmem>>, vector<8x32xf32>,
    %c0_18 = arith.constant 0 : index
    %c0_19 = arith.constant 0 : index
    %31 = vector.load %arg11[%c0_18, %c0_19] : memref<8x32xf32, #tpu.memory_space<vmem>>, vector<8x32xf32>
    tpu.vector_store %arg11[%c0_18, %c0_19], %29 {strides = array<i32>} : memref<8x32xf32, #tpu.memory_space<vmem>>, vector<8x32xf32>,
    %32 = arith.index_cast %c0_i32 : i32 to index
    %c0_20 = arith.constant 0 : index
    %c0_21 = arith.constant 0 : index
    %33 = vector.load %arg10[%32, %c0_20, %c0_21] : memref<8x8x32xf32, #tpu.memory_space<vmem>>, vector<1x8x32xf32>
    %34 = vector.shape_cast %33 : vector<1x8x32xf32> to vector<8x32xf32>
    %35 = vector.shape_cast %29 : vector<8x32xf32> to vector<1x8x32xf32>
    tpu.vector_store %arg10[%32, %c0_20, %c0_21], %35 {strides = array<i32>} : memref<8x8x32xf32, #tpu.memory_space<vmem>>, vector<1x8x32xf32>,
    %c1_i32 = arith.constant 1 : i32
    %36 = arith.index_cast %c1_i32 : i32 to index
    %c0_22 = arith.constant 0 : index
    %c0_23 = arith.constant 0 : index
    %37 = vector.load %arg0[%36, %c0_22, %c0_23] : memref<8x8x32xf32, #tpu.memory_space<vmem>>, vector<1x8x32xf32>
    %38 = vector.shape_cast %37 : vector<1x8x32xf32> to vector<8x32xf32>
    %c0_24 = arith.constant 0 : index
    %c0_25 = arith.constant 0 : index
    %39 = vector.load %arg11[%c0_24, %c0_25] : memref<8x32xf32, #tpu.memory_space<vmem>>, vector<8x32xf32>
    %40 = tpu.concatenate %38, %39 in 1 : vector<8x32xf32>, vector<8x32xf32> -> vector<8x64xf32>
    %cst_26 = arith.constant dense<0.000000e+00> : vector<8x128xf32>
    %41 = tpu.matmul %40, %4, %cst_26 {dimension_numbers = #tpu.dot_dimension_numbers<[1], [0], [0], [1], [0, 0, 1, 1], [], []>} : vector<8x64xf32>, vector<64x128xf32>, vector<8x128xf32> -> vector<8x128xf32>
    %42 = vector.broadcast %5 : vector<1x128xf32> to vector<8x128xf32>
    %43 = arith.addf %41, %42 : vector<8x128xf32>
    %44 = arith.negf %43 : vector<8x128xf32>
    %45 = math.exp %44 : vector<8x128xf32>
    %cst_27 = arith.constant 1.000000e+00 : f32
    %46 = vector.broadcast %cst_27 : f32 to vector<8x128xf32>
    %47 = arith.addf %46, %45 : vector<8x128xf32>
    %48 = arith.divf %46, %47 : vector<8x128xf32>
    %49 = math.tanh %43 : vector<8x128xf32>
    %50 = vector.extract_strided_slice %48 {offsets = [0, 0], sizes = [8, 32], strides = [1, 1]} : vector<8x128xf32> to vector<8x32xf32>
    %51 = vector.extract_strided_slice %48 {offsets = [0, 32], sizes = [8, 32], strides = [1, 1]} : vector<8x128xf32> to vector<8x32xf32>
    %52 = vector.extract_strided_slice %49 {offsets = [0, 64], sizes = [8, 32], strides = [1, 1]} : vector<8x128xf32> to vector<8x32xf32>
    %53 = vector.extract_strided_slice %48 {offsets = [0, 96], sizes = [8, 32], strides = [1, 1]} : vector<8x128xf32> to vector<8x32xf32>
    %c0_28 = arith.constant 0 : index
    %c0_29 = arith.constant 0 : index
    %54 = vector.load %arg12[%c0_28, %c0_29] : memref<8x32xf32, #tpu.memory_space<vmem>>, vector<8x32xf32>
    %55 = arith.mulf %51, %54 : vector<8x32xf32>
    %56 = arith.mulf %50, %52 : vector<8x32xf32>
    %57 = arith.addf %55, %56 : vector<8x32xf32>
    %58 = math.tanh %57 : vector<8x32xf32>
    %59 = arith.mulf %53, %58 : vector<8x32xf32>
    %c0_30 = arith.constant 0 : index
    %c0_31 = arith.constant 0 : index
    %60 = vector.load %arg12[%c0_30, %c0_31] : memref<8x32xf32, #tpu.memory_space<vmem>>, vector<8x32xf32>
    tpu.vector_store %arg12[%c0_30, %c0_31], %57 {strides = array<i32>} : memref<8x32xf32, #tpu.memory_space<vmem>>, vector<8x32xf32>,
    %c0_32 = arith.constant 0 : index
    %c0_33 = arith.constant 0 : index
    %61 = vector.load %arg11[%c0_32, %c0_33] : memref<8x32xf32, #tpu.memory_space<vmem>>, vector<8x32xf32>
    tpu.vector_store %arg11[%c0_32, %c0_33], %59 {strides = array<i32>} : memref<8x32xf32, #tpu.memory_space<vmem>>, vector<8x32xf32>,
    %62 = arith.index_cast %c1_i32 : i32 to index
    %c0_34 = arith.constant 0 : index
    %c0_35 = arith.constant 0 : index
    %63 = vector.load %arg10[%62, %c0_34, %c0_35] : memref<8x8x32xf32, #tpu.memory_space<vmem>>, vector<1x8x32xf32>
    %64 = vector.shape_cast %63 : vector<1x8x32xf32> to vector<8x32xf32>
    %65 = vector.shape_cast %59 : vector<8x32xf32> to vector<1x8x32xf32>
    tpu.vector_store %arg10[%62, %c0_34, %c0_35], %65 {strides = array<i32>} : memref<8x8x32xf32, #tpu.memory_space<vmem>>, vector<1x8x32xf32>,
    %c2_i32 = arith.constant 2 : i32
    %66 = arith.index_cast %c2_i32 : i32 to index
    %c0_36 = arith.constant 0 : index
    %c0_37 = arith.constant 0 : index
    %67 = vector.load %arg0[%66, %c0_36, %c0_37] : memref<8x8x32xf32, #tpu.memory_space<vmem>>, vector<1x8x32xf32>
    %68 = vector.shape_cast %67 : vector<1x8x32xf32> to vector<8x32xf32>
    %c0_38 = arith.constant 0 : index
    %c0_39 = arith.constant 0 : index
    %69 = vector.load %arg11[%c0_38, %c0_39] : memref<8x32xf32, #tpu.memory_space<vmem>>, vector<8x32xf32>
    %70 = tpu.concatenate %68, %69 in 1 : vector<8x32xf32>, vector<8x32xf32> -> vector<8x64xf32>
    %cst_40 = arith.constant dense<0.000000e+00> : vector<8x128xf32>
    %71 = tpu.matmul %70, %4, %cst_40 {dimension_numbers = #tpu.dot_dimension_numbers<[1], [0], [0], [1], [0, 0, 1, 1], [], []>} : vector<8x64xf32>, vector<64x128xf32>, vector<8x128xf32> -> vector<8x128xf32>
    %72 = vector.broadcast %5 : vector<1x128xf32> to vector<8x128xf32>
    %73 = arith.addf %71, %72 : vector<8x128xf32>
    %74 = arith.negf %73 : vector<8x128xf32>
    %75 = math.exp %74 : vector<8x128xf32>
    %cst_41 = arith.constant 1.000000e+00 : f32
    %76 = vector.broadcast %cst_41 : f32 to vector<8x128xf32>
    %77 = arith.addf %76, %75 : vector<8x128xf32>
    %78 = arith.divf %76, %77 : vector<8x128xf32>
    %79 = math.tanh %73 : vector<8x128xf32>
    %80 = vector.extract_strided_slice %78 {offsets = [0, 0], sizes = [8, 32], strides = [1, 1]} : vector<8x128xf32> to vector<8x32xf32>
    %81 = vector.extract_strided_slice %78 {offsets = [0, 32], sizes = [8, 32], strides = [1, 1]} : vector<8x128xf32> to vector<8x32xf32>
    %82 = vector.extract_strided_slice %79 {offsets = [0, 64], sizes = [8, 32], strides = [1, 1]} : vector<8x128xf32> to vector<8x32xf32>
    %83 = vector.extract_strided_slice %78 {offsets = [0, 96], sizes = [8, 32], strides = [1, 1]} : vector<8x128xf32> to vector<8x32xf32>
    %c0_42 = arith.constant 0 : index
    %c0_43 = arith.constant 0 : index
    %84 = vector.load %arg12[%c0_42, %c0_43] : memref<8x32xf32, #tpu.memory_space<vmem>>, vector<8x32xf32>
    %85 = arith.mulf %81, %84 : vector<8x32xf32>
    %86 = arith.mulf %80, %82 : vector<8x32xf32>
    %87 = arith.addf %85, %86 : vector<8x32xf32>
    %88 = math.tanh %87 : vector<8x32xf32>
    %89 = arith.mulf %83, %88 : vector<8x32xf32>
    %c0_44 = arith.constant 0 : index
    %c0_45 = arith.constant 0 : index
    %90 = vector.load %arg12[%c0_44, %c0_45] : memref<8x32xf32, #tpu.memory_space<vmem>>, vector<8x32xf32>
    tpu.vector_store %arg12[%c0_44, %c0_45], %87 {strides = array<i32>} : memref<8x32xf32, #tpu.memory_space<vmem>>, vector<8x32xf32>,
    %c0_46 = arith.constant 0 : index
    %c0_47 = arith.constant 0 : index
    %91 = vector.load %arg11[%c0_46, %c0_47] : memref<8x32xf32, #tpu.memory_space<vmem>>, vector<8x32xf32>
    tpu.vector_store %arg11[%c0_46, %c0_47], %89 {strides = array<i32>} : memref<8x32xf32, #tpu.memory_space<vmem>>, vector<8x32xf32>,
    %92 = arith.index_cast %c2_i32 : i32 to index
    %c0_48 = arith.constant 0 : index
    %c0_49 = arith.constant 0 : index
    %93 = vector.load %arg10[%92, %c0_48, %c0_49] : memref<8x8x32xf32, #tpu.memory_space<vmem>>, vector<1x8x32xf32>
    %94 = vector.shape_cast %93 : vector<1x8x32xf32> to vector<8x32xf32>
    %95 = vector.shape_cast %89 : vector<8x32xf32> to vector<1x8x32xf32>
    tpu.vector_store %arg10[%92, %c0_48, %c0_49], %95 {strides = array<i32>} : memref<8x8x32xf32, #tpu.memory_space<vmem>>, vector<1x8x32xf32>,
    %c3_i32 = arith.constant 3 : i32
    %96 = arith.index_cast %c3_i32 : i32 to index
    %c0_50 = arith.constant 0 : index
    %c0_51 = arith.constant 0 : index
    %97 = vector.load %arg0[%96, %c0_50, %c0_51] : memref<8x8x32xf32, #tpu.memory_space<vmem>>, vector<1x8x32xf32>
    %98 = vector.shape_cast %97 : vector<1x8x32xf32> to vector<8x32xf32>
    %c0_52 = arith.constant 0 : index
    %c0_53 = arith.constant 0 : index
    %99 = vector.load %arg11[%c0_52, %c0_53] : memref<8x32xf32, #tpu.memory_space<vmem>>, vector<8x32xf32>
    %100 = tpu.concatenate %98, %99 in 1 : vector<8x32xf32>, vector<8x32xf32> -> vector<8x64xf32>
    %cst_54 = arith.constant dense<0.000000e+00> : vector<8x128xf32>
    %101 = tpu.matmul %100, %4, %cst_54 {dimension_numbers = #tpu.dot_dimension_numbers<[1], [0], [0], [1], [0, 0, 1, 1], [], []>} : vector<8x64xf32>, vector<64x128xf32>, vector<8x128xf32> -> vector<8x128xf32>
    %102 = vector.broadcast %5 : vector<1x128xf32> to vector<8x128xf32>
    %103 = arith.addf %101, %102 : vector<8x128xf32>
    %104 = arith.negf %103 : vector<8x128xf32>
    %105 = math.exp %104 : vector<8x128xf32>
    %cst_55 = arith.constant 1.000000e+00 : f32
    %106 = vector.broadcast %cst_55 : f32 to vector<8x128xf32>
    %107 = arith.addf %106, %105 : vector<8x128xf32>
    %108 = arith.divf %106, %107 : vector<8x128xf32>
    %109 = math.tanh %103 : vector<8x128xf32>
    %110 = vector.extract_strided_slice %108 {offsets = [0, 0], sizes = [8, 32], strides = [1, 1]} : vector<8x128xf32> to vector<8x32xf32>
    %111 = vector.extract_strided_slice %108 {offsets = [0, 32], sizes = [8, 32], strides = [1, 1]} : vector<8x128xf32> to vector<8x32xf32>
    %112 = vector.extract_strided_slice %109 {offsets = [0, 64], sizes = [8, 32], strides = [1, 1]} : vector<8x128xf32> to vector<8x32xf32>
    %113 = vector.extract_strided_slice %108 {offsets = [0, 96], sizes = [8, 32], strides = [1, 1]} : vector<8x128xf32> to vector<8x32xf32>
    %c0_56 = arith.constant 0 : index
    %c0_57 = arith.constant 0 : index
    %114 = vector.load %arg12[%c0_56, %c0_57] : memref<8x32xf32, #tpu.memory_space<vmem>>, vector<8x32xf32>
    %115 = arith.mulf %111, %114 : vector<8x32xf32>
    %116 = arith.mulf %110, %112 : vector<8x32xf32>
    %117 = arith.addf %115, %116 : vector<8x32xf32>
    %118 = math.tanh %117 : vector<8x32xf32>
    %119 = arith.mulf %113, %118 : vector<8x32xf32>
    %c0_58 = arith.constant 0 : index
    %c0_59 = arith.constant 0 : index
    %120 = vector.load %arg12[%c0_58, %c0_59] : memref<8x32xf32, #tpu.memory_space<vmem>>, vector<8x32xf32>
    tpu.vector_store %arg12[%c0_58, %c0_59], %117 {strides = array<i32>} : memref<8x32xf32, #tpu.memory_space<vmem>>, vector<8x32xf32>,
    %c0_60 = arith.constant 0 : index
    %c0_61 = arith.constant 0 : index
    %121 = vector.load %arg11[%c0_60, %c0_61] : memref<8x32xf32, #tpu.memory_space<vmem>>, vector<8x32xf32>
    tpu.vector_store %arg11[%c0_60, %c0_61], %119 {strides = array<i32>} : memref<8x32xf32, #tpu.memory_space<vmem>>, vector<8x32xf32>,
    %122 = arith.index_cast %c3_i32 : i32 to index
    %c0_62 = arith.constant 0 : index
    %c0_63 = arith.constant 0 : index
    %123 = vector.load %arg10[%122, %c0_62, %c0_63] : memref<8x8x32xf32, #tpu.memory_space<vmem>>, vector<1x8x32xf32>
    %124 = vector.shape_cast %123 : vector<1x8x32xf32> to vector<8x32xf32>
    %125 = vector.shape_cast %119 : vector<8x32xf32> to vector<1x8x32xf32>
    tpu.vector_store %arg10[%122, %c0_62, %c0_63], %125 {strides = array<i32>} : memref<8x8x32xf32, #tpu.memory_space<vmem>>, vector<1x8x32xf32>,
    %c4_i32 = arith.constant 4 : i32
    %126 = arith.index_cast %c4_i32 : i32 to index
    %c0_64 = arith.constant 0 : index
    %c0_65 = arith.constant 0 : index
    %127 = vector.load %arg0[%126, %c0_64, %c0_65] : memref<8x8x32xf32, #tpu.memory_space<vmem>>, vector<1x8x32xf32>
    %128 = vector.shape_cast %127 : vector<1x8x32xf32> to vector<8x32xf32>
    %c0_66 = arith.constant 0 : index
    %c0_67 = arith.constant 0 : index
    %129 = vector.load %arg11[%c0_66, %c0_67] : memref<8x32xf32, #tpu.memory_space<vmem>>, vector<8x32xf32>
    %130 = tpu.concatenate %128, %129 in 1 : vector<8x32xf32>, vector<8x32xf32> -> vector<8x64xf32>
    %cst_68 = arith.constant dense<0.000000e+00> : vector<8x128xf32>
    %131 = tpu.matmul %130, %4, %cst_68 {dimension_numbers = #tpu.dot_dimension_numbers<[1], [0], [0], [1], [0, 0, 1, 1], [], []>} : vector<8x64xf32>, vector<64x128xf32>, vector<8x128xf32> -> vector<8x128xf32>
    %132 = vector.broadcast %5 : vector<1x128xf32> to vector<8x128xf32>
    %133 = arith.addf %131, %132 : vector<8x128xf32>
    %134 = arith.negf %133 : vector<8x128xf32>
    %135 = math.exp %134 : vector<8x128xf32>
    %cst_69 = arith.constant 1.000000e+00 : f32
    %136 = vector.broadcast %cst_69 : f32 to vector<8x128xf32>
    %137 = arith.addf %136, %135 : vector<8x128xf32>
    %138 = arith.divf %136, %137 : vector<8x128xf32>
    %139 = math.tanh %133 : vector<8x128xf32>
    %140 = vector.extract_strided_slice %138 {offsets = [0, 0], sizes = [8, 32], strides = [1, 1]} : vector<8x128xf32> to vector<8x32xf32>
    %141 = vector.extract_strided_slice %138 {offsets = [0, 32], sizes = [8, 32], strides = [1, 1]} : vector<8x128xf32> to vector<8x32xf32>
    %142 = vector.extract_strided_slice %139 {offsets = [0, 64], sizes = [8, 32], strides = [1, 1]} : vector<8x128xf32> to vector<8x32xf32>
    %143 = vector.extract_strided_slice %138 {offsets = [0, 96], sizes = [8, 32], strides = [1, 1]} : vector<8x128xf32> to vector<8x32xf32>
    %c0_70 = arith.constant 0 : index
    %c0_71 = arith.constant 0 : index
    %144 = vector.load %arg12[%c0_70, %c0_71] : memref<8x32xf32, #tpu.memory_space<vmem>>, vector<8x32xf32>
    %145 = arith.mulf %141, %144 : vector<8x32xf32>
    %146 = arith.mulf %140, %142 : vector<8x32xf32>
    %147 = arith.addf %145, %146 : vector<8x32xf32>
    %148 = math.tanh %147 : vector<8x32xf32>
    %149 = arith.mulf %143, %148 : vector<8x32xf32>
    %c0_72 = arith.constant 0 : index
    %c0_73 = arith.constant 0 : index
    %150 = vector.load %arg12[%c0_72, %c0_73] : memref<8x32xf32, #tpu.memory_space<vmem>>, vector<8x32xf32>
    tpu.vector_store %arg12[%c0_72, %c0_73], %147 {strides = array<i32>} : memref<8x32xf32, #tpu.memory_space<vmem>>, vector<8x32xf32>,
    %c0_74 = arith.constant 0 : index
    %c0_75 = arith.constant 0 : index
    %151 = vector.load %arg11[%c0_74, %c0_75] : memref<8x32xf32, #tpu.memory_space<vmem>>, vector<8x32xf32>
    tpu.vector_store %arg11[%c0_74, %c0_75], %149 {strides = array<i32>} : memref<8x32xf32, #tpu.memory_space<vmem>>, vector<8x32xf32>,
    %152 = arith.index_cast %c4_i32 : i32 to index
    %c0_76 = arith.constant 0 : index
    %c0_77 = arith.constant 0 : index
    %153 = vector.load %arg10[%152, %c0_76, %c0_77] : memref<8x8x32xf32, #tpu.memory_space<vmem>>, vector<1x8x32xf32>
    %154 = vector.shape_cast %153 : vector<1x8x32xf32> to vector<8x32xf32>
    %155 = vector.shape_cast %149 : vector<8x32xf32> to vector<1x8x32xf32>
    tpu.vector_store %arg10[%152, %c0_76, %c0_77], %155 {strides = array<i32>} : memref<8x8x32xf32, #tpu.memory_space<vmem>>, vector<1x8x32xf32>,
    %c5_i32 = arith.constant 5 : i32
    %156 = arith.index_cast %c5_i32 : i32 to index
    %c0_78 = arith.constant 0 : index
    %c0_79 = arith.constant 0 : index
    %157 = vector.load %arg0[%156, %c0_78, %c0_79] : memref<8x8x32xf32, #tpu.memory_space<vmem>>, vector<1x8x32xf32>
    %158 = vector.shape_cast %157 : vector<1x8x32xf32> to vector<8x32xf32>
    %c0_80 = arith.constant 0 : index
    %c0_81 = arith.constant 0 : index
    %159 = vector.load %arg11[%c0_80, %c0_81] : memref<8x32xf32, #tpu.memory_space<vmem>>, vector<8x32xf32>
    %160 = tpu.concatenate %158, %159 in 1 : vector<8x32xf32>, vector<8x32xf32> -> vector<8x64xf32>
    %cst_82 = arith.constant dense<0.000000e+00> : vector<8x128xf32>
    %161 = tpu.matmul %160, %4, %cst_82 {dimension_numbers = #tpu.dot_dimension_numbers<[1], [0], [0], [1], [0, 0, 1, 1], [], []>} : vector<8x64xf32>, vector<64x128xf32>, vector<8x128xf32> -> vector<8x128xf32>
    %162 = vector.broadcast %5 : vector<1x128xf32> to vector<8x128xf32>
    %163 = arith.addf %161, %162 : vector<8x128xf32>
    %164 = arith.negf %163 : vector<8x128xf32>
    %165 = math.exp %164 : vector<8x128xf32>
    %cst_83 = arith.constant 1.000000e+00 : f32
    %166 = vector.broadcast %cst_83 : f32 to vector<8x128xf32>
    %167 = arith.addf %166, %165 : vector<8x128xf32>
    %168 = arith.divf %166, %167 : vector<8x128xf32>
    %169 = math.tanh %163 : vector<8x128xf32>
    %170 = vector.extract_strided_slice %168 {offsets = [0, 0], sizes = [8, 32], strides = [1, 1]} : vector<8x128xf32> to vector<8x32xf32>
    %171 = vector.extract_strided_slice %168 {offsets = [0, 32], sizes = [8, 32], strides = [1, 1]} : vector<8x128xf32> to vector<8x32xf32>
    %172 = vector.extract_strided_slice %169 {offsets = [0, 64], sizes = [8, 32], strides = [1, 1]} : vector<8x128xf32> to vector<8x32xf32>
    %173 = vector.extract_strided_slice %168 {offsets = [0, 96], sizes = [8, 32], strides = [1, 1]} : vector<8x128xf32> to vector<8x32xf32>
    %c0_84 = arith.constant 0 : index
    %c0_85 = arith.constant 0 : index
    %174 = vector.load %arg12[%c0_84, %c0_85] : memref<8x32xf32, #tpu.memory_space<vmem>>, vector<8x32xf32>
    %175 = arith.mulf %171, %174 : vector<8x32xf32>
    %176 = arith.mulf %170, %172 : vector<8x32xf32>
    %177 = arith.addf %175, %176 : vector<8x32xf32>
    %178 = math.tanh %177 : vector<8x32xf32>
    %179 = arith.mulf %173, %178 : vector<8x32xf32>
    %c0_86 = arith.constant 0 : index
    %c0_87 = arith.constant 0 : index
    %180 = vector.load %arg12[%c0_86, %c0_87] : memref<8x32xf32, #tpu.memory_space<vmem>>, vector<8x32xf32>
    tpu.vector_store %arg12[%c0_86, %c0_87], %177 {strides = array<i32>} : memref<8x32xf32, #tpu.memory_space<vmem>>, vector<8x32xf32>,
    %c0_88 = arith.constant 0 : index
    %c0_89 = arith.constant 0 : index
    %181 = vector.load %arg11[%c0_88, %c0_89] : memref<8x32xf32, #tpu.memory_space<vmem>>, vector<8x32xf32>
    tpu.vector_store %arg11[%c0_88, %c0_89], %179 {strides = array<i32>} : memref<8x32xf32, #tpu.memory_space<vmem>>, vector<8x32xf32>,
    %182 = arith.index_cast %c5_i32 : i32 to index
    %c0_90 = arith.constant 0 : index
    %c0_91 = arith.constant 0 : index
    %183 = vector.load %arg10[%182, %c0_90, %c0_91] : memref<8x8x32xf32, #tpu.memory_space<vmem>>, vector<1x8x32xf32>
    %184 = vector.shape_cast %183 : vector<1x8x32xf32> to vector<8x32xf32>
    %185 = vector.shape_cast %179 : vector<8x32xf32> to vector<1x8x32xf32>
    tpu.vector_store %arg10[%182, %c0_90, %c0_91], %185 {strides = array<i32>} : memref<8x8x32xf32, #tpu.memory_space<vmem>>, vector<1x8x32xf32>,
    %c6_i32 = arith.constant 6 : i32
    %186 = arith.index_cast %c6_i32 : i32 to index
    %c0_92 = arith.constant 0 : index
    %c0_93 = arith.constant 0 : index
    %187 = vector.load %arg0[%186, %c0_92, %c0_93] : memref<8x8x32xf32, #tpu.memory_space<vmem>>, vector<1x8x32xf32>
    %188 = vector.shape_cast %187 : vector<1x8x32xf32> to vector<8x32xf32>
    %c0_94 = arith.constant 0 : index
    %c0_95 = arith.constant 0 : index
    %189 = vector.load %arg11[%c0_94, %c0_95] : memref<8x32xf32, #tpu.memory_space<vmem>>, vector<8x32xf32>
    %190 = tpu.concatenate %188, %189 in 1 : vector<8x32xf32>, vector<8x32xf32> -> vector<8x64xf32>
    %cst_96 = arith.constant dense<0.000000e+00> : vector<8x128xf32>
    %191 = tpu.matmul %190, %4, %cst_96 {dimension_numbers = #tpu.dot_dimension_numbers<[1], [0], [0], [1], [0, 0, 1, 1], [], []>} : vector<8x64xf32>, vector<64x128xf32>, vector<8x128xf32> -> vector<8x128xf32>
    %192 = vector.broadcast %5 : vector<1x128xf32> to vector<8x128xf32>
    %193 = arith.addf %191, %192 : vector<8x128xf32>
    %194 = arith.negf %193 : vector<8x128xf32>
    %195 = math.exp %194 : vector<8x128xf32>
    %cst_97 = arith.constant 1.000000e+00 : f32
    %196 = vector.broadcast %cst_97 : f32 to vector<8x128xf32>
    %197 = arith.addf %196, %195 : vector<8x128xf32>
    %198 = arith.divf %196, %197 : vector<8x128xf32>
    %199 = math.tanh %193 : vector<8x128xf32>
    %200 = vector.extract_strided_slice %198 {offsets = [0, 0], sizes = [8, 32], strides = [1, 1]} : vector<8x128xf32> to vector<8x32xf32>
    %201 = vector.extract_strided_slice %198 {offsets = [0, 32], sizes = [8, 32], strides = [1, 1]} : vector<8x128xf32> to vector<8x32xf32>
    %202 = vector.extract_strided_slice %199 {offsets = [0, 64], sizes = [8, 32], strides = [1, 1]} : vector<8x128xf32> to vector<8x32xf32>
    %203 = vector.extract_strided_slice %198 {offsets = [0, 96], sizes = [8, 32], strides = [1, 1]} : vector<8x128xf32> to vector<8x32xf32>
    %c0_98 = arith.constant 0 : index
    %c0_99 = arith.constant 0 : index
    %204 = vector.load %arg12[%c0_98, %c0_99] : memref<8x32xf32, #tpu.memory_space<vmem>>, vector<8x32xf32>
    %205 = arith.mulf %201, %204 : vector<8x32xf32>
    %206 = arith.mulf %200, %202 : vector<8x32xf32>
    %207 = arith.addf %205, %206 : vector<8x32xf32>
    %208 = math.tanh %207 : vector<8x32xf32>
    %209 = arith.mulf %203, %208 : vector<8x32xf32>
    %c0_100 = arith.constant 0 : index
    %c0_101 = arith.constant 0 : index
    %210 = vector.load %arg12[%c0_100, %c0_101] : memref<8x32xf32, #tpu.memory_space<vmem>>, vector<8x32xf32>
    tpu.vector_store %arg12[%c0_100, %c0_101], %207 {strides = array<i32>} : memref<8x32xf32, #tpu.memory_space<vmem>>, vector<8x32xf32>,
    %c0_102 = arith.constant 0 : index
    %c0_103 = arith.constant 0 : index
    %211 = vector.load %arg11[%c0_102, %c0_103] : memref<8x32xf32, #tpu.memory_space<vmem>>, vector<8x32xf32>
    tpu.vector_store %arg11[%c0_102, %c0_103], %209 {strides = array<i32>} : memref<8x32xf32, #tpu.memory_space<vmem>>, vector<8x32xf32>,
    %212 = arith.index_cast %c6_i32 : i32 to index
    %c0_104 = arith.constant 0 : index
    %c0_105 = arith.constant 0 : index
    %213 = vector.load %arg10[%212, %c0_104, %c0_105] : memref<8x8x32xf32, #tpu.memory_space<vmem>>, vector<1x8x32xf32>
    %214 = vector.shape_cast %213 : vector<1x8x32xf32> to vector<8x32xf32>
    %215 = vector.shape_cast %209 : vector<8x32xf32> to vector<1x8x32xf32>
    tpu.vector_store %arg10[%212, %c0_104, %c0_105], %215 {strides = array<i32>} : memref<8x8x32xf32, #tpu.memory_space<vmem>>, vector<1x8x32xf32>,
    %c7_i32 = arith.constant 7 : i32
    %216 = arith.index_cast %c7_i32 : i32 to index
    %c0_106 = arith.constant 0 : index
    %c0_107 = arith.constant 0 : index
    %217 = vector.load %arg0[%216, %c0_106, %c0_107] : memref<8x8x32xf32, #tpu.memory_space<vmem>>, vector<1x8x32xf32>
    %218 = vector.shape_cast %217 : vector<1x8x32xf32> to vector<8x32xf32>
    %c0_108 = arith.constant 0 : index
    %c0_109 = arith.constant 0 : index
    %219 = vector.load %arg11[%c0_108, %c0_109] : memref<8x32xf32, #tpu.memory_space<vmem>>, vector<8x32xf32>
    %220 = tpu.concatenate %218, %219 in 1 : vector<8x32xf32>, vector<8x32xf32> -> vector<8x64xf32>
    %cst_110 = arith.constant dense<0.000000e+00> : vector<8x128xf32>
    %221 = tpu.matmul %220, %4, %cst_110 {dimension_numbers = #tpu.dot_dimension_numbers<[1], [0], [0], [1], [0, 0, 1, 1], [], []>} : vector<8x64xf32>, vector<64x128xf32>, vector<8x128xf32> -> vector<8x128xf32>
    %222 = vector.broadcast %5 : vector<1x128xf32> to vector<8x128xf32>
    %223 = arith.addf %221, %222 : vector<8x128xf32>
    %224 = arith.negf %223 : vector<8x128xf32>
    %225 = math.exp %224 : vector<8x128xf32>
    %cst_111 = arith.constant 1.000000e+00 : f32
    %226 = vector.broadcast %cst_111 : f32 to vector<8x128xf32>
    %227 = arith.addf %226, %225 : vector<8x128xf32>
    %228 = arith.divf %226, %227 : vector<8x128xf32>
    %229 = math.tanh %223 : vector<8x128xf32>
    %230 = vector.extract_strided_slice %228 {offsets = [0, 0], sizes = [8, 32], strides = [1, 1]} : vector<8x128xf32> to vector<8x32xf32>
    %231 = vector.extract_strided_slice %228 {offsets = [0, 32], sizes = [8, 32], strides = [1, 1]} : vector<8x128xf32> to vector<8x32xf32>
    %232 = vector.extract_strided_slice %229 {offsets = [0, 64], sizes = [8, 32], strides = [1, 1]} : vector<8x128xf32> to vector<8x32xf32>
    %233 = vector.extract_strided_slice %228 {offsets = [0, 96], sizes = [8, 32], strides = [1, 1]} : vector<8x128xf32> to vector<8x32xf32>
    %c0_112 = arith.constant 0 : index
    %c0_113 = arith.constant 0 : index
    %234 = vector.load %arg12[%c0_112, %c0_113] : memref<8x32xf32, #tpu.memory_space<vmem>>, vector<8x32xf32>
    %235 = arith.mulf %231, %234 : vector<8x32xf32>
    %236 = arith.mulf %230, %232 : vector<8x32xf32>
    %237 = arith.addf %235, %236 : vector<8x32xf32>
    %238 = math.tanh %237 : vector<8x32xf32>
    %239 = arith.mulf %233, %238 : vector<8x32xf32>
    %c0_114 = arith.constant 0 : index
    %c0_115 = arith.constant 0 : index
    %240 = vector.load %arg12[%c0_114, %c0_115] : memref<8x32xf32, #tpu.memory_space<vmem>>, vector<8x32xf32>
    tpu.vector_store %arg12[%c0_114, %c0_115], %237 {strides = array<i32>} : memref<8x32xf32, #tpu.memory_space<vmem>>, vector<8x32xf32>,
    %c0_116 = arith.constant 0 : index
    %c0_117 = arith.constant 0 : index
    %241 = vector.load %arg11[%c0_116, %c0_117] : memref<8x32xf32, #tpu.memory_space<vmem>>, vector<8x32xf32>
    tpu.vector_store %arg11[%c0_116, %c0_117], %239 {strides = array<i32>} : memref<8x32xf32, #tpu.memory_space<vmem>>, vector<8x32xf32>,
    %242 = arith.index_cast %c7_i32 : i32 to index
    %c0_118 = arith.constant 0 : index
    %c0_119 = arith.constant 0 : index
    %243 = vector.load %arg10[%242, %c0_118, %c0_119] : memref<8x8x32xf32, #tpu.memory_space<vmem>>, vector<1x8x32xf32>
    %244 = vector.shape_cast %243 : vector<1x8x32xf32> to vector<8x32xf32>
    %245 = vector.shape_cast %239 : vector<8x32xf32> to vector<1x8x32xf32>
    tpu.vector_store %arg10[%242, %c0_118, %c0_119], %245 {strides = array<i32>} : memref<8x8x32xf32, #tpu.memory_space<vmem>>, vector<1x8x32xf32>,
    %c8_i32 = arith.constant 8 : i32
    %cst_120 = arith.constant 0.000000e+00 : f32
    %246 = vector.broadcast %cst_120 : f32 to vector<8x32xf32>
    %c0_121 = arith.constant 0 : index
    %c0_122 = arith.constant 0 : index
    %247 = vector.load %arg11[%c0_121, %c0_122] : memref<8x32xf32, #tpu.memory_space<vmem>>, vector<8x32xf32>
    tpu.vector_store %arg11[%c0_121, %c0_122], %246 {strides = array<i32>} : memref<8x32xf32, #tpu.memory_space<vmem>>, vector<8x32xf32>,
    %cst_123 = arith.constant 0.000000e+00 : f32
    %248 = vector.broadcast %cst_123 : f32 to vector<8x32xf32>
    %c0_124 = arith.constant 0 : index
    %c0_125 = arith.constant 0 : index
    %249 = vector.load %arg12[%c0_124, %c0_125] : memref<8x32xf32, #tpu.memory_space<vmem>>, vector<8x32xf32>
    tpu.vector_store %arg12[%c0_124, %c0_125], %248 {strides = array<i32>} : memref<8x32xf32, #tpu.memory_space<vmem>>, vector<8x32xf32>,
    %c0_126 = arith.constant 0 : index
    %c0_127 = arith.constant 0 : index
    %250 = vector.load %arg3[%c0_126, %c0_127] : memref<64x128xf32, #tpu.memory_space<vmem>>, vector<64x128xf32>
    %c0_128 = arith.constant 0 : index
    %c0_129 = arith.constant 0 : index
    %251 = vector.load %arg4[%c0_128, %c0_129] : memref<1x128xf32, #tpu.memory_space<vmem>>, vector<1x128xf32>
    %c0_i32_130 = arith.constant 0 : i32
    %252 = arith.index_cast %c0_i32_130 : i32 to index
    %c0_131 = arith.constant 0 : index
    %c0_132 = arith.constant 0 : index
    %253 = vector.load %arg10[%252, %c0_131, %c0_132] : memref<8x8x32xf32, #tpu.memory_space<vmem>>, vector<1x8x32xf32>
    %254 = vector.shape_cast %253 : vector<1x8x32xf32> to vector<8x32xf32>
    %c0_133 = arith.constant 0 : index
    %c0_134 = arith.constant 0 : index
    %255 = vector.load %arg11[%c0_133, %c0_134] : memref<8x32xf32, #tpu.memory_space<vmem>>, vector<8x32xf32>
    %256 = tpu.concatenate %254, %255 in 1 : vector<8x32xf32>, vector<8x32xf32> -> vector<8x64xf32>
    %cst_135 = arith.constant dense<0.000000e+00> : vector<8x128xf32>
    %257 = tpu.matmul %256, %250, %cst_135 {dimension_numbers = #tpu.dot_dimension_numbers<[1], [0], [0], [1], [0, 0, 1, 1], [], []>} : vector<8x64xf32>, vector<64x128xf32>, vector<8x128xf32> -> vector<8x128xf32>
    %258 = vector.broadcast %251 : vector<1x128xf32> to vector<8x128xf32>
    %259 = arith.addf %257, %258 : vector<8x128xf32>
    %260 = arith.negf %259 : vector<8x128xf32>
    %261 = math.exp %260 : vector<8x128xf32>
    %cst_136 = arith.constant 1.000000e+00 : f32
    %262 = vector.broadcast %cst_136 : f32 to vector<8x128xf32>
    %263 = arith.addf %262, %261 : vector<8x128xf32>
    %264 = arith.divf %262, %263 : vector<8x128xf32>
    %265 = math.tanh %259 : vector<8x128xf32>
    %266 = vector.extract_strided_slice %264 {offsets = [0, 0], sizes = [8, 32], strides = [1, 1]} : vector<8x128xf32> to vector<8x32xf32>
    %267 = vector.extract_strided_slice %264 {offsets = [0, 32], sizes = [8, 32], strides = [1, 1]} : vector<8x128xf32> to vector<8x32xf32>
    %268 = vector.extract_strided_slice %265 {offsets = [0, 64], sizes = [8, 32], strides = [1, 1]} : vector<8x128xf32> to vector<8x32xf32>
    %269 = vector.extract_strided_slice %264 {offsets = [0, 96], sizes = [8, 32], strides = [1, 1]} : vector<8x128xf32> to vector<8x32xf32>
    %c0_137 = arith.constant 0 : index
    %c0_138 = arith.constant 0 : index
    %270 = vector.load %arg12[%c0_137, %c0_138] : memref<8x32xf32, #tpu.memory_space<vmem>>, vector<8x32xf32>
    %271 = arith.mulf %267, %270 : vector<8x32xf32>
    %272 = arith.mulf %266, %268 : vector<8x32xf32>
    %273 = arith.addf %271, %272 : vector<8x32xf32>
    %274 = math.tanh %273 : vector<8x32xf32>
    %275 = arith.mulf %269, %274 : vector<8x32xf32>
    %c0_139 = arith.constant 0 : index
    %c0_140 = arith.constant 0 : index
    %276 = vector.load %arg12[%c0_139, %c0_140] : memref<8x32xf32, #tpu.memory_space<vmem>>, vector<8x32xf32>
    tpu.vector_store %arg12[%c0_139, %c0_140], %273 {strides = array<i32>} : memref<8x32xf32, #tpu.memory_space<vmem>>, vector<8x32xf32>,
    %c0_141 = arith.constant 0 : index
    %c0_142 = arith.constant 0 : index
    %277 = vector.load %arg11[%c0_141, %c0_142] : memref<8x32xf32, #tpu.memory_space<vmem>>, vector<8x32xf32>
    tpu.vector_store %arg11[%c0_141, %c0_142], %275 {strides = array<i32>} : memref<8x32xf32, #tpu.memory_space<vmem>>, vector<8x32xf32>,
    %278 = arith.index_cast %c0_i32_130 : i32 to index
    %c0_143 = arith.constant 0 : index
    %c0_144 = arith.constant 0 : index
    %279 = vector.load %arg10[%278, %c0_143, %c0_144] : memref<8x8x32xf32, #tpu.memory_space<vmem>>, vector<1x8x32xf32>
    %280 = vector.shape_cast %279 : vector<1x8x32xf32> to vector<8x32xf32>
    %281 = vector.shape_cast %275 : vector<8x32xf32> to vector<1x8x32xf32>
    tpu.vector_store %arg10[%278, %c0_143, %c0_144], %281 {strides = array<i32>} : memref<8x8x32xf32, #tpu.memory_space<vmem>>, vector<1x8x32xf32>,
    %c1_i32_145 = arith.constant 1 : i32
    %282 = arith.index_cast %c1_i32_145 : i32 to index
    %c0_146 = arith.constant 0 : index
    %c0_147 = arith.constant 0 : index
    %283 = vector.load %arg10[%282, %c0_146, %c0_147] : memref<8x8x32xf32, #tpu.memory_space<vmem>>, vector<1x8x32xf32>
    %284 = vector.shape_cast %283 : vector<1x8x32xf32> to vector<8x32xf32>
    %c0_148 = arith.constant 0 : index
    %c0_149 = arith.constant 0 : index
    %285 = vector.load %arg11[%c0_148, %c0_149] : memref<8x32xf32, #tpu.memory_space<vmem>>, vector<8x32xf32>
    %286 = tpu.concatenate %284, %285 in 1 : vector<8x32xf32>, vector<8x32xf32> -> vector<8x64xf32>
    %cst_150 = arith.constant dense<0.000000e+00> : vector<8x128xf32>
    %287 = tpu.matmul %286, %250, %cst_150 {dimension_numbers = #tpu.dot_dimension_numbers<[1], [0], [0], [1], [0, 0, 1, 1], [], []>} : vector<8x64xf32>, vector<64x128xf32>, vector<8x128xf32> -> vector<8x128xf32>
    %288 = vector.broadcast %251 : vector<1x128xf32> to vector<8x128xf32>
    %289 = arith.addf %287, %288 : vector<8x128xf32>
    %290 = arith.negf %289 : vector<8x128xf32>
    %291 = math.exp %290 : vector<8x128xf32>
    %cst_151 = arith.constant 1.000000e+00 : f32
    %292 = vector.broadcast %cst_151 : f32 to vector<8x128xf32>
    %293 = arith.addf %292, %291 : vector<8x128xf32>
    %294 = arith.divf %292, %293 : vector<8x128xf32>
    %295 = math.tanh %289 : vector<8x128xf32>
    %296 = vector.extract_strided_slice %294 {offsets = [0, 0], sizes = [8, 32], strides = [1, 1]} : vector<8x128xf32> to vector<8x32xf32>
    %297 = vector.extract_strided_slice %294 {offsets = [0, 32], sizes = [8, 32], strides = [1, 1]} : vector<8x128xf32> to vector<8x32xf32>
    %298 = vector.extract_strided_slice %295 {offsets = [0, 64], sizes = [8, 32], strides = [1, 1]} : vector<8x128xf32> to vector<8x32xf32>
    %299 = vector.extract_strided_slice %294 {offsets = [0, 96], sizes = [8, 32], strides = [1, 1]} : vector<8x128xf32> to vector<8x32xf32>
    %c0_152 = arith.constant 0 : index
    %c0_153 = arith.constant 0 : index
    %300 = vector.load %arg12[%c0_152, %c0_153] : memref<8x32xf32, #tpu.memory_space<vmem>>, vector<8x32xf32>
    %301 = arith.mulf %297, %300 : vector<8x32xf32>
    %302 = arith.mulf %296, %298 : vector<8x32xf32>
    %303 = arith.addf %301, %302 : vector<8x32xf32>
    %304 = math.tanh %303 : vector<8x32xf32>
    %305 = arith.mulf %299, %304 : vector<8x32xf32>
    %c0_154 = arith.constant 0 : index
    %c0_155 = arith.constant 0 : index
    %306 = vector.load %arg12[%c0_154, %c0_155] : memref<8x32xf32, #tpu.memory_space<vmem>>, vector<8x32xf32>
    tpu.vector_store %arg12[%c0_154, %c0_155], %303 {strides = array<i32>} : memref<8x32xf32, #tpu.memory_space<vmem>>, vector<8x32xf32>,
    %c0_156 = arith.constant 0 : index
    %c0_157 = arith.constant 0 : index
    %307 = vector.load %arg11[%c0_156, %c0_157] : memref<8x32xf32, #tpu.memory_space<vmem>>, vector<8x32xf32>
    tpu.vector_store %arg11[%c0_156, %c0_157], %305 {strides = array<i32>} : memref<8x32xf32, #tpu.memory_space<vmem>>, vector<8x32xf32>,
    %308 = arith.index_cast %c1_i32_145 : i32 to index
    %c0_158 = arith.constant 0 : index
    %c0_159 = arith.constant 0 : index
    %309 = vector.load %arg10[%308, %c0_158, %c0_159] : memref<8x8x32xf32, #tpu.memory_space<vmem>>, vector<1x8x32xf32>
    %310 = vector.shape_cast %309 : vector<1x8x32xf32> to vector<8x32xf32>
    %311 = vector.shape_cast %305 : vector<8x32xf32> to vector<1x8x32xf32>
    tpu.vector_store %arg10[%308, %c0_158, %c0_159], %311 {strides = array<i32>} : memref<8x8x32xf32, #tpu.memory_space<vmem>>, vector<1x8x32xf32>,
    %c2_i32_160 = arith.constant 2 : i32
    %312 = arith.index_cast %c2_i32_160 : i32 to index
    %c0_161 = arith.constant 0 : index
    %c0_162 = arith.constant 0 : index
    %313 = vector.load %arg10[%312, %c0_161, %c0_162] : memref<8x8x32xf32, #tpu.memory_space<vmem>>, vector<1x8x32xf32>
    %314 = vector.shape_cast %313 : vector<1x8x32xf32> to vector<8x32xf32>
    %c0_163 = arith.constant 0 : index
    %c0_164 = arith.constant 0 : index
    %315 = vector.load %arg11[%c0_163, %c0_164] : memref<8x32xf32, #tpu.memory_space<vmem>>, vector<8x32xf32>
    %316 = tpu.concatenate %314, %315 in 1 : vector<8x32xf32>, vector<8x32xf32> -> vector<8x64xf32>
    %cst_165 = arith.constant dense<0.000000e+00> : vector<8x128xf32>
    %317 = tpu.matmul %316, %250, %cst_165 {dimension_numbers = #tpu.dot_dimension_numbers<[1], [0], [0], [1], [0, 0, 1, 1], [], []>} : vector<8x64xf32>, vector<64x128xf32>, vector<8x128xf32> -> vector<8x128xf32>
    %318 = vector.broadcast %251 : vector<1x128xf32> to vector<8x128xf32>
    %319 = arith.addf %317, %318 : vector<8x128xf32>
    %320 = arith.negf %319 : vector<8x128xf32>
    %321 = math.exp %320 : vector<8x128xf32>
    %cst_166 = arith.constant 1.000000e+00 : f32
    %322 = vector.broadcast %cst_166 : f32 to vector<8x128xf32>
    %323 = arith.addf %322, %321 : vector<8x128xf32>
    %324 = arith.divf %322, %323 : vector<8x128xf32>
    %325 = math.tanh %319 : vector<8x128xf32>
    %326 = vector.extract_strided_slice %324 {offsets = [0, 0], sizes = [8, 32], strides = [1, 1]} : vector<8x128xf32> to vector<8x32xf32>
    %327 = vector.extract_strided_slice %324 {offsets = [0, 32], sizes = [8, 32], strides = [1, 1]} : vector<8x128xf32> to vector<8x32xf32>
    %328 = vector.extract_strided_slice %325 {offsets = [0, 64], sizes = [8, 32], strides = [1, 1]} : vector<8x128xf32> to vector<8x32xf32>
    %329 = vector.extract_strided_slice %324 {offsets = [0, 96], sizes = [8, 32], strides = [1, 1]} : vector<8x128xf32> to vector<8x32xf32>
    %c0_167 = arith.constant 0 : index
    %c0_168 = arith.constant 0 : index
    %330 = vector.load %arg12[%c0_167, %c0_168] : memref<8x32xf32, #tpu.memory_space<vmem>>, vector<8x32xf32>
    %331 = arith.mulf %327, %330 : vector<8x32xf32>
    %332 = arith.mulf %326, %328 : vector<8x32xf32>
    %333 = arith.addf %331, %332 : vector<8x32xf32>
    %334 = math.tanh %333 : vector<8x32xf32>
    %335 = arith.mulf %329, %334 : vector<8x32xf32>
    %c0_169 = arith.constant 0 : index
    %c0_170 = arith.constant 0 : index
    %336 = vector.load %arg12[%c0_169, %c0_170] : memref<8x32xf32, #tpu.memory_space<vmem>>, vector<8x32xf32>
    tpu.vector_store %arg12[%c0_169, %c0_170], %333 {strides = array<i32>} : memref<8x32xf32, #tpu.memory_space<vmem>>, vector<8x32xf32>,
    %c0_171 = arith.constant 0 : index
    %c0_172 = arith.constant 0 : index
    %337 = vector.load %arg11[%c0_171, %c0_172] : memref<8x32xf32, #tpu.memory_space<vmem>>, vector<8x32xf32>
    tpu.vector_store %arg11[%c0_171, %c0_172], %335 {strides = array<i32>} : memref<8x32xf32, #tpu.memory_space<vmem>>, vector<8x32xf32>,
    %338 = arith.index_cast %c2_i32_160 : i32 to index
    %c0_173 = arith.constant 0 : index
    %c0_174 = arith.constant 0 : index
    %339 = vector.load %arg10[%338, %c0_173, %c0_174] : memref<8x8x32xf32, #tpu.memory_space<vmem>>, vector<1x8x32xf32>
    %340 = vector.shape_cast %339 : vector<1x8x32xf32> to vector<8x32xf32>
    %341 = vector.shape_cast %335 : vector<8x32xf32> to vector<1x8x32xf32>
    tpu.vector_store %arg10[%338, %c0_173, %c0_174], %341 {strides = array<i32>} : memref<8x8x32xf32, #tpu.memory_space<vmem>>, vector<1x8x32xf32>,
    %c3_i32_175 = arith.constant 3 : i32
    %342 = arith.index_cast %c3_i32_175 : i32 to index
    %c0_176 = arith.constant 0 : index
    %c0_177 = arith.constant 0 : index
    %343 = vector.load %arg10[%342, %c0_176, %c0_177] : memref<8x8x32xf32, #tpu.memory_space<vmem>>, vector<1x8x32xf32>
    %344 = vector.shape_cast %343 : vector<1x8x32xf32> to vector<8x32xf32>
    %c0_178 = arith.constant 0 : index
    %c0_179 = arith.constant 0 : index
    %345 = vector.load %arg11[%c0_178, %c0_179] : memref<8x32xf32, #tpu.memory_space<vmem>>, vector<8x32xf32>
    %346 = tpu.concatenate %344, %345 in 1 : vector<8x32xf32>, vector<8x32xf32> -> vector<8x64xf32>
    %cst_180 = arith.constant dense<0.000000e+00> : vector<8x128xf32>
    %347 = tpu.matmul %346, %250, %cst_180 {dimension_numbers = #tpu.dot_dimension_numbers<[1], [0], [0], [1], [0, 0, 1, 1], [], []>} : vector<8x64xf32>, vector<64x128xf32>, vector<8x128xf32> -> vector<8x128xf32>
    %348 = vector.broadcast %251 : vector<1x128xf32> to vector<8x128xf32>
    %349 = arith.addf %347, %348 : vector<8x128xf32>
    %350 = arith.negf %349 : vector<8x128xf32>
    %351 = math.exp %350 : vector<8x128xf32>
    %cst_181 = arith.constant 1.000000e+00 : f32
    %352 = vector.broadcast %cst_181 : f32 to vector<8x128xf32>
    %353 = arith.addf %352, %351 : vector<8x128xf32>
    %354 = arith.divf %352, %353 : vector<8x128xf32>
    %355 = math.tanh %349 : vector<8x128xf32>
    %356 = vector.extract_strided_slice %354 {offsets = [0, 0], sizes = [8, 32], strides = [1, 1]} : vector<8x128xf32> to vector<8x32xf32>
    %357 = vector.extract_strided_slice %354 {offsets = [0, 32], sizes = [8, 32], strides = [1, 1]} : vector<8x128xf32> to vector<8x32xf32>
    %358 = vector.extract_strided_slice %355 {offsets = [0, 64], sizes = [8, 32], strides = [1, 1]} : vector<8x128xf32> to vector<8x32xf32>
    %359 = vector.extract_strided_slice %354 {offsets = [0, 96], sizes = [8, 32], strides = [1, 1]} : vector<8x128xf32> to vector<8x32xf32>
    %c0_182 = arith.constant 0 : index
    %c0_183 = arith.constant 0 : index
    %360 = vector.load %arg12[%c0_182, %c0_183] : memref<8x32xf32, #tpu.memory_space<vmem>>, vector<8x32xf32>
    %361 = arith.mulf %357, %360 : vector<8x32xf32>
    %362 = arith.mulf %356, %358 : vector<8x32xf32>
    %363 = arith.addf %361, %362 : vector<8x32xf32>
    %364 = math.tanh %363 : vector<8x32xf32>
    %365 = arith.mulf %359, %364 : vector<8x32xf32>
    %c0_184 = arith.constant 0 : index
    %c0_185 = arith.constant 0 : index
    %366 = vector.load %arg12[%c0_184, %c0_185] : memref<8x32xf32, #tpu.memory_space<vmem>>, vector<8x32xf32>
    tpu.vector_store %arg12[%c0_184, %c0_185], %363 {strides = array<i32>} : memref<8x32xf32, #tpu.memory_space<vmem>>, vector<8x32xf32>,
    %c0_186 = arith.constant 0 : index
    %c0_187 = arith.constant 0 : index
    %367 = vector.load %arg11[%c0_186, %c0_187] : memref<8x32xf32, #tpu.memory_space<vmem>>, vector<8x32xf32>
    tpu.vector_store %arg11[%c0_186, %c0_187], %365 {strides = array<i32>} : memref<8x32xf32, #tpu.memory_space<vmem>>, vector<8x32xf32>,
    %368 = arith.index_cast %c3_i32_175 : i32 to index
    %c0_188 = arith.constant 0 : index
    %c0_189 = arith.constant 0 : index
    %369 = vector.load %arg10[%368, %c0_188, %c0_189] : memref<8x8x32xf32, #tpu.memory_space<vmem>>, vector<1x8x32xf32>
    %370 = vector.shape_cast %369 : vector<1x8x32xf32> to vector<8x32xf32>
    %371 = vector.shape_cast %365 : vector<8x32xf32> to vector<1x8x32xf32>
    tpu.vector_store %arg10[%368, %c0_188, %c0_189], %371 {strides = array<i32>} : memref<8x8x32xf32, #tpu.memory_space<vmem>>, vector<1x8x32xf32>,
    %c4_i32_190 = arith.constant 4 : i32
    %372 = arith.index_cast %c4_i32_190 : i32 to index
    %c0_191 = arith.constant 0 : index
    %c0_192 = arith.constant 0 : index
    %373 = vector.load %arg10[%372, %c0_191, %c0_192] : memref<8x8x32xf32, #tpu.memory_space<vmem>>, vector<1x8x32xf32>
    %374 = vector.shape_cast %373 : vector<1x8x32xf32> to vector<8x32xf32>
    %c0_193 = arith.constant 0 : index
    %c0_194 = arith.constant 0 : index
    %375 = vector.load %arg11[%c0_193, %c0_194] : memref<8x32xf32, #tpu.memory_space<vmem>>, vector<8x32xf32>
    %376 = tpu.concatenate %374, %375 in 1 : vector<8x32xf32>, vector<8x32xf32> -> vector<8x64xf32>
    %cst_195 = arith.constant dense<0.000000e+00> : vector<8x128xf32>
    %377 = tpu.matmul %376, %250, %cst_195 {dimension_numbers = #tpu.dot_dimension_numbers<[1], [0], [0], [1], [0, 0, 1, 1], [], []>} : vector<8x64xf32>, vector<64x128xf32>, vector<8x128xf32> -> vector<8x128xf32>
    %378 = vector.broadcast %251 : vector<1x128xf32> to vector<8x128xf32>
    %379 = arith.addf %377, %378 : vector<8x128xf32>
    %380 = arith.negf %379 : vector<8x128xf32>
    %381 = math.exp %380 : vector<8x128xf32>
    %cst_196 = arith.constant 1.000000e+00 : f32
    %382 = vector.broadcast %cst_196 : f32 to vector<8x128xf32>
    %383 = arith.addf %382, %381 : vector<8x128xf32>
    %384 = arith.divf %382, %383 : vector<8x128xf32>
    %385 = math.tanh %379 : vector<8x128xf32>
    %386 = vector.extract_strided_slice %384 {offsets = [0, 0], sizes = [8, 32], strides = [1, 1]} : vector<8x128xf32> to vector<8x32xf32>
    %387 = vector.extract_strided_slice %384 {offsets = [0, 32], sizes = [8, 32], strides = [1, 1]} : vector<8x128xf32> to vector<8x32xf32>
    %388 = vector.extract_strided_slice %385 {offsets = [0, 64], sizes = [8, 32], strides = [1, 1]} : vector<8x128xf32> to vector<8x32xf32>
    %389 = vector.extract_strided_slice %384 {offsets = [0, 96], sizes = [8, 32], strides = [1, 1]} : vector<8x128xf32> to vector<8x32xf32>
    %c0_197 = arith.constant 0 : index
    %c0_198 = arith.constant 0 : index
    %390 = vector.load %arg12[%c0_197, %c0_198] : memref<8x32xf32, #tpu.memory_space<vmem>>, vector<8x32xf32>
    %391 = arith.mulf %387, %390 : vector<8x32xf32>
    %392 = arith.mulf %386, %388 : vector<8x32xf32>
    %393 = arith.addf %391, %392 : vector<8x32xf32>
    %394 = math.tanh %393 : vector<8x32xf32>
    %395 = arith.mulf %389, %394 : vector<8x32xf32>
    %c0_199 = arith.constant 0 : index
    %c0_200 = arith.constant 0 : index
    %396 = vector.load %arg12[%c0_199, %c0_200] : memref<8x32xf32, #tpu.memory_space<vmem>>, vector<8x32xf32>
    tpu.vector_store %arg12[%c0_199, %c0_200], %393 {strides = array<i32>} : memref<8x32xf32, #tpu.memory_space<vmem>>, vector<8x32xf32>,
    %c0_201 = arith.constant 0 : index
    %c0_202 = arith.constant 0 : index
    %397 = vector.load %arg11[%c0_201, %c0_202] : memref<8x32xf32, #tpu.memory_space<vmem>>, vector<8x32xf32>
    tpu.vector_store %arg11[%c0_201, %c0_202], %395 {strides = array<i32>} : memref<8x32xf32, #tpu.memory_space<vmem>>, vector<8x32xf32>,
    %398 = arith.index_cast %c4_i32_190 : i32 to index
    %c0_203 = arith.constant 0 : index
    %c0_204 = arith.constant 0 : index
    %399 = vector.load %arg10[%398, %c0_203, %c0_204] : memref<8x8x32xf32, #tpu.memory_space<vmem>>, vector<1x8x32xf32>
    %400 = vector.shape_cast %399 : vector<1x8x32xf32> to vector<8x32xf32>
    %401 = vector.shape_cast %395 : vector<8x32xf32> to vector<1x8x32xf32>
    tpu.vector_store %arg10[%398, %c0_203, %c0_204], %401 {strides = array<i32>} : memref<8x8x32xf32, #tpu.memory_space<vmem>>, vector<1x8x32xf32>,
    %c5_i32_205 = arith.constant 5 : i32
    %402 = arith.index_cast %c5_i32_205 : i32 to index
    %c0_206 = arith.constant 0 : index
    %c0_207 = arith.constant 0 : index
    %403 = vector.load %arg10[%402, %c0_206, %c0_207] : memref<8x8x32xf32, #tpu.memory_space<vmem>>, vector<1x8x32xf32>
    %404 = vector.shape_cast %403 : vector<1x8x32xf32> to vector<8x32xf32>
    %c0_208 = arith.constant 0 : index
    %c0_209 = arith.constant 0 : index
    %405 = vector.load %arg11[%c0_208, %c0_209] : memref<8x32xf32, #tpu.memory_space<vmem>>, vector<8x32xf32>
    %406 = tpu.concatenate %404, %405 in 1 : vector<8x32xf32>, vector<8x32xf32> -> vector<8x64xf32>
    %cst_210 = arith.constant dense<0.000000e+00> : vector<8x128xf32>
    %407 = tpu.matmul %406, %250, %cst_210 {dimension_numbers = #tpu.dot_dimension_numbers<[1], [0], [0], [1], [0, 0, 1, 1], [], []>} : vector<8x64xf32>, vector<64x128xf32>, vector<8x128xf32> -> vector<8x128xf32>
    %408 = vector.broadcast %251 : vector<1x128xf32> to vector<8x128xf32>
    %409 = arith.addf %407, %408 : vector<8x128xf32>
    %410 = arith.negf %409 : vector<8x128xf32>
    %411 = math.exp %410 : vector<8x128xf32>
    %cst_211 = arith.constant 1.000000e+00 : f32
    %412 = vector.broadcast %cst_211 : f32 to vector<8x128xf32>
    %413 = arith.addf %412, %411 : vector<8x128xf32>
    %414 = arith.divf %412, %413 : vector<8x128xf32>
    %415 = math.tanh %409 : vector<8x128xf32>
    %416 = vector.extract_strided_slice %414 {offsets = [0, 0], sizes = [8, 32], strides = [1, 1]} : vector<8x128xf32> to vector<8x32xf32>
    %417 = vector.extract_strided_slice %414 {offsets = [0, 32], sizes = [8, 32], strides = [1, 1]} : vector<8x128xf32> to vector<8x32xf32>
    %418 = vector.extract_strided_slice %415 {offsets = [0, 64], sizes = [8, 32], strides = [1, 1]} : vector<8x128xf32> to vector<8x32xf32>
    %419 = vector.extract_strided_slice %414 {offsets = [0, 96], sizes = [8, 32], strides = [1, 1]} : vector<8x128xf32> to vector<8x32xf32>
    %c0_212 = arith.constant 0 : index
    %c0_213 = arith.constant 0 : index
    %420 = vector.load %arg12[%c0_212, %c0_213] : memref<8x32xf32, #tpu.memory_space<vmem>>, vector<8x32xf32>
    %421 = arith.mulf %417, %420 : vector<8x32xf32>
    %422 = arith.mulf %416, %418 : vector<8x32xf32>
    %423 = arith.addf %421, %422 : vector<8x32xf32>
    %424 = math.tanh %423 : vector<8x32xf32>
    %425 = arith.mulf %419, %424 : vector<8x32xf32>
    %c0_214 = arith.constant 0 : index
    %c0_215 = arith.constant 0 : index
    %426 = vector.load %arg12[%c0_214, %c0_215] : memref<8x32xf32, #tpu.memory_space<vmem>>, vector<8x32xf32>
    tpu.vector_store %arg12[%c0_214, %c0_215], %423 {strides = array<i32>} : memref<8x32xf32, #tpu.memory_space<vmem>>, vector<8x32xf32>,
    %c0_216 = arith.constant 0 : index
    %c0_217 = arith.constant 0 : index
    %427 = vector.load %arg11[%c0_216, %c0_217] : memref<8x32xf32, #tpu.memory_space<vmem>>, vector<8x32xf32>
    tpu.vector_store %arg11[%c0_216, %c0_217], %425 {strides = array<i32>} : memref<8x32xf32, #tpu.memory_space<vmem>>, vector<8x32xf32>,
    %428 = arith.index_cast %c5_i32_205 : i32 to index
    %c0_218 = arith.constant 0 : index
    %c0_219 = arith.constant 0 : index
    %429 = vector.load %arg10[%428, %c0_218, %c0_219] : memref<8x8x32xf32, #tpu.memory_space<vmem>>, vector<1x8x32xf32>
    %430 = vector.shape_cast %429 : vector<1x8x32xf32> to vector<8x32xf32>
    %431 = vector.shape_cast %425 : vector<8x32xf32> to vector<1x8x32xf32>
    tpu.vector_store %arg10[%428, %c0_218, %c0_219], %431 {strides = array<i32>} : memref<8x8x32xf32, #tpu.memory_space<vmem>>, vector<1x8x32xf32>,
    %c6_i32_220 = arith.constant 6 : i32
    %432 = arith.index_cast %c6_i32_220 : i32 to index
    %c0_221 = arith.constant 0 : index
    %c0_222 = arith.constant 0 : index
    %433 = vector.load %arg10[%432, %c0_221, %c0_222] : memref<8x8x32xf32, #tpu.memory_space<vmem>>, vector<1x8x32xf32>
    %434 = vector.shape_cast %433 : vector<1x8x32xf32> to vector<8x32xf32>
    %c0_223 = arith.constant 0 : index
    %c0_224 = arith.constant 0 : index
    %435 = vector.load %arg11[%c0_223, %c0_224] : memref<8x32xf32, #tpu.memory_space<vmem>>, vector<8x32xf32>
    %436 = tpu.concatenate %434, %435 in 1 : vector<8x32xf32>, vector<8x32xf32> -> vector<8x64xf32>
    %cst_225 = arith.constant dense<0.000000e+00> : vector<8x128xf32>
    %437 = tpu.matmul %436, %250, %cst_225 {dimension_numbers = #tpu.dot_dimension_numbers<[1], [0], [0], [1], [0, 0, 1, 1], [], []>} : vector<8x64xf32>, vector<64x128xf32>, vector<8x128xf32> -> vector<8x128xf32>
    %438 = vector.broadcast %251 : vector<1x128xf32> to vector<8x128xf32>
    %439 = arith.addf %437, %438 : vector<8x128xf32>
    %440 = arith.negf %439 : vector<8x128xf32>
    %441 = math.exp %440 : vector<8x128xf32>
    %cst_226 = arith.constant 1.000000e+00 : f32
    %442 = vector.broadcast %cst_226 : f32 to vector<8x128xf32>
    %443 = arith.addf %442, %441 : vector<8x128xf32>
    %444 = arith.divf %442, %443 : vector<8x128xf32>
    %445 = math.tanh %439 : vector<8x128xf32>
    %446 = vector.extract_strided_slice %444 {offsets = [0, 0], sizes = [8, 32], strides = [1, 1]} : vector<8x128xf32> to vector<8x32xf32>
    %447 = vector.extract_strided_slice %444 {offsets = [0, 32], sizes = [8, 32], strides = [1, 1]} : vector<8x128xf32> to vector<8x32xf32>
    %448 = vector.extract_strided_slice %445 {offsets = [0, 64], sizes = [8, 32], strides = [1, 1]} : vector<8x128xf32> to vector<8x32xf32>
    %449 = vector.extract_strided_slice %444 {offsets = [0, 96], sizes = [8, 32], strides = [1, 1]} : vector<8x128xf32> to vector<8x32xf32>
    %c0_227 = arith.constant 0 : index
    %c0_228 = arith.constant 0 : index
    %450 = vector.load %arg12[%c0_227, %c0_228] : memref<8x32xf32, #tpu.memory_space<vmem>>, vector<8x32xf32>
    %451 = arith.mulf %447, %450 : vector<8x32xf32>
    %452 = arith.mulf %446, %448 : vector<8x32xf32>
    %453 = arith.addf %451, %452 : vector<8x32xf32>
    %454 = math.tanh %453 : vector<8x32xf32>
    %455 = arith.mulf %449, %454 : vector<8x32xf32>
    %c0_229 = arith.constant 0 : index
    %c0_230 = arith.constant 0 : index
    %456 = vector.load %arg12[%c0_229, %c0_230] : memref<8x32xf32, #tpu.memory_space<vmem>>, vector<8x32xf32>
    tpu.vector_store %arg12[%c0_229, %c0_230], %453 {strides = array<i32>} : memref<8x32xf32, #tpu.memory_space<vmem>>, vector<8x32xf32>,
    %c0_231 = arith.constant 0 : index
    %c0_232 = arith.constant 0 : index
    %457 = vector.load %arg11[%c0_231, %c0_232] : memref<8x32xf32, #tpu.memory_space<vmem>>, vector<8x32xf32>
    tpu.vector_store %arg11[%c0_231, %c0_232], %455 {strides = array<i32>} : memref<8x32xf32, #tpu.memory_space<vmem>>, vector<8x32xf32>,
    %458 = arith.index_cast %c6_i32_220 : i32 to index
    %c0_233 = arith.constant 0 : index
    %c0_234 = arith.constant 0 : index
    %459 = vector.load %arg10[%458, %c0_233, %c0_234] : memref<8x8x32xf32, #tpu.memory_space<vmem>>, vector<1x8x32xf32>
    %460 = vector.shape_cast %459 : vector<1x8x32xf32> to vector<8x32xf32>
    %461 = vector.shape_cast %455 : vector<8x32xf32> to vector<1x8x32xf32>
    tpu.vector_store %arg10[%458, %c0_233, %c0_234], %461 {strides = array<i32>} : memref<8x8x32xf32, #tpu.memory_space<vmem>>, vector<1x8x32xf32>,
    %c7_i32_235 = arith.constant 7 : i32
    %462 = arith.index_cast %c7_i32_235 : i32 to index
    %c0_236 = arith.constant 0 : index
    %c0_237 = arith.constant 0 : index
    %463 = vector.load %arg10[%462, %c0_236, %c0_237] : memref<8x8x32xf32, #tpu.memory_space<vmem>>, vector<1x8x32xf32>
    %464 = vector.shape_cast %463 : vector<1x8x32xf32> to vector<8x32xf32>
    %c0_238 = arith.constant 0 : index
    %c0_239 = arith.constant 0 : index
    %465 = vector.load %arg11[%c0_238, %c0_239] : memref<8x32xf32, #tpu.memory_space<vmem>>, vector<8x32xf32>
    %466 = tpu.concatenate %464, %465 in 1 : vector<8x32xf32>, vector<8x32xf32> -> vector<8x64xf32>
    %cst_240 = arith.constant dense<0.000000e+00> : vector<8x128xf32>
    %467 = tpu.matmul %466, %250, %cst_240 {dimension_numbers = #tpu.dot_dimension_numbers<[1], [0], [0], [1], [0, 0, 1, 1], [], []>} : vector<8x64xf32>, vector<64x128xf32>, vector<8x128xf32> -> vector<8x128xf32>
    %468 = vector.broadcast %251 : vector<1x128xf32> to vector<8x128xf32>
    %469 = arith.addf %467, %468 : vector<8x128xf32>
    %470 = arith.negf %469 : vector<8x128xf32>
    %471 = math.exp %470 : vector<8x128xf32>
    %cst_241 = arith.constant 1.000000e+00 : f32
    %472 = vector.broadcast %cst_241 : f32 to vector<8x128xf32>
    %473 = arith.addf %472, %471 : vector<8x128xf32>
    %474 = arith.divf %472, %473 : vector<8x128xf32>
    %475 = math.tanh %469 : vector<8x128xf32>
    %476 = vector.extract_strided_slice %474 {offsets = [0, 0], sizes = [8, 32], strides = [1, 1]} : vector<8x128xf32> to vector<8x32xf32>
    %477 = vector.extract_strided_slice %474 {offsets = [0, 32], sizes = [8, 32], strides = [1, 1]} : vector<8x128xf32> to vector<8x32xf32>
    %478 = vector.extract_strided_slice %475 {offsets = [0, 64], sizes = [8, 32], strides = [1, 1]} : vector<8x128xf32> to vector<8x32xf32>
    %479 = vector.extract_strided_slice %474 {offsets = [0, 96], sizes = [8, 32], strides = [1, 1]} : vector<8x128xf32> to vector<8x32xf32>
    %c0_242 = arith.constant 0 : index
    %c0_243 = arith.constant 0 : index
    %480 = vector.load %arg12[%c0_242, %c0_243] : memref<8x32xf32, #tpu.memory_space<vmem>>, vector<8x32xf32>
    %481 = arith.mulf %477, %480 : vector<8x32xf32>
    %482 = arith.mulf %476, %478 : vector<8x32xf32>
    %483 = arith.addf %481, %482 : vector<8x32xf32>
    %484 = math.tanh %483 : vector<8x32xf32>
    %485 = arith.mulf %479, %484 : vector<8x32xf32>
    %c0_244 = arith.constant 0 : index
    %c0_245 = arith.constant 0 : index
    %486 = vector.load %arg12[%c0_244, %c0_245] : memref<8x32xf32, #tpu.memory_space<vmem>>, vector<8x32xf32>
    tpu.vector_store %arg12[%c0_244, %c0_245], %483 {strides = array<i32>} : memref<8x32xf32, #tpu.memory_space<vmem>>, vector<8x32xf32>,
    %c0_246 = arith.constant 0 : index
    %c0_247 = arith.constant 0 : index
    %487 = vector.load %arg11[%c0_246, %c0_247] : memref<8x32xf32, #tpu.memory_space<vmem>>, vector<8x32xf32>
    tpu.vector_store %arg11[%c0_246, %c0_247], %485 {strides = array<i32>} : memref<8x32xf32, #tpu.memory_space<vmem>>, vector<8x32xf32>,
    %488 = arith.index_cast %c7_i32_235 : i32 to index
    %c0_248 = arith.constant 0 : index
    %c0_249 = arith.constant 0 : index
    %489 = vector.load %arg10[%488, %c0_248, %c0_249] : memref<8x8x32xf32, #tpu.memory_space<vmem>>, vector<1x8x32xf32>
    %490 = vector.shape_cast %489 : vector<1x8x32xf32> to vector<8x32xf32>
    %491 = vector.shape_cast %485 : vector<8x32xf32> to vector<1x8x32xf32>
    tpu.vector_store %arg10[%488, %c0_248, %c0_249], %491 {strides = array<i32>} : memref<8x8x32xf32, #tpu.memory_space<vmem>>, vector<1x8x32xf32>,
    %c8_i32_250 = arith.constant 8 : i32
    %cst_251 = arith.constant 0.000000e+00 : f32
    %492 = vector.broadcast %cst_251 : f32 to vector<8x32xf32>
    %c0_252 = arith.constant 0 : index
    %c0_253 = arith.constant 0 : index
    %493 = vector.load %arg11[%c0_252, %c0_253] : memref<8x32xf32, #tpu.memory_space<vmem>>, vector<8x32xf32>
    tpu.vector_store %arg11[%c0_252, %c0_253], %492 {strides = array<i32>} : memref<8x32xf32, #tpu.memory_space<vmem>>, vector<8x32xf32>,
    %cst_254 = arith.constant 0.000000e+00 : f32
    %494 = vector.broadcast %cst_254 : f32 to vector<8x32xf32>
    %c0_255 = arith.constant 0 : index
    %c0_256 = arith.constant 0 : index
    %495 = vector.load %arg12[%c0_255, %c0_256] : memref<8x32xf32, #tpu.memory_space<vmem>>, vector<8x32xf32>
    tpu.vector_store %arg12[%c0_255, %c0_256], %494 {strides = array<i32>} : memref<8x32xf32, #tpu.memory_space<vmem>>, vector<8x32xf32>,
    %c0_257 = arith.constant 0 : index
    %c0_258 = arith.constant 0 : index
    %496 = vector.load %arg5[%c0_257, %c0_258] : memref<64x128xf32, #tpu.memory_space<vmem>>, vector<64x128xf32>
    %c0_259 = arith.constant 0 : index
    %c0_260 = arith.constant 0 : index
    %497 = vector.load %arg6[%c0_259, %c0_260] : memref<1x128xf32, #tpu.memory_space<vmem>>, vector<1x128xf32>
    %c0_i32_261 = arith.constant 0 : i32
    %498 = arith.index_cast %c0_i32_261 : i32 to index
    %c0_262 = arith.constant 0 : index
    %c0_263 = arith.constant 0 : index
    %499 = vector.load %arg10[%498, %c0_262, %c0_263] : memref<8x8x32xf32, #tpu.memory_space<vmem>>, vector<1x8x32xf32>
    %500 = vector.shape_cast %499 : vector<1x8x32xf32> to vector<8x32xf32>
    %c0_264 = arith.constant 0 : index
    %c0_265 = arith.constant 0 : index
    %501 = vector.load %arg11[%c0_264, %c0_265] : memref<8x32xf32, #tpu.memory_space<vmem>>, vector<8x32xf32>
    %502 = tpu.concatenate %500, %501 in 1 : vector<8x32xf32>, vector<8x32xf32> -> vector<8x64xf32>
    %cst_266 = arith.constant dense<0.000000e+00> : vector<8x128xf32>
    %503 = tpu.matmul %502, %496, %cst_266 {dimension_numbers = #tpu.dot_dimension_numbers<[1], [0], [0], [1], [0, 0, 1, 1], [], []>} : vector<8x64xf32>, vector<64x128xf32>, vector<8x128xf32> -> vector<8x128xf32>
    %504 = vector.broadcast %497 : vector<1x128xf32> to vector<8x128xf32>
    %505 = arith.addf %503, %504 : vector<8x128xf32>
    %506 = arith.negf %505 : vector<8x128xf32>
    %507 = math.exp %506 : vector<8x128xf32>
    %cst_267 = arith.constant 1.000000e+00 : f32
    %508 = vector.broadcast %cst_267 : f32 to vector<8x128xf32>
    %509 = arith.addf %508, %507 : vector<8x128xf32>
    %510 = arith.divf %508, %509 : vector<8x128xf32>
    %511 = math.tanh %505 : vector<8x128xf32>
    %512 = vector.extract_strided_slice %510 {offsets = [0, 0], sizes = [8, 32], strides = [1, 1]} : vector<8x128xf32> to vector<8x32xf32>
    %513 = vector.extract_strided_slice %510 {offsets = [0, 32], sizes = [8, 32], strides = [1, 1]} : vector<8x128xf32> to vector<8x32xf32>
    %514 = vector.extract_strided_slice %511 {offsets = [0, 64], sizes = [8, 32], strides = [1, 1]} : vector<8x128xf32> to vector<8x32xf32>
    %515 = vector.extract_strided_slice %510 {offsets = [0, 96], sizes = [8, 32], strides = [1, 1]} : vector<8x128xf32> to vector<8x32xf32>
    %c0_268 = arith.constant 0 : index
    %c0_269 = arith.constant 0 : index
    %516 = vector.load %arg12[%c0_268, %c0_269] : memref<8x32xf32, #tpu.memory_space<vmem>>, vector<8x32xf32>
    %517 = arith.mulf %513, %516 : vector<8x32xf32>
    %518 = arith.mulf %512, %514 : vector<8x32xf32>
    %519 = arith.addf %517, %518 : vector<8x32xf32>
    %520 = math.tanh %519 : vector<8x32xf32>
    %521 = arith.mulf %515, %520 : vector<8x32xf32>
    %c0_270 = arith.constant 0 : index
    %c0_271 = arith.constant 0 : index
    %522 = vector.load %arg12[%c0_270, %c0_271] : memref<8x32xf32, #tpu.memory_space<vmem>>, vector<8x32xf32>
    tpu.vector_store %arg12[%c0_270, %c0_271], %519 {strides = array<i32>} : memref<8x32xf32, #tpu.memory_space<vmem>>, vector<8x32xf32>,
    %c0_272 = arith.constant 0 : index
    %c0_273 = arith.constant 0 : index
    %523 = vector.load %arg11[%c0_272, %c0_273] : memref<8x32xf32, #tpu.memory_space<vmem>>, vector<8x32xf32>
    tpu.vector_store %arg11[%c0_272, %c0_273], %521 {strides = array<i32>} : memref<8x32xf32, #tpu.memory_space<vmem>>, vector<8x32xf32>,
    %524 = arith.index_cast %c0_i32_261 : i32 to index
    %c0_274 = arith.constant 0 : index
    %c0_275 = arith.constant 0 : index
    %525 = vector.load %arg10[%524, %c0_274, %c0_275] : memref<8x8x32xf32, #tpu.memory_space<vmem>>, vector<1x8x32xf32>
    %526 = vector.shape_cast %525 : vector<1x8x32xf32> to vector<8x32xf32>
    %527 = vector.shape_cast %521 : vector<8x32xf32> to vector<1x8x32xf32>
    tpu.vector_store %arg10[%524, %c0_274, %c0_275], %527 {strides = array<i32>} : memref<8x8x32xf32, #tpu.memory_space<vmem>>, vector<1x8x32xf32>,
    %c1_i32_276 = arith.constant 1 : i32
    %528 = arith.index_cast %c1_i32_276 : i32 to index
    %c0_277 = arith.constant 0 : index
    %c0_278 = arith.constant 0 : index
    %529 = vector.load %arg10[%528, %c0_277, %c0_278] : memref<8x8x32xf32, #tpu.memory_space<vmem>>, vector<1x8x32xf32>
    %530 = vector.shape_cast %529 : vector<1x8x32xf32> to vector<8x32xf32>
    %c0_279 = arith.constant 0 : index
    %c0_280 = arith.constant 0 : index
    %531 = vector.load %arg11[%c0_279, %c0_280] : memref<8x32xf32, #tpu.memory_space<vmem>>, vector<8x32xf32>
    %532 = tpu.concatenate %530, %531 in 1 : vector<8x32xf32>, vector<8x32xf32> -> vector<8x64xf32>
    %cst_281 = arith.constant dense<0.000000e+00> : vector<8x128xf32>
    %533 = tpu.matmul %532, %496, %cst_281 {dimension_numbers = #tpu.dot_dimension_numbers<[1], [0], [0], [1], [0, 0, 1, 1], [], []>} : vector<8x64xf32>, vector<64x128xf32>, vector<8x128xf32> -> vector<8x128xf32>
    %534 = vector.broadcast %497 : vector<1x128xf32> to vector<8x128xf32>
    %535 = arith.addf %533, %534 : vector<8x128xf32>
    %536 = arith.negf %535 : vector<8x128xf32>
    %537 = math.exp %536 : vector<8x128xf32>
    %cst_282 = arith.constant 1.000000e+00 : f32
    %538 = vector.broadcast %cst_282 : f32 to vector<8x128xf32>
    %539 = arith.addf %538, %537 : vector<8x128xf32>
    %540 = arith.divf %538, %539 : vector<8x128xf32>
    %541 = math.tanh %535 : vector<8x128xf32>
    %542 = vector.extract_strided_slice %540 {offsets = [0, 0], sizes = [8, 32], strides = [1, 1]} : vector<8x128xf32> to vector<8x32xf32>
    %543 = vector.extract_strided_slice %540 {offsets = [0, 32], sizes = [8, 32], strides = [1, 1]} : vector<8x128xf32> to vector<8x32xf32>
    %544 = vector.extract_strided_slice %541 {offsets = [0, 64], sizes = [8, 32], strides = [1, 1]} : vector<8x128xf32> to vector<8x32xf32>
    %545 = vector.extract_strided_slice %540 {offsets = [0, 96], sizes = [8, 32], strides = [1, 1]} : vector<8x128xf32> to vector<8x32xf32>
    %c0_283 = arith.constant 0 : index
    %c0_284 = arith.constant 0 : index
    %546 = vector.load %arg12[%c0_283, %c0_284] : memref<8x32xf32, #tpu.memory_space<vmem>>, vector<8x32xf32>
    %547 = arith.mulf %543, %546 : vector<8x32xf32>
    %548 = arith.mulf %542, %544 : vector<8x32xf32>
    %549 = arith.addf %547, %548 : vector<8x32xf32>
    %550 = math.tanh %549 : vector<8x32xf32>
    %551 = arith.mulf %545, %550 : vector<8x32xf32>
    %c0_285 = arith.constant 0 : index
    %c0_286 = arith.constant 0 : index
    %552 = vector.load %arg12[%c0_285, %c0_286] : memref<8x32xf32, #tpu.memory_space<vmem>>, vector<8x32xf32>
    tpu.vector_store %arg12[%c0_285, %c0_286], %549 {strides = array<i32>} : memref<8x32xf32, #tpu.memory_space<vmem>>, vector<8x32xf32>,
    %c0_287 = arith.constant 0 : index
    %c0_288 = arith.constant 0 : index
    %553 = vector.load %arg11[%c0_287, %c0_288] : memref<8x32xf32, #tpu.memory_space<vmem>>, vector<8x32xf32>
    tpu.vector_store %arg11[%c0_287, %c0_288], %551 {strides = array<i32>} : memref<8x32xf32, #tpu.memory_space<vmem>>, vector<8x32xf32>,
    %554 = arith.index_cast %c1_i32_276 : i32 to index
    %c0_289 = arith.constant 0 : index
    %c0_290 = arith.constant 0 : index
    %555 = vector.load %arg10[%554, %c0_289, %c0_290] : memref<8x8x32xf32, #tpu.memory_space<vmem>>, vector<1x8x32xf32>
    %556 = vector.shape_cast %555 : vector<1x8x32xf32> to vector<8x32xf32>
    %557 = vector.shape_cast %551 : vector<8x32xf32> to vector<1x8x32xf32>
    tpu.vector_store %arg10[%554, %c0_289, %c0_290], %557 {strides = array<i32>} : memref<8x8x32xf32, #tpu.memory_space<vmem>>, vector<1x8x32xf32>,
    %c2_i32_291 = arith.constant 2 : i32
    %558 = arith.index_cast %c2_i32_291 : i32 to index
    %c0_292 = arith.constant 0 : index
    %c0_293 = arith.constant 0 : index
    %559 = vector.load %arg10[%558, %c0_292, %c0_293] : memref<8x8x32xf32, #tpu.memory_space<vmem>>, vector<1x8x32xf32>
    %560 = vector.shape_cast %559 : vector<1x8x32xf32> to vector<8x32xf32>
    %c0_294 = arith.constant 0 : index
    %c0_295 = arith.constant 0 : index
    %561 = vector.load %arg11[%c0_294, %c0_295] : memref<8x32xf32, #tpu.memory_space<vmem>>, vector<8x32xf32>
    %562 = tpu.concatenate %560, %561 in 1 : vector<8x32xf32>, vector<8x32xf32> -> vector<8x64xf32>
    %cst_296 = arith.constant dense<0.000000e+00> : vector<8x128xf32>
    %563 = tpu.matmul %562, %496, %cst_296 {dimension_numbers = #tpu.dot_dimension_numbers<[1], [0], [0], [1], [0, 0, 1, 1], [], []>} : vector<8x64xf32>, vector<64x128xf32>, vector<8x128xf32> -> vector<8x128xf32>
    %564 = vector.broadcast %497 : vector<1x128xf32> to vector<8x128xf32>
    %565 = arith.addf %563, %564 : vector<8x128xf32>
    %566 = arith.negf %565 : vector<8x128xf32>
    %567 = math.exp %566 : vector<8x128xf32>
    %cst_297 = arith.constant 1.000000e+00 : f32
    %568 = vector.broadcast %cst_297 : f32 to vector<8x128xf32>
    %569 = arith.addf %568, %567 : vector<8x128xf32>
    %570 = arith.divf %568, %569 : vector<8x128xf32>
    %571 = math.tanh %565 : vector<8x128xf32>
    %572 = vector.extract_strided_slice %570 {offsets = [0, 0], sizes = [8, 32], strides = [1, 1]} : vector<8x128xf32> to vector<8x32xf32>
    %573 = vector.extract_strided_slice %570 {offsets = [0, 32], sizes = [8, 32], strides = [1, 1]} : vector<8x128xf32> to vector<8x32xf32>
    %574 = vector.extract_strided_slice %571 {offsets = [0, 64], sizes = [8, 32], strides = [1, 1]} : vector<8x128xf32> to vector<8x32xf32>
    %575 = vector.extract_strided_slice %570 {offsets = [0, 96], sizes = [8, 32], strides = [1, 1]} : vector<8x128xf32> to vector<8x32xf32>
    %c0_298 = arith.constant 0 : index
    %c0_299 = arith.constant 0 : index
    %576 = vector.load %arg12[%c0_298, %c0_299] : memref<8x32xf32, #tpu.memory_space<vmem>>, vector<8x32xf32>
    %577 = arith.mulf %573, %576 : vector<8x32xf32>
    %578 = arith.mulf %572, %574 : vector<8x32xf32>
    %579 = arith.addf %577, %578 : vector<8x32xf32>
    %580 = math.tanh %579 : vector<8x32xf32>
    %581 = arith.mulf %575, %580 : vector<8x32xf32>
    %c0_300 = arith.constant 0 : index
    %c0_301 = arith.constant 0 : index
    %582 = vector.load %arg12[%c0_300, %c0_301] : memref<8x32xf32, #tpu.memory_space<vmem>>, vector<8x32xf32>
    tpu.vector_store %arg12[%c0_300, %c0_301], %579 {strides = array<i32>} : memref<8x32xf32, #tpu.memory_space<vmem>>, vector<8x32xf32>,
    %c0_302 = arith.constant 0 : index
    %c0_303 = arith.constant 0 : index
    %583 = vector.load %arg11[%c0_302, %c0_303] : memref<8x32xf32, #tpu.memory_space<vmem>>, vector<8x32xf32>
    tpu.vector_store %arg11[%c0_302, %c0_303], %581 {strides = array<i32>} : memref<8x32xf32, #tpu.memory_space<vmem>>, vector<8x32xf32>,
    %584 = arith.index_cast %c2_i32_291 : i32 to index
    %c0_304 = arith.constant 0 : index
    %c0_305 = arith.constant 0 : index
    %585 = vector.load %arg10[%584, %c0_304, %c0_305] : memref<8x8x32xf32, #tpu.memory_space<vmem>>, vector<1x8x32xf32>
    %586 = vector.shape_cast %585 : vector<1x8x32xf32> to vector<8x32xf32>
    %587 = vector.shape_cast %581 : vector<8x32xf32> to vector<1x8x32xf32>
    tpu.vector_store %arg10[%584, %c0_304, %c0_305], %587 {strides = array<i32>} : memref<8x8x32xf32, #tpu.memory_space<vmem>>, vector<1x8x32xf32>,
    %c3_i32_306 = arith.constant 3 : i32
    %588 = arith.index_cast %c3_i32_306 : i32 to index
    %c0_307 = arith.constant 0 : index
    %c0_308 = arith.constant 0 : index
    %589 = vector.load %arg10[%588, %c0_307, %c0_308] : memref<8x8x32xf32, #tpu.memory_space<vmem>>, vector<1x8x32xf32>
    %590 = vector.shape_cast %589 : vector<1x8x32xf32> to vector<8x32xf32>
    %c0_309 = arith.constant 0 : index
    %c0_310 = arith.constant 0 : index
    %591 = vector.load %arg11[%c0_309, %c0_310] : memref<8x32xf32, #tpu.memory_space<vmem>>, vector<8x32xf32>
    %592 = tpu.concatenate %590, %591 in 1 : vector<8x32xf32>, vector<8x32xf32> -> vector<8x64xf32>
    %cst_311 = arith.constant dense<0.000000e+00> : vector<8x128xf32>
    %593 = tpu.matmul %592, %496, %cst_311 {dimension_numbers = #tpu.dot_dimension_numbers<[1], [0], [0], [1], [0, 0, 1, 1], [], []>} : vector<8x64xf32>, vector<64x128xf32>, vector<8x128xf32> -> vector<8x128xf32>
    %594 = vector.broadcast %497 : vector<1x128xf32> to vector<8x128xf32>
    %595 = arith.addf %593, %594 : vector<8x128xf32>
    %596 = arith.negf %595 : vector<8x128xf32>
    %597 = math.exp %596 : vector<8x128xf32>
    %cst_312 = arith.constant 1.000000e+00 : f32
    %598 = vector.broadcast %cst_312 : f32 to vector<8x128xf32>
    %599 = arith.addf %598, %597 : vector<8x128xf32>
    %600 = arith.divf %598, %599 : vector<8x128xf32>
    %601 = math.tanh %595 : vector<8x128xf32>
    %602 = vector.extract_strided_slice %600 {offsets = [0, 0], sizes = [8, 32], strides = [1, 1]} : vector<8x128xf32> to vector<8x32xf32>
    %603 = vector.extract_strided_slice %600 {offsets = [0, 32], sizes = [8, 32], strides = [1, 1]} : vector<8x128xf32> to vector<8x32xf32>
    %604 = vector.extract_strided_slice %601 {offsets = [0, 64], sizes = [8, 32], strides = [1, 1]} : vector<8x128xf32> to vector<8x32xf32>
    %605 = vector.extract_strided_slice %600 {offsets = [0, 96], sizes = [8, 32], strides = [1, 1]} : vector<8x128xf32> to vector<8x32xf32>
    %c0_313 = arith.constant 0 : index
    %c0_314 = arith.constant 0 : index
    %606 = vector.load %arg12[%c0_313, %c0_314] : memref<8x32xf32, #tpu.memory_space<vmem>>, vector<8x32xf32>
    %607 = arith.mulf %603, %606 : vector<8x32xf32>
    %608 = arith.mulf %602, %604 : vector<8x32xf32>
    %609 = arith.addf %607, %608 : vector<8x32xf32>
    %610 = math.tanh %609 : vector<8x32xf32>
    %611 = arith.mulf %605, %610 : vector<8x32xf32>
    %c0_315 = arith.constant 0 : index
    %c0_316 = arith.constant 0 : index
    %612 = vector.load %arg12[%c0_315, %c0_316] : memref<8x32xf32, #tpu.memory_space<vmem>>, vector<8x32xf32>
    tpu.vector_store %arg12[%c0_315, %c0_316], %609 {strides = array<i32>} : memref<8x32xf32, #tpu.memory_space<vmem>>, vector<8x32xf32>,
    %c0_317 = arith.constant 0 : index
    %c0_318 = arith.constant 0 : index
    %613 = vector.load %arg11[%c0_317, %c0_318] : memref<8x32xf32, #tpu.memory_space<vmem>>, vector<8x32xf32>
    tpu.vector_store %arg11[%c0_317, %c0_318], %611 {strides = array<i32>} : memref<8x32xf32, #tpu.memory_space<vmem>>, vector<8x32xf32>,
    %614 = arith.index_cast %c3_i32_306 : i32 to index
    %c0_319 = arith.constant 0 : index
    %c0_320 = arith.constant 0 : index
    %615 = vector.load %arg10[%614, %c0_319, %c0_320] : memref<8x8x32xf32, #tpu.memory_space<vmem>>, vector<1x8x32xf32>
    %616 = vector.shape_cast %615 : vector<1x8x32xf32> to vector<8x32xf32>
    %617 = vector.shape_cast %611 : vector<8x32xf32> to vector<1x8x32xf32>
    tpu.vector_store %arg10[%614, %c0_319, %c0_320], %617 {strides = array<i32>} : memref<8x8x32xf32, #tpu.memory_space<vmem>>, vector<1x8x32xf32>,
    %c4_i32_321 = arith.constant 4 : i32
    %618 = arith.index_cast %c4_i32_321 : i32 to index
    %c0_322 = arith.constant 0 : index
    %c0_323 = arith.constant 0 : index
    %619 = vector.load %arg10[%618, %c0_322, %c0_323] : memref<8x8x32xf32, #tpu.memory_space<vmem>>, vector<1x8x32xf32>
    %620 = vector.shape_cast %619 : vector<1x8x32xf32> to vector<8x32xf32>
    %c0_324 = arith.constant 0 : index
    %c0_325 = arith.constant 0 : index
    %621 = vector.load %arg11[%c0_324, %c0_325] : memref<8x32xf32, #tpu.memory_space<vmem>>, vector<8x32xf32>
    %622 = tpu.concatenate %620, %621 in 1 : vector<8x32xf32>, vector<8x32xf32> -> vector<8x64xf32>
    %cst_326 = arith.constant dense<0.000000e+00> : vector<8x128xf32>
    %623 = tpu.matmul %622, %496, %cst_326 {dimension_numbers = #tpu.dot_dimension_numbers<[1], [0], [0], [1], [0, 0, 1, 1], [], []>} : vector<8x64xf32>, vector<64x128xf32>, vector<8x128xf32> -> vector<8x128xf32>
    %624 = vector.broadcast %497 : vector<1x128xf32> to vector<8x128xf32>
    %625 = arith.addf %623, %624 : vector<8x128xf32>
    %626 = arith.negf %625 : vector<8x128xf32>
    %627 = math.exp %626 : vector<8x128xf32>
    %cst_327 = arith.constant 1.000000e+00 : f32
    %628 = vector.broadcast %cst_327 : f32 to vector<8x128xf32>
    %629 = arith.addf %628, %627 : vector<8x128xf32>
    %630 = arith.divf %628, %629 : vector<8x128xf32>
    %631 = math.tanh %625 : vector<8x128xf32>
    %632 = vector.extract_strided_slice %630 {offsets = [0, 0], sizes = [8, 32], strides = [1, 1]} : vector<8x128xf32> to vector<8x32xf32>
    %633 = vector.extract_strided_slice %630 {offsets = [0, 32], sizes = [8, 32], strides = [1, 1]} : vector<8x128xf32> to vector<8x32xf32>
    %634 = vector.extract_strided_slice %631 {offsets = [0, 64], sizes = [8, 32], strides = [1, 1]} : vector<8x128xf32> to vector<8x32xf32>
    %635 = vector.extract_strided_slice %630 {offsets = [0, 96], sizes = [8, 32], strides = [1, 1]} : vector<8x128xf32> to vector<8x32xf32>
    %c0_328 = arith.constant 0 : index
    %c0_329 = arith.constant 0 : index
    %636 = vector.load %arg12[%c0_328, %c0_329] : memref<8x32xf32, #tpu.memory_space<vmem>>, vector<8x32xf32>
    %637 = arith.mulf %633, %636 : vector<8x32xf32>
    %638 = arith.mulf %632, %634 : vector<8x32xf32>
    %639 = arith.addf %637, %638 : vector<8x32xf32>
    %640 = math.tanh %639 : vector<8x32xf32>
    %641 = arith.mulf %635, %640 : vector<8x32xf32>
    %c0_330 = arith.constant 0 : index
    %c0_331 = arith.constant 0 : index
    %642 = vector.load %arg12[%c0_330, %c0_331] : memref<8x32xf32, #tpu.memory_space<vmem>>, vector<8x32xf32>
    tpu.vector_store %arg12[%c0_330, %c0_331], %639 {strides = array<i32>} : memref<8x32xf32, #tpu.memory_space<vmem>>, vector<8x32xf32>,
    %c0_332 = arith.constant 0 : index
    %c0_333 = arith.constant 0 : index
    %643 = vector.load %arg11[%c0_332, %c0_333] : memref<8x32xf32, #tpu.memory_space<vmem>>, vector<8x32xf32>
    tpu.vector_store %arg11[%c0_332, %c0_333], %641 {strides = array<i32>} : memref<8x32xf32, #tpu.memory_space<vmem>>, vector<8x32xf32>,
    %644 = arith.index_cast %c4_i32_321 : i32 to index
    %c0_334 = arith.constant 0 : index
    %c0_335 = arith.constant 0 : index
    %645 = vector.load %arg10[%644, %c0_334, %c0_335] : memref<8x8x32xf32, #tpu.memory_space<vmem>>, vector<1x8x32xf32>
    %646 = vector.shape_cast %645 : vector<1x8x32xf32> to vector<8x32xf32>
    %647 = vector.shape_cast %641 : vector<8x32xf32> to vector<1x8x32xf32>
    tpu.vector_store %arg10[%644, %c0_334, %c0_335], %647 {strides = array<i32>} : memref<8x8x32xf32, #tpu.memory_space<vmem>>, vector<1x8x32xf32>,
    %c5_i32_336 = arith.constant 5 : i32
    %648 = arith.index_cast %c5_i32_336 : i32 to index
    %c0_337 = arith.constant 0 : index
    %c0_338 = arith.constant 0 : index
    %649 = vector.load %arg10[%648, %c0_337, %c0_338] : memref<8x8x32xf32, #tpu.memory_space<vmem>>, vector<1x8x32xf32>
    %650 = vector.shape_cast %649 : vector<1x8x32xf32> to vector<8x32xf32>
    %c0_339 = arith.constant 0 : index
    %c0_340 = arith.constant 0 : index
    %651 = vector.load %arg11[%c0_339, %c0_340] : memref<8x32xf32, #tpu.memory_space<vmem>>, vector<8x32xf32>
    %652 = tpu.concatenate %650, %651 in 1 : vector<8x32xf32>, vector<8x32xf32> -> vector<8x64xf32>
    %cst_341 = arith.constant dense<0.000000e+00> : vector<8x128xf32>
    %653 = tpu.matmul %652, %496, %cst_341 {dimension_numbers = #tpu.dot_dimension_numbers<[1], [0], [0], [1], [0, 0, 1, 1], [], []>} : vector<8x64xf32>, vector<64x128xf32>, vector<8x128xf32> -> vector<8x128xf32>
    %654 = vector.broadcast %497 : vector<1x128xf32> to vector<8x128xf32>
    %655 = arith.addf %653, %654 : vector<8x128xf32>
    %656 = arith.negf %655 : vector<8x128xf32>
    %657 = math.exp %656 : vector<8x128xf32>
    %cst_342 = arith.constant 1.000000e+00 : f32
    %658 = vector.broadcast %cst_342 : f32 to vector<8x128xf32>
    %659 = arith.addf %658, %657 : vector<8x128xf32>
    %660 = arith.divf %658, %659 : vector<8x128xf32>
    %661 = math.tanh %655 : vector<8x128xf32>
    %662 = vector.extract_strided_slice %660 {offsets = [0, 0], sizes = [8, 32], strides = [1, 1]} : vector<8x128xf32> to vector<8x32xf32>
    %663 = vector.extract_strided_slice %660 {offsets = [0, 32], sizes = [8, 32], strides = [1, 1]} : vector<8x128xf32> to vector<8x32xf32>
    %664 = vector.extract_strided_slice %661 {offsets = [0, 64], sizes = [8, 32], strides = [1, 1]} : vector<8x128xf32> to vector<8x32xf32>
    %665 = vector.extract_strided_slice %660 {offsets = [0, 96], sizes = [8, 32], strides = [1, 1]} : vector<8x128xf32> to vector<8x32xf32>
    %c0_343 = arith.constant 0 : index
    %c0_344 = arith.constant 0 : index
    %666 = vector.load %arg12[%c0_343, %c0_344] : memref<8x32xf32, #tpu.memory_space<vmem>>, vector<8x32xf32>
    %667 = arith.mulf %663, %666 : vector<8x32xf32>
    %668 = arith.mulf %662, %664 : vector<8x32xf32>
    %669 = arith.addf %667, %668 : vector<8x32xf32>
    %670 = math.tanh %669 : vector<8x32xf32>
    %671 = arith.mulf %665, %670 : vector<8x32xf32>
    %c0_345 = arith.constant 0 : index
    %c0_346 = arith.constant 0 : index
    %672 = vector.load %arg12[%c0_345, %c0_346] : memref<8x32xf32, #tpu.memory_space<vmem>>, vector<8x32xf32>
    tpu.vector_store %arg12[%c0_345, %c0_346], %669 {strides = array<i32>} : memref<8x32xf32, #tpu.memory_space<vmem>>, vector<8x32xf32>,
    %c0_347 = arith.constant 0 : index
    %c0_348 = arith.constant 0 : index
    %673 = vector.load %arg11[%c0_347, %c0_348] : memref<8x32xf32, #tpu.memory_space<vmem>>, vector<8x32xf32>
    tpu.vector_store %arg11[%c0_347, %c0_348], %671 {strides = array<i32>} : memref<8x32xf32, #tpu.memory_space<vmem>>, vector<8x32xf32>,
    %674 = arith.index_cast %c5_i32_336 : i32 to index
    %c0_349 = arith.constant 0 : index
    %c0_350 = arith.constant 0 : index
    %675 = vector.load %arg10[%674, %c0_349, %c0_350] : memref<8x8x32xf32, #tpu.memory_space<vmem>>, vector<1x8x32xf32>
    %676 = vector.shape_cast %675 : vector<1x8x32xf32> to vector<8x32xf32>
    %677 = vector.shape_cast %671 : vector<8x32xf32> to vector<1x8x32xf32>
    tpu.vector_store %arg10[%674, %c0_349, %c0_350], %677 {strides = array<i32>} : memref<8x8x32xf32, #tpu.memory_space<vmem>>, vector<1x8x32xf32>,
    %c6_i32_351 = arith.constant 6 : i32
    %678 = arith.index_cast %c6_i32_351 : i32 to index
    %c0_352 = arith.constant 0 : index
    %c0_353 = arith.constant 0 : index
    %679 = vector.load %arg10[%678, %c0_352, %c0_353] : memref<8x8x32xf32, #tpu.memory_space<vmem>>, vector<1x8x32xf32>
    %680 = vector.shape_cast %679 : vector<1x8x32xf32> to vector<8x32xf32>
    %c0_354 = arith.constant 0 : index
    %c0_355 = arith.constant 0 : index
    %681 = vector.load %arg11[%c0_354, %c0_355] : memref<8x32xf32, #tpu.memory_space<vmem>>, vector<8x32xf32>
    %682 = tpu.concatenate %680, %681 in 1 : vector<8x32xf32>, vector<8x32xf32> -> vector<8x64xf32>
    %cst_356 = arith.constant dense<0.000000e+00> : vector<8x128xf32>
    %683 = tpu.matmul %682, %496, %cst_356 {dimension_numbers = #tpu.dot_dimension_numbers<[1], [0], [0], [1], [0, 0, 1, 1], [], []>} : vector<8x64xf32>, vector<64x128xf32>, vector<8x128xf32> -> vector<8x128xf32>
    %684 = vector.broadcast %497 : vector<1x128xf32> to vector<8x128xf32>
    %685 = arith.addf %683, %684 : vector<8x128xf32>
    %686 = arith.negf %685 : vector<8x128xf32>
    %687 = math.exp %686 : vector<8x128xf32>
    %cst_357 = arith.constant 1.000000e+00 : f32
    %688 = vector.broadcast %cst_357 : f32 to vector<8x128xf32>
    %689 = arith.addf %688, %687 : vector<8x128xf32>
    %690 = arith.divf %688, %689 : vector<8x128xf32>
    %691 = math.tanh %685 : vector<8x128xf32>
    %692 = vector.extract_strided_slice %690 {offsets = [0, 0], sizes = [8, 32], strides = [1, 1]} : vector<8x128xf32> to vector<8x32xf32>
    %693 = vector.extract_strided_slice %690 {offsets = [0, 32], sizes = [8, 32], strides = [1, 1]} : vector<8x128xf32> to vector<8x32xf32>
    %694 = vector.extract_strided_slice %691 {offsets = [0, 64], sizes = [8, 32], strides = [1, 1]} : vector<8x128xf32> to vector<8x32xf32>
    %695 = vector.extract_strided_slice %690 {offsets = [0, 96], sizes = [8, 32], strides = [1, 1]} : vector<8x128xf32> to vector<8x32xf32>
    %c0_358 = arith.constant 0 : index
    %c0_359 = arith.constant 0 : index
    %696 = vector.load %arg12[%c0_358, %c0_359] : memref<8x32xf32, #tpu.memory_space<vmem>>, vector<8x32xf32>
    %697 = arith.mulf %693, %696 : vector<8x32xf32>
    %698 = arith.mulf %692, %694 : vector<8x32xf32>
    %699 = arith.addf %697, %698 : vector<8x32xf32>
    %700 = math.tanh %699 : vector<8x32xf32>
    %701 = arith.mulf %695, %700 : vector<8x32xf32>
    %c0_360 = arith.constant 0 : index
    %c0_361 = arith.constant 0 : index
    %702 = vector.load %arg12[%c0_360, %c0_361] : memref<8x32xf32, #tpu.memory_space<vmem>>, vector<8x32xf32>
    tpu.vector_store %arg12[%c0_360, %c0_361], %699 {strides = array<i32>} : memref<8x32xf32, #tpu.memory_space<vmem>>, vector<8x32xf32>,
    %c0_362 = arith.constant 0 : index
    %c0_363 = arith.constant 0 : index
    %703 = vector.load %arg11[%c0_362, %c0_363] : memref<8x32xf32, #tpu.memory_space<vmem>>, vector<8x32xf32>
    tpu.vector_store %arg11[%c0_362, %c0_363], %701 {strides = array<i32>} : memref<8x32xf32, #tpu.memory_space<vmem>>, vector<8x32xf32>,
    %704 = arith.index_cast %c6_i32_351 : i32 to index
    %c0_364 = arith.constant 0 : index
    %c0_365 = arith.constant 0 : index
    %705 = vector.load %arg10[%704, %c0_364, %c0_365] : memref<8x8x32xf32, #tpu.memory_space<vmem>>, vector<1x8x32xf32>
    %706 = vector.shape_cast %705 : vector<1x8x32xf32> to vector<8x32xf32>
    %707 = vector.shape_cast %701 : vector<8x32xf32> to vector<1x8x32xf32>
    tpu.vector_store %arg10[%704, %c0_364, %c0_365], %707 {strides = array<i32>} : memref<8x8x32xf32, #tpu.memory_space<vmem>>, vector<1x8x32xf32>,
    %c7_i32_366 = arith.constant 7 : i32
    %708 = arith.index_cast %c7_i32_366 : i32 to index
    %c0_367 = arith.constant 0 : index
    %c0_368 = arith.constant 0 : index
    %709 = vector.load %arg10[%708, %c0_367, %c0_368] : memref<8x8x32xf32, #tpu.memory_space<vmem>>, vector<1x8x32xf32>
    %710 = vector.shape_cast %709 : vector<1x8x32xf32> to vector<8x32xf32>
    %c0_369 = arith.constant 0 : index
    %c0_370 = arith.constant 0 : index
    %711 = vector.load %arg11[%c0_369, %c0_370] : memref<8x32xf32, #tpu.memory_space<vmem>>, vector<8x32xf32>
    %712 = tpu.concatenate %710, %711 in 1 : vector<8x32xf32>, vector<8x32xf32> -> vector<8x64xf32>
    %cst_371 = arith.constant dense<0.000000e+00> : vector<8x128xf32>
    %713 = tpu.matmul %712, %496, %cst_371 {dimension_numbers = #tpu.dot_dimension_numbers<[1], [0], [0], [1], [0, 0, 1, 1], [], []>} : vector<8x64xf32>, vector<64x128xf32>, vector<8x128xf32> -> vector<8x128xf32>
    %714 = vector.broadcast %497 : vector<1x128xf32> to vector<8x128xf32>
    %715 = arith.addf %713, %714 : vector<8x128xf32>
    %716 = arith.negf %715 : vector<8x128xf32>
    %717 = math.exp %716 : vector<8x128xf32>
    %cst_372 = arith.constant 1.000000e+00 : f32
    %718 = vector.broadcast %cst_372 : f32 to vector<8x128xf32>
    %719 = arith.addf %718, %717 : vector<8x128xf32>
    %720 = arith.divf %718, %719 : vector<8x128xf32>
    %721 = math.tanh %715 : vector<8x128xf32>
    %722 = vector.extract_strided_slice %720 {offsets = [0, 0], sizes = [8, 32], strides = [1, 1]} : vector<8x128xf32> to vector<8x32xf32>
    %723 = vector.extract_strided_slice %720 {offsets = [0, 32], sizes = [8, 32], strides = [1, 1]} : vector<8x128xf32> to vector<8x32xf32>
    %724 = vector.extract_strided_slice %721 {offsets = [0, 64], sizes = [8, 32], strides = [1, 1]} : vector<8x128xf32> to vector<8x32xf32>
    %725 = vector.extract_strided_slice %720 {offsets = [0, 96], sizes = [8, 32], strides = [1, 1]} : vector<8x128xf32> to vector<8x32xf32>
    %c0_373 = arith.constant 0 : index
    %c0_374 = arith.constant 0 : index
    %726 = vector.load %arg12[%c0_373, %c0_374] : memref<8x32xf32, #tpu.memory_space<vmem>>, vector<8x32xf32>
    %727 = arith.mulf %723, %726 : vector<8x32xf32>
    %728 = arith.mulf %722, %724 : vector<8x32xf32>
    %729 = arith.addf %727, %728 : vector<8x32xf32>
    %730 = math.tanh %729 : vector<8x32xf32>
    %731 = arith.mulf %725, %730 : vector<8x32xf32>
    %c0_375 = arith.constant 0 : index
    %c0_376 = arith.constant 0 : index
    %732 = vector.load %arg12[%c0_375, %c0_376] : memref<8x32xf32, #tpu.memory_space<vmem>>, vector<8x32xf32>
    tpu.vector_store %arg12[%c0_375, %c0_376], %729 {strides = array<i32>} : memref<8x32xf32, #tpu.memory_space<vmem>>, vector<8x32xf32>,
    %c0_377 = arith.constant 0 : index
    %c0_378 = arith.constant 0 : index
    %733 = vector.load %arg11[%c0_377, %c0_378] : memref<8x32xf32, #tpu.memory_space<vmem>>, vector<8x32xf32>
    tpu.vector_store %arg11[%c0_377, %c0_378], %731 {strides = array<i32>} : memref<8x32xf32, #tpu.memory_space<vmem>>, vector<8x32xf32>,
    %734 = arith.index_cast %c7_i32_366 : i32 to index
    %c0_379 = arith.constant 0 : index
    %c0_380 = arith.constant 0 : index
    %735 = vector.load %arg10[%734, %c0_379, %c0_380] : memref<8x8x32xf32, #tpu.memory_space<vmem>>, vector<1x8x32xf32>
    %736 = vector.shape_cast %735 : vector<1x8x32xf32> to vector<8x32xf32>
    %737 = vector.shape_cast %731 : vector<8x32xf32> to vector<1x8x32xf32>
    tpu.vector_store %arg10[%734, %c0_379, %c0_380], %737 {strides = array<i32>} : memref<8x8x32xf32, #tpu.memory_space<vmem>>, vector<1x8x32xf32>,
    %c8_i32_381 = arith.constant 8 : i32
    %c0_382 = arith.constant 0 : index
    %c0_383 = arith.constant 0 : index
    %738 = vector.load %arg11[%c0_382, %c0_383] : memref<8x32xf32, #tpu.memory_space<vmem>>, vector<8x32xf32>
    %c0_384 = arith.constant 0 : index
    %c0_385 = arith.constant 0 : index
    %739 = vector.load %arg7[%c0_384, %c0_385] : memref<32x1xf32, #tpu.memory_space<vmem>>, vector<32x1xf32>
    %cst_386 = arith.constant dense<0.000000e+00> : vector<8x1xf32>
    %740 = tpu.matmul %738, %739, %cst_386 {dimension_numbers = #tpu.dot_dimension_numbers<[1], [0], [0], [1], [0, 0, 1, 1], [], []>} : vector<8x32xf32>, vector<32x1xf32>, vector<8x1xf32> -> vector<8x1xf32>
    %c0_387 = arith.constant 0 : index
    %c0_388 = arith.constant 0 : index
    %741 = vector.load %arg8[%c0_387, %c0_388] : memref<1x1xf32, #tpu.memory_space<vmem>>, vector<1x1xf32>
    %742 = vector.broadcast %741 : vector<1x1xf32> to vector<8x1xf32>
    %743 = arith.addf %740, %742 : vector<8x1xf32>
    %744 = arith.negf %743 : vector<8x1xf32>
    %745 = math.exp %744 : vector<8x1xf32>
    %cst_389 = arith.constant 1.000000e+00 : f32
    %746 = vector.broadcast %cst_389 : f32 to vector<8x1xf32>
    %747 = arith.addf %746, %745 : vector<8x1xf32>
    %748 = arith.divf %746, %747 : vector<8x1xf32>
    %c0_390 = arith.constant 0 : index
    %c0_391 = arith.constant 0 : index
    %749 = vector.load %arg9[%c0_390, %c0_391] : memref<8x1xf32, #tpu.memory_space<vmem>>, vector<8x1xf32>
    tpu.vector_store %arg9[%c0_390, %c0_391], %748 {strides = array<i32>} : memref<8x1xf32, #tpu.memory_space<vmem>>, vector<8x1xf32>,
    return
  }
}

</mosaic_0001>

<llo_original>
// kernel: rnn_forward.1
$region0: #{rnn_forward.1}
  #allocation0 [shape = 'u32[]', space=smem, size = 0x4, offset = 0x4, fixed_abs, tag = 'smem constant byte address 0x4 - core index']
  #allocation1 [shape = 'u32[144,128]{1,0:T(1,128)}', space=vmem, size = 0x12000, scoped, tag = 'internal scratch']
  #allocation2 [shape = 'f32[8,8,32]{2,1,0:T(8,128)}', space=vmem, size = 0x8000, scoped, tag = 'scratch operand']
  #allocation3 [shape = 'f32[8,32]{1,0:T(8,128)}', space=vmem, size = 0x1000, scoped, tag = 'scratch operand']
  #allocation4 [shape = 'f32[8,32]{1,0:T(8,128)}', space=vmem, size = 0x1000, scoped, tag = 'scratch operand']
  #allocation5 [shape = 'f32[1,1]{1,0:T(1,128)S(1)}', space=vmem, size = 0x200, scoped, tag = 'scoped memory for rnn_forward.1']
  %s0 = inlined_call_operand.vmem [shape: f32[8,8,32], index: 0, kind: input, shape index: {}]
  %s1 = inlined_call_operand.hbm [shape: f32[64,128], index: 1, kind: input, shape index: {}]
  %s2 = inlined_call_operand.hbm [shape: f32[1,128], index: 2, kind: input, shape index: {}]
  %s3 = inlined_call_operand.vmem [shape: f32[64,128], index: 3, kind: input, shape index: {}]
  %s4 = inlined_call_operand.hbm [shape: f32[1,128], index: 4, kind: input, shape index: {}]
  %s5 = inlined_call_operand.vmem [shape: f32[64,128], index: 5, kind: input, shape index: {}]
  %s6 = inlined_call_operand.vmem [shape: f32[1,128], index: 6, kind: input, shape index: {}]
  %s7 = inlined_call_operand.hbm [shape: f32[32,1], index: 7, kind: input, shape index: {}]
  %s8 = inlined_call_operand.<no memory space> [shape: f32[1,1], index: 8, kind: input, shape index: {}]
  %s9 = inlined_call_operand.vmem [shape: f32[8,1], index: 9, kind: output, shape index: {}]
  %s10 = sld [smem:[#allocation0]]
  $region62: #{rnn_forward.1} parent=0
    _
  %s12 = ssub.s32 1, %s10
  %s13 = scalar_select 0, %s12, %s10
  %v14 = vstv %s8
  %15 = vst [vmem:[#allocation5] sm:$0x1] %v14
  $region1: #{rnn_forward.1} parent=0
    #allocation6 [shape = 'u8[32768]{0}', space=vmem, size = 0x8000, scoped, tag = 'input window, operand 1, single buffered']
    #allocation7 [shape = 's32[1]{0}', space=sflag, size = 0x4, scoped, tag = 'scoped memory for rnn_forward.1']
    #allocation8 [shape = 'u8[512]{0}', space=vmem, size = 0x400, scoped, tag = 'input window, operand 2, single buffered']
    #allocation9 [shape = 's32[1]{0}', space=sflag, size = 0x4, scoped, tag = 'scoped memory for rnn_forward.1']
    #allocation10 [shape = 'u8[512]{0}', space=vmem, size = 0x400, scoped, tag = 'input window, operand 4, single buffered']
    #allocation11 [shape = 'u8[16384]{0}', space=vmem, size = 0x4000, scoped, tag = 'input window, operand 7, single buffered']
    #allocation12 [shape = 's32[1]{0}', space=sflag, size = 0x4, scoped, tag = 'scoped memory for rnn_forward.1']
    %16 = vsyncpa [#allocation7], 0
    %17 = vsyncpa [#allocation9], 0
    %18 = vsyncpa [#allocation12], 0
    // Predicated region
    $region2: #{rnn_forward.1} parent=1 // pred_check
      _
    $region3: #{rnn_forward.1} parent=1 // pred_check_branch
      %20 = sbr.rel (0) target = $region5
    $region4: #{rnn_forward.1} parent=1 // pred_region
      _
    $region5: #{rnn_forward.1} parent=1 // pred_fallthru
      _
    // Predicated region
    $region6: #{rnn_forward.1} parent=1 // pred_check
      _
    $region7: #{rnn_forward.1} parent=1 // pred_check_branch
      %22 = sbr.rel (0) target = $region9
    $region8: #{rnn_forward.1} parent=1 // pred_region
      %s24 = ssub.s32 1024, 1024
      %25 = vsyncadd [#allocation7], %s24
      %s26 = sshll.u32 [#allocation6], 4
      %s27 = int_to_ptr.vmem [resolvable:$true] %s26
      %32 = dma.hbm_to_vmem [thread:$0]  %s1, 1024, %s27, [#allocation7], 128, 128, 8
    $region9: #{rnn_forward.1} parent=1 // pred_fallthru
      _
    // Predicated region
    $region10: #{rnn_forward.1} parent=1 // pred_check
      _
    $region11: #{rnn_forward.1} parent=1 // pred_check_branch
      %34 = sbr.rel (0) target = $region13
    $region12: #{rnn_forward.1} parent=1 // pred_region
      %s36 = ssub.s32 16, 16
      %37 = vsyncadd [#allocation9], %s36
      %s39 = sshll.u32 [#allocation8], 4
      %s40 = int_to_ptr.vmem [resolvable:$true] %s39
      %42 = dma.hbm_to_vmem [thread:$0]  %s2, 16, %s40, [#allocation9]
    $region13: #{rnn_forward.1} parent=1 // pred_fallthru
      _
    // Predicated region
    $region14: #{rnn_forward.1} parent=1 // pred_check
      _
    $region15: #{rnn_forward.1} parent=1 // pred_check_branch
      %44 = sbr.rel (0) target = $region17
    $region16: #{rnn_forward.1} parent=1 // pred_region
      _
    $region17: #{rnn_forward.1} parent=1 // pred_fallthru
      _
    // Predicated region
    $region18: #{rnn_forward.1} parent=1 // pred_check
      _
    $region19: #{rnn_forward.1} parent=1 // pred_check_branch
      %46 = sbr.rel (0) target = $region21
    $region20: #{rnn_forward.1} parent=1 // pred_region
      %s48 = ssub.s32 16, 16
      %49 = vsyncadd [#allocation9], %s48
      %s51 = sshll.u32 [#allocation10], 4
      %s52 = int_to_ptr.vmem [resolvable:$true] %s51
      %54 = dma.hbm_to_vmem [thread:$0]  %s4, 16, %s52, [#allocation9]
    $region21: #{rnn_forward.1} parent=1 // pred_fallthru
      _
    // Predicated region
    $region22: #{rnn_forward.1} parent=1 // pred_check
      _
    $region23: #{rnn_forward.1} parent=1 // pred_check_branch
      %56 = sbr.rel (0) target = $region25
    $region24: #{rnn_forward.1} parent=1 // pred_region
      _
    $region25: #{rnn_forward.1} parent=1 // pred_fallthru
      _
    // Predicated region
    $region26: #{rnn_forward.1} parent=1 // pred_check
      _
    $region27: #{rnn_forward.1} parent=1 // pred_check_branch
      %58 = sbr.rel (0) target = $region29
    $region28: #{rnn_forward.1} parent=1 // pred_region
      _
    $region29: #{rnn_forward.1} parent=1 // pred_fallthru
      _
    // Predicated region
    $region30: #{rnn_forward.1} parent=1 // pred_check
      _
    $region31: #{rnn_forward.1} parent=1 // pred_check_branch
      %60 = sbr.rel (0) target = $region33
    $region32: #{rnn_forward.1} parent=1 // pred_region
      %s62 = ssub.s32 512, 512
      %63 = vsyncadd [#allocation12], %s62
      %s64 = sshll.u32 [#allocation11], 4
      %s65 = int_to_ptr.vmem [resolvable:$true] %s64
      %70 = dma.hbm_to_vmem [thread:$0]  %s7, 512, %s65, [#allocation12], 128, 128, 8
    $region33: #{rnn_forward.1} parent=1 // pred_fallthru
      _
    // Predicated region
    $region34: #{rnn_forward.1} parent=1 // pred_check
      _
    $region35: #{rnn_forward.1} parent=1 // pred_check_branch
      %72 = sbr.rel (0) target = $region37
    $region36: #{rnn_forward.1} parent=1 // pred_region
      _
    $region37: #{rnn_forward.1} parent=1 // pred_fallthru
      _
    // Predicated region
    $region38: #{rnn_forward.1} parent=1 // pred_check
      _
    $region39: #{rnn_forward.1} parent=1 // pred_check_branch
      %74 = sbr.rel (0) target = $region41
    $region40: #{rnn_forward.1} parent=1 // pred_region
      %75 = dma.done [#allocation7], 1024
    $region41: #{rnn_forward.1} parent=1 // pred_fallthru
      _
    // Predicated region
    $region42: #{rnn_forward.1} parent=1 // pred_check
      _
    $region43: #{rnn_forward.1} parent=1 // pred_check_branch
      %77 = sbr.rel (0) target = $region45
    $region44: #{rnn_forward.1} parent=1 // pred_region
      %78 = dma.done [#allocation9], 16
    $region45: #{rnn_forward.1} parent=1 // pred_fallthru
      _
    // Predicated region
    $region46: #{rnn_forward.1} parent=1 // pred_check
      _
    $region47: #{rnn_forward.1} parent=1 // pred_check_branch
      %80 = sbr.rel (0) target = $region49
    $region48: #{rnn_forward.1} parent=1 // pred_region
      %81 = dma.done [#allocation9], 16
    $region49: #{rnn_forward.1} parent=1 // pred_fallthru
      _
    // Predicated region
    $region50: #{rnn_forward.1} parent=1 // pred_check
      _
    $region51: #{rnn_forward.1} parent=1 // pred_check_branch
      %83 = sbr.rel (0) target = $region53
    $region52: #{rnn_forward.1} parent=1 // pred_region
      %84 = dma.done [#allocation12], 512
    $region53: #{rnn_forward.1} parent=1 // pred_fallthru
      _
    %vm85 = vcmask 261120
    %86 = vst.msk [vmem:[#allocation3] sm:$0xff] %vm85, 0.0
    %87 = vst.msk [vmem:[#allocation4] sm:$0xff] %vm85, 0.0
    %v88 = vld [vmem:[#allocation6] sm:$0xff]
    %v89 = vld [vmem:[#allocation6 + $0x8] sm:$0xff]
    %v90 = vld [vmem:[#allocation6 + $0x10] sm:$0xff]
    %v91 = vld [vmem:[#allocation6 + $0x18] sm:$0xff]
    %v92 = vld [vmem:[#allocation6 + $0x20] sm:$0xff]
    %v93 = vld [vmem:[#allocation6 + $0x28] sm:$0xff]
    %v94 = vld [vmem:[#allocation6 + $0x30] sm:$0xff]
    %v95 = vld [vmem:[#allocation6 + $0x38] sm:$0xff]
    %v96 = vld [vmem:[#allocation8] sm:$0x1]
    %v97 = vld [vmem:[%s0] sm:$0xff]
    %v98 = vld [vmem:[#allocation3] sm:$0xff]
    %100 = vrot.lane.b32.xlu0 %v98, 32
    %v101 = vpop.permute.xlu0 %100
    %v103 = vsel %vm85, %v97, %v101
    %v105 = vlaneseq
    %v106 = vshrl.u32 %v105, 7
    %v107 = vsub.s32 0, %v106
    %v108 = vrot.slane %v96, %v107
    %vm110 = vcmask 523264
    %v112 = vsel %vm110, %v103, 0
    %114 = vmatprep.subr.mxu0 0.0
    %115 = vmatpush1.msra.mxu0 %v88
    %116 = vmatprep.subr.mxu0 0.0
    %117 = vmatpush1.msra.mxu0 %v89
    %118 = vmatprep.subr.mxu0 0.0
    %119 = vmatpush1.msra.mxu0 %v90
    %120 = vmatprep.subr.mxu0 0.0
    %121 = vmatpush1.msra.mxu0 %v91
    %122 = vmatprep.subr.mxu0 0.0
    %123 = vmatpush1.msra.mxu0 %v92
    %124 = vmatprep.subr.mxu0 0.0
    %125 = vmatpush1.msra.mxu0 %v93
    %126 = vmatprep.subr.mxu0 0.0
    %127 = vmatpush1.msra.mxu0 %v94
    %128 = vmatprep.subr.mxu0 0.0
    %129 = vmatpush1.msra.mxu0 %v95
    %130 = vmatprep.subr.mxu0 0.0
    %131 = vmatpush1.msra.mxu0 0.0
    %132 = vmatprep.subr.mxu0 0.0
    %133 = vmatpush1.msra.mxu0 0.0
    %134 = vmatprep.subr.mxu0 0.0
    %135 = vmatpush1.msra.mxu0 0.0
    %136 = vmatprep.subr.mxu0 0.0
    %137 = vmatpush1.msra.mxu0 0.0
    %138 = vmatprep.subr.mxu0 0.0
    %139 = vmatpush1.msra.mxu0 0.0
    %140 = vmatprep.subr.mxu0 0.0
    %141 = vmatpush1.msra.mxu0 0.0
    %142 = vmatprep.subr.mxu0 0.0
    %143 = vmatpush1.msra.mxu0 0.0
    %144 = vmatprep.subr.mxu0 0.0
    %145 = vmatpush1.msra.mxu0 0.0
    %146 = vmatprep.subr.mxu0 0.0
    %147 = vmatpush1.msra.mxu0 0.0
    %148 = vmatprep.subr.mxu0 0.0
    %149 = vmatpush1.msra.mxu0 0.0
    %150 = vmatprep.subr.mxu0 0.0
    %151 = vmatpush1.msra.mxu0 0.0
    %152 = vmatprep.subr.mxu0 0.0
    %153 = vmatpush1.msra.mxu0 0.0
    %154 = vmatprep.subr.mxu0 0.0
    %155 = vmatpush1.msra.mxu0 0.0
    %156 = vmatprep.subr.mxu0 0.0
    %157 = vmatpush1.msra.mxu0 0.0
    %158 = vmatprep.subr.mxu0 0.0
    %159 = vmatpush1.msra.mxu0 0.0
    %160 = vmatprep.subr.mxu0 0.0
    %161 = vmatpush1.msra.mxu0 0.0
    %162 = vmatprep.subr.mxu0 0.0
    %163 = vmatpush1.msra.mxu0 0.0
    %164 = vmatprep.subr.mxu0 0.0
    %165 = vmatpush1.msra.mxu0 0.0
    %166 = vmatprep.subr.mxu0 0.0
    %167 = vmatpush1.msra.mxu0 0.0
    %168 = vmatprep.subr.mxu0 0.0
    %169 = vmatpush1.msra.mxu0 0.0
    %170 = vmatprep.subr.mxu0 0.0
    %171 = vmatpush1.msra.mxu0 0.0
    %172 = vmatprep.subr.mxu0 0.0
    %173 = vmatpush1.msra.mxu0 0.0
    %174 = vmatprep.subr.mxu0 0.0
    %175 = vmatpush1.msra.mxu0 0.0
    %176 = vmatprep.subr.mxu0 0.0
    %177 = vmatpush1.msra.mxu0 0.0
    %178 = vmatprep.mubr.f32.mxu0 0.0
    %179 = vmatmul.mubr.f32.gmra.mrb[0].mxu0 %v112
    %v180 = vpop.f32.mrb[0].mxu0
    %v181 = vadd.f32 %v108, %v180
    %v182 = vpop.f32.mrb[0].mxu0
    %183 = vdwg.mxu0
    %v184 = vxor.u32 %v181, 2147483648
    %v185 = vmul.f32 %v184, 1.442695
    %v186 = vpow.pop %v185
    %v187 = vadd.f32 %v186, 1.0
    %v188 = vrcp.pop %v187
    %v189 = vmul.f32 1.0, %v188
    %v190 = vtanh.pop %v181
    %v191 = vld [vmem:[#allocation4] sm:$0xff]
    %193 = vrot.lane.b32.xlu0 %v191, 32
    %v194 = vpop.permute.xlu0 %193
    %v196 = vmul.f32 %v189, %v194
    %198 = vrot.lane.b32.xlu0 %v190, 64
    %v199 = vpop.permute.xlu0 %198
    %v201 = vmul.f32 %v189, %v199
    %203 = vrot.lane.b32.xlu0 %v201, 32
    %v204 = vpop.permute.xlu0 %203
    %v206 = vadd.f32 %v196, %v204
    %v207 = vtanh.pop %v206
    %209 = vrot.lane.b32.xlu0 %v207, 64
    %v210 = vpop.permute.xlu0 %209
    %v212 = vmul.f32 %v189, %v210
    %214 = vrot.lane.b32.xlu0 %v206, 96
    %v215 = vpop.permute.xlu0 %214
    %217 = vst.msk [vmem:[#allocation4] sm:$0xff] %vm85, %v215
    %219 = vrot.lane.b32.xlu0 %v212, 32
    %v220 = vpop.permute.xlu0 %219
    %222 = vst.msk [vmem:[#allocation3] sm:$0xff] %vm85, %v220
    %223 = vst.msk [vmem:[#allocation2] sm:$0xff] %vm85, %v220
    %s224 = scalar_lea.vmem %s0, 8
    %v225 = vld [vmem:[%s224] sm:$0xff]
    %v226 = vld [vmem:[#allocation3] sm:$0xff]
    %228 = vrot.lane.b32.xlu0 %v226, 32
    %v229 = vpop.permute.xlu0 %228
    %v231 = vsel %vm85, %v225, %v229
    %v233 = vsel %vm110, %v231, 0
    %235 = vmatprep.subr.mxu0 0.0
    %236 = vmatpush1.msra.mxu0 %v88
    %237 = vmatprep.subr.mxu0 0.0
    %238 = vmatpush1.msra.mxu0 %v89
    %239 = vmatprep.subr.mxu0 0.0
    %240 = vmatpush1.msra.mxu0 %v90
    %241 = vmatprep.subr.mxu0 0.0
    %242 = vmatpush1.msra.mxu0 %v91
    %243 = vmatprep.subr.mxu0 0.0
    %244 = vmatpush1.msra.mxu0 %v92
    %245 = vmatprep.subr.mxu0 0.0
    %246 = vmatpush1.msra.mxu0 %v93
    %247 = vmatprep.subr.mxu0 0.0
    %248 = vmatpush1.msra.mxu0 %v94
    %249 = vmatprep.subr.mxu0 0.0
    %250 = vmatpush1.msra.mxu0 %v95
    %251 = vmatprep.subr.mxu0 0.0
    %252 = vmatpush1.msra.mxu0 0.0
    %253 = vmatprep.subr.mxu0 0.0
    %254 = vmatpush1.msra.mxu0 0.0
    %255 = vmatprep.subr.mxu0 0.0
    %256 = vmatpush1.msra.mxu0 0.0
    %257 = vmatprep.subr.mxu0 0.0
    %258 = vmatpush1.msra.mxu0 0.0
    %259 = vmatprep.subr.mxu0 0.0
    %260 = vmatpush1.msra.mxu0 0.0
    %261 = vmatprep.subr.mxu0 0.0
    %262 = vmatpush1.msra.mxu0 0.0
    %263 = vmatprep.subr.mxu0 0.0
    %264 = vmatpush1.msra.mxu0 0.0
    %265 = vmatprep.subr.mxu0 0.0
    %266 = vmatpush1.msra.mxu0 0.0
    %267 = vmatprep.subr.mxu0 0.0
    %268 = vmatpush1.msra.mxu0 0.0
    %269 = vmatprep.subr.mxu0 0.0
    %270 = vmatpush1.msra.mxu0 0.0
    %271 = vmatprep.subr.mxu0 0.0
    %272 = vmatpush1.msra.mxu0 0.0
    %273 = vmatprep.subr.mxu0 0.0
    %274 = vmatpush1.msra.mxu0 0.0
    %275 = vmatprep.subr.mxu0 0.0
    %276 = vmatpush1.msra.mxu0 0.0
    %277 = vmatprep.subr.mxu0 0.0
    %278 = vmatpush1.msra.mxu0 0.0
    %279 = vmatprep.subr.mxu0 0.0
    %280 = vmatpush1.msra.mxu0 0.0
    %281 = vmatprep.subr.mxu0 0.0
    %282 = vmatpush1.msra.mxu0 0.0
    %283 = vmatprep.subr.mxu0 0.0
    %284 = vmatpush1.msra.mxu0 0.0
    %285 = vmatprep.subr.mxu0 0.0
    %286 = vmatpush1.msra.mxu0 0.0
    %287 = vmatprep.subr.mxu0 0.0
    %288 = vmatpush1.msra.mxu0 0.0
    %289 = vmatprep.subr.mxu0 0.0
    %290 = vmatpush1.msra.mxu0 0.0
    %291 = vmatprep.subr.mxu0 0.0
    %292 = vmatpush1.msra.mxu0 0.0
    %293 = vmatprep.subr.mxu0 0.0
    %294 = vmatpush1.msra.mxu0 0.0
    %295 = vmatprep.subr.mxu0 0.0
    %296 = vmatpush1.msra.mxu0 0.0
    %297 = vmatprep.subr.mxu0 0.0
    %298 = vmatpush1.msra.mxu0 0.0
    %299 = vmatprep.mubr.f32.mxu0 0.0
    %300 = vmatmul.mubr.f32.gmra.mrb[0].mxu0 %v233
    %v301 = vpop.f32.mrb[0].mxu0
    %v302 = vadd.f32 %v108, %v301
    %v303 = vpop.f32.mrb[0].mxu0
    %304 = vdwg.mxu0
    %v305 = vxor.u32 %v302, 2147483648
    %v306 = vmul.f32 %v305, 1.442695
    %v307 = vpow.pop %v306
    %v308 = vadd.f32 %v307, 1.0
    %v309 = vrcp.pop %v308
    %v310 = vmul.f32 1.0, %v309
    %v311 = vtanh.pop %v302
    %v312 = vld [vmem:[#allocation4] sm:$0xff]
    %314 = vrot.lane.b32.xlu0 %v312, 32
    %v315 = vpop.permute.xlu0 %314
    %v317 = vmul.f32 %v310, %v315
    %319 = vrot.lane.b32.xlu0 %v311, 64
    %v320 = vpop.permute.xlu0 %319
    %v322 = vmul.f32 %v310, %v320
    %324 = vrot.lane.b32.xlu0 %v322, 32
    %v325 = vpop.permute.xlu0 %324
    %v327 = vadd.f32 %v317, %v325
    %v328 = vtanh.pop %v327
    %330 = vrot.lane.b32.xlu0 %v328, 64
    %v331 = vpop.permute.xlu0 %330
    %v333 = vmul.f32 %v310, %v331
    %335 = vrot.lane.b32.xlu0 %v327, 96
    %v336 = vpop.permute.xlu0 %335
    %338 = vst.msk [vmem:[#allocation4] sm:$0xff] %vm85, %v336
    %340 = vrot.lane.b32.xlu0 %v333, 32
    %v341 = vpop.permute.xlu0 %340
    %343 = vst.msk [vmem:[#allocation3] sm:$0xff] %vm85, %v341
    %s344 = scalar_lea.vmem [#allocation2], 8
    %345 = vst.msk [vmem:[%s344] sm:$0xff] %vm85, %v341
    %s346 = scalar_lea.vmem %s0, 16
    %v347 = vld [vmem:[%s346] sm:$0xff]
    %v348 = vld [vmem:[#allocation3] sm:$0xff]
    %350 = vrot.lane.b32.xlu0 %v348, 32
    %v351 = vpop.permute.xlu0 %350
    %v353 = vsel %vm85, %v347, %v351
    %v355 = vsel %vm110, %v353, 0
    %357 = vmatprep.subr.mxu0 0.0
    %358 = vmatpush1.msra.mxu0 %v88
    %359 = vmatprep.subr.mxu0 0.0
    %360 = vmatpush1.msra.mxu0 %v89
    %361 = vmatprep.subr.mxu0 0.0
    %362 = vmatpush1.msra.mxu0 %v90
    %363 = vmatprep.subr.mxu0 0.0
    %364 = vmatpush1.msra.mxu0 %v91
    %365 = vmatprep.subr.mxu0 0.0
    %366 = vmatpush1.msra.mxu0 %v92
    %367 = vmatprep.subr.mxu0 0.0
    %368 = vmatpush1.msra.mxu0 %v93
    %369 = vmatprep.subr.mxu0 0.0
    %370 = vmatpush1.msra.mxu0 %v94
    %371 = vmatprep.subr.mxu0 0.0
    %372 = vmatpush1.msra.mxu0 %v95
    %373 = vmatprep.subr.mxu0 0.0
    %374 = vmatpush1.msra.mxu0 0.0
    %375 = vmatprep.subr.mxu0 0.0
    %376 = vmatpush1.msra.mxu0 0.0
    %377 = vmatprep.subr.mxu0 0.0
    %378 = vmatpush1.msra.mxu0 0.0
    %379 = vmatprep.subr.mxu0 0.0
    %380 = vmatpush1.msra.mxu0 0.0
    %381 = vmatprep.subr.mxu0 0.0
    %382 = vmatpush1.msra.mxu0 0.0
    %383 = vmatprep.subr.mxu0 0.0
    %384 = vmatpush1.msra.mxu0 0.0
    %385 = vmatprep.subr.mxu0 0.0
    %386 = vmatpush1.msra.mxu0 0.0
    %387 = vmatprep.subr.mxu0 0.0
    %388 = vmatpush1.msra.mxu0 0.0
    %389 = vmatprep.subr.mxu0 0.0
    %390 = vmatpush1.msra.mxu0 0.0
    %391 = vmatprep.subr.mxu0 0.0
    %392 = vmatpush1.msra.mxu0 0.0
    %393 = vmatprep.subr.mxu0 0.0
    %394 = vmatpush1.msra.mxu0 0.0
    %395 = vmatprep.subr.mxu0 0.0
    %396 = vmatpush1.msra.mxu0 0.0
    %397 = vmatprep.subr.mxu0 0.0
    %398 = vmatpush1.msra.mxu0 0.0
    %399 = vmatprep.subr.mxu0 0.0
    %400 = vmatpush1.msra.mxu0 0.0
    %401 = vmatprep.subr.mxu0 0.0
    %402 = vmatpush1.msra.mxu0 0.0
    %403 = vmatprep.subr.mxu0 0.0
    %404 = vmatpush1.msra.mxu0 0.0
    %405 = vmatprep.subr.mxu0 0.0
    %406 = vmatpush1.msra.mxu0 0.0
    %407 = vmatprep.subr.mxu0 0.0
    %408 = vmatpush1.msra.mxu0 0.0
    %409 = vmatprep.subr.mxu0 0.0
    %410 = vmatpush1.msra.mxu0 0.0
    %411 = vmatprep.subr.mxu0 0.0
    %412 = vmatpush1.msra.mxu0 0.0
    %413 = vmatprep.subr.mxu0 0.0
    %414 = vmatpush1.msra.mxu0 0.0
    %415 = vmatprep.subr.mxu0 0.0
    %416 = vmatpush1.msra.mxu0 0.0
    %417 = vmatprep.subr.mxu0 0.0
    %418 = vmatpush1.msra.mxu0 0.0
    %419 = vmatprep.subr.mxu0 0.0
    %420 = vmatpush1.msra.mxu0 0.0
    %421 = vmatprep.mubr.f32.mxu0 0.0
    %422 = vmatmul.mubr.f32.gmra.mrb[0].mxu0 %v355
    %v423 = vpop.f32.mrb[0].mxu0
    %v424 = vadd.f32 %v108, %v423
    %v425 = vpop.f32.mrb[0].mxu0
    %426 = vdwg.mxu0
    %v427 = vxor.u32 %v424, 2147483648
    %v428 = vmul.f32 %v427, 1.442695
    %v429 = vpow.pop %v428
    %v430 = vadd.f32 %v429, 1.0
    %v431 = vrcp.pop %v430
    %v432 = vmul.f32 1.0, %v431
    %v433 = vtanh.pop %v424
    %v434 = vld [vmem:[#allocation4] sm:$0xff]
    %436 = vrot.lane.b32.xlu0 %v434, 32
    %v437 = vpop.permute.xlu0 %436
    %v439 = vmul.f32 %v432, %v437
    %441 = vrot.lane.b32.xlu0 %v433, 64
    %v442 = vpop.permute.xlu0 %441
    %v444 = vmul.f32 %v432, %v442
    %446 = vrot.lane.b32.xlu0 %v444, 32
    %v447 = vpop.permute.xlu0 %446
    %v449 = vadd.f32 %v439, %v447
    %v450 = vtanh.pop %v449
    %452 = vrot.lane.b32.xlu0 %v450, 64
    %v453 = vpop.permute.xlu0 %452
    %v455 = vmul.f32 %v432, %v453
    %457 = vrot.lane.b32.xlu0 %v449, 96
    %v458 = vpop.permute.xlu0 %457
    %460 = vst.msk [vmem:[#allocation4] sm:$0xff] %vm85, %v458
    %462 = vrot.lane.b32.xlu0 %v455, 32
    %v463 = vpop.permute.xlu0 %462
    %465 = vst.msk [vmem:[#allocation3] sm:$0xff] %vm85, %v463
    %s466 = scalar_lea.vmem [#allocation2], 16
    %467 = vst.msk [vmem:[%s466] sm:$0xff] %vm85, %v463
    %s468 = scalar_lea.vmem %s0, 24
    %v469 = vld [vmem:[%s468] sm:$0xff]
    %v470 = vld [vmem:[#allocation3] sm:$0xff]
    %472 = vrot.lane.b32.xlu0 %v470, 32
    %v473 = vpop.permute.xlu0 %472
    %v475 = vsel %vm85, %v469, %v473
    %v477 = vsel %vm110, %v475, 0
    %479 = vmatprep.subr.mxu0 0.0
    %480 = vmatpush1.msra.mxu0 %v88
    %481 = vmatprep.subr.mxu0 0.0
    %482 = vmatpush1.msra.mxu0 %v89
    %483 = vmatprep.subr.mxu0 0.0
    %484 = vmatpush1.msra.mxu0 %v90
    %485 = vmatprep.subr.mxu0 0.0
    %486 = vmatpush1.msra.mxu0 %v91
    %487 = vmatprep.subr.mxu0 0.0
    %488 = vmatpush1.msra.mxu0 %v92
    %489 = vmatprep.subr.mxu0 0.0
    %490 = vmatpush1.msra.mxu0 %v93
    %491 = vmatprep.subr.mxu0 0.0
    %492 = vmatpush1.msra.mxu0 %v94
    %493 = vmatprep.subr.mxu0 0.0
    %494 = vmatpush1.msra.mxu0 %v95
    %495 = vmatprep.subr.mxu0 0.0
    %496 = vmatpush1.msra.mxu0 0.0
    %497 = vmatprep.subr.mxu0 0.0
    %498 = vmatpush1.msra.mxu0 0.0
    %499 = vmatprep.subr.mxu0 0.0
    %500 = vmatpush1.msra.mxu0 0.0
    %501 = vmatprep.subr.mxu0 0.0
    %502 = vmatpush1.msra.mxu0 0.0
    %503 = vmatprep.subr.mxu0 0.0
    %504 = vmatpush1.msra.mxu0 0.0
    %505 = vmatprep.subr.mxu0 0.0
    %506 = vmatpush1.msra.mxu0 0.0
    %507 = vmatprep.subr.mxu0 0.0
    %508 = vmatpush1.msra.mxu0 0.0
    %509 = vmatprep.subr.mxu0 0.0
    %510 = vmatpush1.msra.mxu0 0.0
    %511 = vmatprep.subr.mxu0 0.0
    %512 = vmatpush1.msra.mxu0 0.0
    %513 = vmatprep.subr.mxu0 0.0
    %514 = vmatpush1.msra.mxu0 0.0
    %515 = vmatprep.subr.mxu0 0.0
    %516 = vmatpush1.msra.mxu0 0.0
    %517 = vmatprep.subr.mxu0 0.0
    %518 = vmatpush1.msra.mxu0 0.0
    %519 = vmatprep.subr.mxu0 0.0
    %520 = vmatpush1.msra.mxu0 0.0
    %521 = vmatprep.subr.mxu0 0.0
    %522 = vmatpush1.msra.mxu0 0.0
    %523 = vmatprep.subr.mxu0 0.0
    %524 = vmatpush1.msra.mxu0 0.0
    %525 = vmatprep.subr.mxu0 0.0
    %526 = vmatpush1.msra.mxu0 0.0
    %527 = vmatprep.subr.mxu0 0.0
    %528 = vmatpush1.msra.mxu0 0.0
    %529 = vmatprep.subr.mxu0 0.0
    %530 = vmatpush1.msra.mxu0 0.0
    %531 = vmatprep.subr.mxu0 0.0
    %532 = vmatpush1.msra.mxu0 0.0
    %533 = vmatprep.subr.mxu0 0.0
    %534 = vmatpush1.msra.mxu0 0.0
    %535 = vmatprep.subr.mxu0 0.0
    %536 = vmatpush1.msra.mxu0 0.0
    %537 = vmatprep.subr.mxu0 0.0
    %538 = vmatpush1.msra.mxu0 0.0
    %539 = vmatprep.subr.mxu0 0.0
    %540 = vmatpush1.msra.mxu0 0.0
    %541 = vmatprep.subr.mxu0 0.0
    %542 = vmatpush1.msra.mxu0 0.0
    %543 = vmatprep.mubr.f32.mxu0 0.0
    %544 = vmatmul.mubr.f32.gmra.mrb[0].mxu0 %v477
    %v545 = vpop.f32.mrb[0].mxu0
    %v546 = vadd.f32 %v108, %v545
    %v547 = vpop.f32.mrb[0].mxu0
    %548 = vdwg.mxu0
    %v549 = vxor.u32 %v546, 2147483648
    %v550 = vmul.f32 %v549, 1.442695
    %v551 = vpow.pop %v550
    %v552 = vadd.f32 %v551, 1.0
    %v553 = vrcp.pop %v552
    %v554 = vmul.f32 1.0, %v553
    %v555 = vtanh.pop %v546
    %v556 = vld [vmem:[#allocation4] sm:$0xff]
    %558 = vrot.lane.b32.xlu0 %v556, 32
    %v559 = vpop.permute.xlu0 %558
    %v561 = vmul.f32 %v554, %v559
    %563 = vrot.lane.b32.xlu0 %v555, 64
    %v564 = vpop.permute.xlu0 %563
    %v566 = vmul.f32 %v554, %v564
    %568 = vrot.lane.b32.xlu0 %v566, 32
    %v569 = vpop.permute.xlu0 %568
    %v571 = vadd.f32 %v561, %v569
    %v572 = vtanh.pop %v571
    %574 = vrot.lane.b32.xlu0 %v572, 64
    %v575 = vpop.permute.xlu0 %574
    %v577 = vmul.f32 %v554, %v575
    %579 = vrot.lane.b32.xlu0 %v571, 96
    %v580 = vpop.permute.xlu0 %579
    %582 = vst.msk [vmem:[#allocation4] sm:$0xff] %vm85, %v580
    %584 = vrot.lane.b32.xlu0 %v577, 32
    %v585 = vpop.permute.xlu0 %584
    %587 = vst.msk [vmem:[#allocation3] sm:$0xff] %vm85, %v585
    %s588 = scalar_lea.vmem [#allocation2], 24
    %589 = vst.msk [vmem:[%s588] sm:$0xff] %vm85, %v585
    %s590 = scalar_lea.vmem %s0, 32
    %v591 = vld [vmem:[%s590] sm:$0xff]
    %v592 = vld [vmem:[#allocation3] sm:$0xff]
    %594 = vrot.lane.b32.xlu0 %v592, 32
    %v595 = vpop.permute.xlu0 %594
    %v597 = vsel %vm85, %v591, %v595
    %v599 = vsel %vm110, %v597, 0
    %601 = vmatprep.subr.mxu0 0.0
    %602 = vmatpush1.msra.mxu0 %v88
    %603 = vmatprep.subr.mxu0 0.0
    %604 = vmatpush1.msra.mxu0 %v89
    %605 = vmatprep.subr.mxu0 0.0
    %606 = vmatpush1.msra.mxu0 %v90
    %607 = vmatprep.subr.mxu0 0.0
    %608 = vmatpush1.msra.mxu0 %v91
    %609 = vmatprep.subr.mxu0 0.0
    %610 = vmatpush1.msra.mxu0 %v92
    %611 = vmatprep.subr.mxu0 0.0
    %612 = vmatpush1.msra.mxu0 %v93
    %613 = vmatprep.subr.mxu0 0.0
    %614 = vmatpush1.msra.mxu0 %v94
    %615 = vmatprep.subr.mxu0 0.0
    %616 = vmatpush1.msra.mxu0 %v95
    %617 = vmatprep.subr.mxu0 0.0
    %618 = vmatpush1.msra.mxu0 0.0
    %619 = vmatprep.subr.mxu0 0.0
    %620 = vmatpush1.msra.mxu0 0.0
    %621 = vmatprep.subr.mxu0 0.0
    %622 = vmatpush1.msra.mxu0 0.0
    %623 = vmatprep.subr.mxu0 0.0
    %624 = vmatpush1.msra.mxu0 0.0
    %625 = vmatprep.subr.mxu0 0.0
    %626 = vmatpush1.msra.mxu0 0.0
    %627 = vmatprep.subr.mxu0 0.0
    %628 = vmatpush1.msra.mxu0 0.0
    %629 = vmatprep.subr.mxu0 0.0
    %630 = vmatpush1.msra.mxu0 0.0
    %631 = vmatprep.subr.mxu0 0.0
    %632 = vmatpush1.msra.mxu0 0.0
    %633 = vmatprep.subr.mxu0 0.0
    %634 = vmatpush1.msra.mxu0 0.0
    %635 = vmatprep.subr.mxu0 0.0
    %636 = vmatpush1.msra.mxu0 0.0
    %637 = vmatprep.subr.mxu0 0.0
    %638 = vmatpush1.msra.mxu0 0.0
    %639 = vmatprep.subr.mxu0 0.0
    %640 = vmatpush1.msra.mxu0 0.0
    %641 = vmatprep.subr.mxu0 0.0
    %642 = vmatpush1.msra.mxu0 0.0
    %643 = vmatprep.subr.mxu0 0.0
    %644 = vmatpush1.msra.mxu0 0.0
    %645 = vmatprep.subr.mxu0 0.0
    %646 = vmatpush1.msra.mxu0 0.0
    %647 = vmatprep.subr.mxu0 0.0
    %648 = vmatpush1.msra.mxu0 0.0
    %649 = vmatprep.subr.mxu0 0.0
    %650 = vmatpush1.msra.mxu0 0.0
    %651 = vmatprep.subr.mxu0 0.0
    %652 = vmatpush1.msra.mxu0 0.0
    %653 = vmatprep.subr.mxu0 0.0
    %654 = vmatpush1.msra.mxu0 0.0
    %655 = vmatprep.subr.mxu0 0.0
    %656 = vmatpush1.msra.mxu0 0.0
    %657 = vmatprep.subr.mxu0 0.0
    %658 = vmatpush1.msra.mxu0 0.0
    %659 = vmatprep.subr.mxu0 0.0
    %660 = vmatpush1.msra.mxu0 0.0
    %661 = vmatprep.subr.mxu0 0.0
    %662 = vmatpush1.msra.mxu0 0.0
    %663 = vmatprep.subr.mxu0 0.0
    %664 = vmatpush1.msra.mxu0 0.0
    %665 = vmatprep.mubr.f32.mxu0 0.0
    %666 = vmatmul.mubr.f32.gmra.mrb[0].mxu0 %v599
    %v667 = vpop.f32.mrb[0].mxu0
    %v668 = vadd.f32 %v108, %v667
    %v669 = vpop.f32.mrb[0].mxu0
    %670 = vdwg.mxu0
    %v671 = vxor.u32 %v668, 2147483648
    %v672 = vmul.f32 %v671, 1.442695
    %v673 = vpow.pop %v672
    %v674 = vadd.f32 %v673, 1.0
    %v675 = vrcp.pop %v674
    %v676 = vmul.f32 1.0, %v675
    %v677 = vtanh.pop %v668
    %v678 = vld [vmem:[#allocation4] sm:$0xff]
    %680 = vrot.lane.b32.xlu0 %v678, 32
    %v681 = vpop.permute.xlu0 %680
    %v683 = vmul.f32 %v676, %v681
    %685 = vrot.lane.b32.xlu0 %v677, 64
    %v686 = vpop.permute.xlu0 %685
    %v688 = vmul.f32 %v676, %v686
    %690 = vrot.lane.b32.xlu0 %v688, 32
    %v691 = vpop.permute.xlu0 %690
    %v693 = vadd.f32 %v683, %v691
    %v694 = vtanh.pop %v693
    %696 = vrot.lane.b32.xlu0 %v694, 64
    %v697 = vpop.permute.xlu0 %696
    %v699 = vmul.f32 %v676, %v697
    %701 = vrot.lane.b32.xlu0 %v693, 96
    %v702 = vpop.permute.xlu0 %701
    %704 = vst.msk [vmem:[#allocation4] sm:$0xff] %vm85, %v702
    %706 = vrot.lane.b32.xlu0 %v699, 32
    %v707 = vpop.permute.xlu0 %706
    %709 = vst.msk [vmem:[#allocation3] sm:$0xff] %vm85, %v707
    %s710 = scalar_lea.vmem [#allocation2], 32
    %711 = vst.msk [vmem:[%s710] sm:$0xff] %vm85, %v707
    %s712 = scalar_lea.vmem %s0, 40
    %v713 = vld [vmem:[%s712] sm:$0xff]
    %v714 = vld [vmem:[#allocation3] sm:$0xff]
    %716 = vrot.lane.b32.xlu0 %v714, 32
    %v717 = vpop.permute.xlu0 %716
    %v719 = vsel %vm85, %v713, %v717
    %v721 = vsel %vm110, %v719, 0
    %723 = vmatprep.subr.mxu0 0.0
    %724 = vmatpush1.msra.mxu0 %v88
    %725 = vmatprep.subr.mxu0 0.0
    %726 = vmatpush1.msra.mxu0 %v89
    %727 = vmatprep.subr.mxu0 0.0
    %728 = vmatpush1.msra.mxu0 %v90
    %729 = vmatprep.subr.mxu0 0.0
    %730 = vmatpush1.msra.mxu0 %v91
    %731 = vmatprep.subr.mxu0 0.0
    %732 = vmatpush1.msra.mxu0 %v92
    %733 = vmatprep.subr.mxu0 0.0
    %734 = vmatpush1.msra.mxu0 %v93
    %735 = vmatprep.subr.mxu0 0.0
    %736 = vmatpush1.msra.mxu0 %v94
    %737 = vmatprep.subr.mxu0 0.0
    %738 = vmatpush1.msra.mxu0 %v95
    %739 = vmatprep.subr.mxu0 0.0
    %740 = vmatpush1.msra.mxu0 0.0
    %741 = vmatprep.subr.mxu0 0.0
    %742 = vmatpush1.msra.mxu0 0.0
    %743 = vmatprep.subr.mxu0 0.0
    %744 = vmatpush1.msra.mxu0 0.0
    %745 = vmatprep.subr.mxu0 0.0
    %746 = vmatpush1.msra.mxu0 0.0
    %747 = vmatprep.subr.mxu0 0.0
    %748 = vmatpush1.msra.mxu0 0.0
    %749 = vmatprep.subr.mxu0 0.0
    %750 = vmatpush1.msra.mxu0 0.0
    %751 = vmatprep.subr.mxu0 0.0
    %752 = vmatpush1.msra.mxu0 0.0
    %753 = vmatprep.subr.mxu0 0.0
    %754 = vmatpush1.msra.mxu0 0.0
    %755 = vmatprep.subr.mxu0 0.0
    %756 = vmatpush1.msra.mxu0 0.0
    %757 = vmatprep.subr.mxu0 0.0
    %758 = vmatpush1.msra.mxu0 0.0
    %759 = vmatprep.subr.mxu0 0.0
    %760 = vmatpush1.msra.mxu0 0.0
    %761 = vmatprep.subr.mxu0 0.0
    %762 = vmatpush1.msra.mxu0 0.0
    %763 = vmatprep.subr.mxu0 0.0
    %764 = vmatpush1.msra.mxu0 0.0
    %765 = vmatprep.subr.mxu0 0.0
    %766 = vmatpush1.msra.mxu0 0.0
    %767 = vmatprep.subr.mxu0 0.0
    %768 = vmatpush1.msra.mxu0 0.0
    %769 = vmatprep.subr.mxu0 0.0
    %770 = vmatpush1.msra.mxu0 0.0
    %771 = vmatprep.subr.mxu0 0.0
    %772 = vmatpush1.msra.mxu0 0.0
    %773 = vmatprep.subr.mxu0 0.0
    %774 = vmatpush1.msra.mxu0 0.0
    %775 = vmatprep.subr.mxu0 0.0
    %776 = vmatpush1.msra.mxu0 0.0
    %777 = vmatprep.subr.mxu0 0.0
    %778 = vmatpush1.msra.mxu0 0.0
    %779 = vmatprep.subr.mxu0 0.0
    %780 = vmatpush1.msra.mxu0 0.0
    %781 = vmatprep.subr.mxu0 0.0
    %782 = vmatpush1.msra.mxu0 0.0
    %783 = vmatprep.subr.mxu0 0.0
    %784 = vmatpush1.msra.mxu0 0.0
    %785 = vmatprep.subr.mxu0 0.0
    %786 = vmatpush1.msra.mxu0 0.0
    %787 = vmatprep.mubr.f32.mxu0 0.0
    %788 = vmatmul.mubr.f32.gmra.mrb[0].mxu0 %v721
    %v789 = vpop.f32.mrb[0].mxu0
    %v790 = vadd.f32 %v108, %v789
    %v791 = vpop.f32.mrb[0].mxu0
    %792 = vdwg.mxu0
    %v793 = vxor.u32 %v790, 2147483648
    %v794 = vmul.f32 %v793, 1.442695
    %v795 = vpow.pop %v794
    %v796 = vadd.f32 %v795, 1.0
    %v797 = vrcp.pop %v796
    %v798 = vmul.f32 1.0, %v797
    %v799 = vtanh.pop %v790
    %v800 = vld [vmem:[#allocation4] sm:$0xff]
    %802 = vrot.lane.b32.xlu0 %v800, 32
    %v803 = vpop.permute.xlu0 %802
    %v805 = vmul.f32 %v798, %v803
    %807 = vrot.lane.b32.xlu0 %v799, 64
    %v808 = vpop.permute.xlu0 %807
    %v810 = vmul.f32 %v798, %v808
    %812 = vrot.lane.b32.xlu0 %v810, 32
    %v813 = vpop.permute.xlu0 %812
    %v815 = vadd.f32 %v805, %v813
    %v816 = vtanh.pop %v815
    %818 = vrot.lane.b32.xlu0 %v816, 64
    %v819 = vpop.permute.xlu0 %818
    %v821 = vmul.f32 %v798, %v819
    %823 = vrot.lane.b32.xlu0 %v815, 96
    %v824 = vpop.permute.xlu0 %823
    %826 = vst.msk [vmem:[#allocation4] sm:$0xff] %vm85, %v824
    %828 = vrot.lane.b32.xlu0 %v821, 32
    %v829 = vpop.permute.xlu0 %828
    %831 = vst.msk [vmem:[#allocation3] sm:$0xff] %vm85, %v829
    %s832 = scalar_lea.vmem [#allocation2], 40
    %833 = vst.msk [vmem:[%s832] sm:$0xff] %vm85, %v829
    %s834 = scalar_lea.vmem %s0, 48
    %v835 = vld [vmem:[%s834] sm:$0xff]
    %v836 = vld [vmem:[#allocation3] sm:$0xff]
    %838 = vrot.lane.b32.xlu0 %v836, 32
    %v839 = vpop.permute.xlu0 %838
    %v841 = vsel %vm85, %v835, %v839
    %v843 = vsel %vm110, %v841, 0
    %845 = vmatprep.subr.mxu0 0.0
    %846 = vmatpush1.msra.mxu0 %v88
    %847 = vmatprep.subr.mxu0 0.0
    %848 = vmatpush1.msra.mxu0 %v89
    %849 = vmatprep.subr.mxu0 0.0
    %850 = vmatpush1.msra.mxu0 %v90
    %851 = vmatprep.subr.mxu0 0.0
    %852 = vmatpush1.msra.mxu0 %v91
    %853 = vmatprep.subr.mxu0 0.0
    %854 = vmatpush1.msra.mxu0 %v92
    %855 = vmatprep.subr.mxu0 0.0
    %856 = vmatpush1.msra.mxu0 %v93
    %857 = vmatprep.subr.mxu0 0.0
    %858 = vmatpush1.msra.mxu0 %v94
    %859 = vmatprep.subr.mxu0 0.0
    %860 = vmatpush1.msra.mxu0 %v95
    %861 = vmatprep.subr.mxu0 0.0
    %862 = vmatpush1.msra.mxu0 0.0
    %863 = vmatprep.subr.mxu0 0.0
    %864 = vmatpush1.msra.mxu0 0.0
    %865 = vmatprep.subr.mxu0 0.0
    %866 = vmatpush1.msra.mxu0 0.0
    %867 = vmatprep.subr.mxu0 0.0
    %868 = vmatpush1.msra.mxu0 0.0
    %869 = vmatprep.subr.mxu0 0.0
    %870 = vmatpush1.msra.mxu0 0.0
    %871 = vmatprep.subr.mxu0 0.0
    %872 = vmatpush1.msra.mxu0 0.0
    %873 = vmatprep.subr.mxu0 0.0
    %874 = vmatpush1.msra.mxu0 0.0
    %875 = vmatprep.subr.mxu0 0.0
    %876 = vmatpush1.msra.mxu0 0.0
    %877 = vmatprep.subr.mxu0 0.0
    %878 = vmatpush1.msra.mxu0 0.0
    %879 = vmatprep.subr.mxu0 0.0
    %880 = vmatpush1.msra.mxu0 0.0
    %881 = vmatprep.subr.mxu0 0.0
    %882 = vmatpush1.msra.mxu0 0.0
    %883 = vmatprep.subr.mxu0 0.0
    %884 = vmatpush1.msra.mxu0 0.0
    %885 = vmatprep.subr.mxu0 0.0
    %886 = vmatpush1.msra.mxu0 0.0
    %887 = vmatprep.subr.mxu0 0.0
    %888 = vmatpush1.msra.mxu0 0.0
    %889 = vmatprep.subr.mxu0 0.0
    %890 = vmatpush1.msra.mxu0 0.0
    %891 = vmatprep.subr.mxu0 0.0
    %892 = vmatpush1.msra.mxu0 0.0
    %893 = vmatprep.subr.mxu0 0.0
    %894 = vmatpush1.msra.mxu0 0.0
    %895 = vmatprep.subr.mxu0 0.0
    %896 = vmatpush1.msra.mxu0 0.0
    %897 = vmatprep.subr.mxu0 0.0
    %898 = vmatpush1.msra.mxu0 0.0
    %899 = vmatprep.subr.mxu0 0.0
    %900 = vmatpush1.msra.mxu0 0.0
    %901 = vmatprep.subr.mxu0 0.0
    %902 = vmatpush1.msra.mxu0 0.0
    %903 = vmatprep.subr.mxu0 0.0
    %904 = vmatpush1.msra.mxu0 0.0
    %905 = vmatprep.subr.mxu0 0.0
    %906 = vmatpush1.msra.mxu0 0.0
    %907 = vmatprep.subr.mxu0 0.0
    %908 = vmatpush1.msra.mxu0 0.0
    %909 = vmatprep.mubr.f32.mxu0 0.0
    %910 = vmatmul.mubr.f32.gmra.mrb[0].mxu0 %v843
    %v911 = vpop.f32.mrb[0].mxu0
    %v912 = vadd.f32 %v108, %v911
    %v913 = vpop.f32.mrb[0].mxu0
    %914 = vdwg.mxu0
    %v915 = vxor.u32 %v912, 2147483648
    %v916 = vmul.f32 %v915, 1.442695
    %v917 = vpow.pop %v916
    %v918 = vadd.f32 %v917, 1.0
    %v919 = vrcp.pop %v918
    %v920 = vmul.f32 1.0, %v919
    %v921 = vtanh.pop %v912
    %v922 = vld [vmem:[#allocation4] sm:$0xff]
    %924 = vrot.lane.b32.xlu0 %v922, 32
    %v925 = vpop.permute.xlu0 %924
    %v927 = vmul.f32 %v920, %v925
    %929 = vrot.lane.b32.xlu0 %v921, 64
    %v930 = vpop.permute.xlu0 %929
    %v932 = vmul.f32 %v920, %v930
    %934 = vrot.lane.b32.xlu0 %v932, 32
    %v935 = vpop.permute.xlu0 %934
    %v937 = vadd.f32 %v927, %v935
    %v938 = vtanh.pop %v937
    %940 = vrot.lane.b32.xlu0 %v938, 64
    %v941 = vpop.permute.xlu0 %940
    %v943 = vmul.f32 %v920, %v941
    %945 = vrot.lane.b32.xlu0 %v937, 96
    %v946 = vpop.permute.xlu0 %945
    %948 = vst.msk [vmem:[#allocation4] sm:$0xff] %vm85, %v946
    %950 = vrot.lane.b32.xlu0 %v943, 32
    %v951 = vpop.permute.xlu0 %950
    %953 = vst.msk [vmem:[#allocation3] sm:$0xff] %vm85, %v951
    %s954 = scalar_lea.vmem [#allocation2], 48
    %955 = vst.msk [vmem:[%s954] sm:$0xff] %vm85, %v951
    %s956 = scalar_lea.vmem %s0, 56
    %v957 = vld [vmem:[%s956] sm:$0xff]
    %v958 = vld [vmem:[#allocation3] sm:$0xff]
    %960 = vrot.lane.b32.xlu0 %v958, 32
    %v961 = vpop.permute.xlu0 %960
    %v963 = vsel %vm85, %v957, %v961
    %v965 = vsel %vm110, %v963, 0
    %967 = vmatprep.subr.mxu0 0.0
    %968 = vmatpush1.msra.mxu0 %v88
    %969 = vmatprep.subr.mxu0 0.0
    %970 = vmatpush1.msra.mxu0 %v89
    %971 = vmatprep.subr.mxu0 0.0
    %972 = vmatpush1.msra.mxu0 %v90
    %973 = vmatprep.subr.mxu0 0.0
    %974 = vmatpush1.msra.mxu0 %v91
    %975 = vmatprep.subr.mxu0 0.0
    %976 = vmatpush1.msra.mxu0 %v92
    %977 = vmatprep.subr.mxu0 0.0
    %978 = vmatpush1.msra.mxu0 %v93
    %979 = vmatprep.subr.mxu0 0.0
    %980 = vmatpush1.msra.mxu0 %v94
    %981 = vmatprep.subr.mxu0 0.0
    %982 = vmatpush1.msra.mxu0 %v95
    %983 = vmatprep.subr.mxu0 0.0
    %984 = vmatpush1.msra.mxu0 0.0
    %985 = vmatprep.subr.mxu0 0.0
    %986 = vmatpush1.msra.mxu0 0.0
    %987 = vmatprep.subr.mxu0 0.0
    %988 = vmatpush1.msra.mxu0 0.0
    %989 = vmatprep.subr.mxu0 0.0
    %990 = vmatpush1.msra.mxu0 0.0
    %991 = vmatprep.subr.mxu0 0.0
    %992 = vmatpush1.msra.mxu0 0.0
    %993 = vmatprep.subr.mxu0 0.0
    %994 = vmatpush1.msra.mxu0 0.0
    %995 = vmatprep.subr.mxu0 0.0
    %996 = vmatpush1.msra.mxu0 0.0
    %997 = vmatprep.subr.mxu0 0.0
    %998 = vmatpush1.msra.mxu0 0.0
    %999 = vmatprep.subr.mxu0 0.0
    %1000 = vmatpush1.msra.mxu0 0.0
    %1001 = vmatprep.subr.mxu0 0.0
    %1002 = vmatpush1.msra.mxu0 0.0
    %1003 = vmatprep.subr.mxu0 0.0
    %1004 = vmatpush1.msra.mxu0 0.0
    %1005 = vmatprep.subr.mxu0 0.0
    %1006 = vmatpush1.msra.mxu0 0.0
    %1007 = vmatprep.subr.mxu0 0.0
    %1008 = vmatpush1.msra.mxu0 0.0
    %1009 = vmatprep.subr.mxu0 0.0
    %1010 = vmatpush1.msra.mxu0 0.0
    %1011 = vmatprep.subr.mxu0 0.0
    %1012 = vmatpush1.msra.mxu0 0.0
    %1013 = vmatprep.subr.mxu0 0.0
    %1014 = vmatpush1.msra.mxu0 0.0
    %1015 = vmatprep.subr.mxu0 0.0
    %1016 = vmatpush1.msra.mxu0 0.0
    %1017 = vmatprep.subr.mxu0 0.0
    %1018 = vmatpush1.msra.mxu0 0.0
    %1019 = vmatprep.subr.mxu0 0.0
    %1020 = vmatpush1.msra.mxu0 0.0
    %1021 = vmatprep.subr.mxu0 0.0
    %1022 = vmatpush1.msra.mxu0 0.0
    %1023 = vmatprep.subr.mxu0 0.0
    %1024 = vmatpush1.msra.mxu0 0.0
    %1025 = vmatprep.subr.mxu0 0.0
    %1026 = vmatpush1.msra.mxu0 0.0
    %1027 = vmatprep.subr.mxu0 0.0
    %1028 = vmatpush1.msra.mxu0 0.0
    %1029 = vmatprep.subr.mxu0 0.0
    %1030 = vmatpush1.msra.mxu0 0.0
    %1031 = vmatprep.mubr.f32.mxu0 0.0
    %1032 = vmatmul.mubr.f32.gmra.mrb[0].mxu0 %v965
    %v1033 = vpop.f32.mrb[0].mxu0
    %v1034 = vadd.f32 %v108, %v1033
    %v1035 = vpop.f32.mrb[0].mxu0
    %1036 = vdwg.mxu0
    %v1037 = vxor.u32 %v1034, 2147483648
    %v1038 = vmul.f32 %v1037, 1.442695
    %v1039 = vpow.pop %v1038
    %v1040 = vadd.f32 %v1039, 1.0
    %v1041 = vrcp.pop %v1040
    %v1042 = vmul.f32 1.0, %v1041
    %v1043 = vtanh.pop %v1034
    %v1044 = vld [vmem:[#allocation4] sm:$0xff]
    %1046 = vrot.lane.b32.xlu0 %v1044, 32
    %v1047 = vpop.permute.xlu0 %1046
    %v1049 = vmul.f32 %v1042, %v1047
    %1051 = vrot.lane.b32.xlu0 %v1043, 64
    %v1052 = vpop.permute.xlu0 %1051
    %v1054 = vmul.f32 %v1042, %v1052
    %1056 = vrot.lane.b32.xlu0 %v1054, 32
    %v1057 = vpop.permute.xlu0 %1056
    %v1059 = vadd.f32 %v1049, %v1057
    %v1060 = vtanh.pop %v1059
    %1062 = vrot.lane.b32.xlu0 %v1060, 64
    %v1063 = vpop.permute.xlu0 %1062
    %v1065 = vmul.f32 %v1042, %v1063
    %1067 = vrot.lane.b32.xlu0 %v1059, 96
    %v1068 = vpop.permute.xlu0 %1067
    %1070 = vst.msk [vmem:[#allocation4] sm:$0xff] %vm85, %v1068
    %1072 = vrot.lane.b32.xlu0 %v1065, 32
    %v1073 = vpop.permute.xlu0 %1072
    %1075 = vst.msk [vmem:[#allocation3] sm:$0xff] %vm85, %v1073
    %s1076 = scalar_lea.vmem [#allocation2], 56
    %1077 = vst.msk [vmem:[%s1076] sm:$0xff] %vm85, %v1073
    %1078 = vst.msk [vmem:[#allocation3] sm:$0xff] %vm85, 0.0
    %1079 = vst.msk [vmem:[#allocation4] sm:$0xff] %vm85, 0.0
    %v1080 = vld [vmem:[%s3] sm:$0xff]
    %v1081 = vld [vmem:[%s3 + $0x8] sm:$0xff]
    %v1082 = vld [vmem:[%s3 + $0x10] sm:$0xff]
    %v1083 = vld [vmem:[%s3 + $0x18] sm:$0xff]
    %v1084 = vld [vmem:[%s3 + $0x20] sm:$0xff]
    %v1085 = vld [vmem:[%s3 + $0x28] sm:$0xff]
    %v1086 = vld [vmem:[%s3 + $0x30] sm:$0xff]
    %v1087 = vld [vmem:[%s3 + $0x38] sm:$0xff]
    %v1088 = vld [vmem:[#allocation10] sm:$0x1]
    %v1089 = vld [vmem:[#allocation2] sm:$0xff]
    %v1090 = vld [vmem:[#allocation3] sm:$0xff]
    %1092 = vrot.lane.b32.xlu0 %v1090, 32
    %v1093 = vpop.permute.xlu0 %1092
    %v1095 = vsel %vm85, %v1089, %v1093
    %v1097 = vlaneseq
    %v1098 = vshrl.u32 %v1097, 7
    %v1099 = vsub.s32 0, %v1098
    %v1100 = vrot.slane %v1088, %v1099
    %v1103 = vsel %vm110, %v1095, 0
    %1105 = vmatprep.subr.mxu0 0.0
    %1106 = vmatpush1.msra.mxu0 %v1080
    %1107 = vmatprep.subr.mxu0 0.0
    %1108 = vmatpush1.msra.mxu0 %v1081
    %1109 = vmatprep.subr.mxu0 0.0
    %1110 = vmatpush1.msra.mxu0 %v1082
    %1111 = vmatprep.subr.mxu0 0.0
    %1112 = vmatpush1.msra.mxu0 %v1083
    %1113 = vmatprep.subr.mxu0 0.0
    %1114 = vmatpush1.msra.mxu0 %v1084
    %1115 = vmatprep.subr.mxu0 0.0
    %1116 = vmatpush1.msra.mxu0 %v1085
    %1117 = vmatprep.subr.mxu0 0.0
    %1118 = vmatpush1.msra.mxu0 %v1086
    %1119 = vmatprep.subr.mxu0 0.0
    %1120 = vmatpush1.msra.mxu0 %v1087
    %1121 = vmatprep.subr.mxu0 0.0
    %1122 = vmatpush1.msra.mxu0 0.0
    %1123 = vmatprep.subr.mxu0 0.0
    %1124 = vmatpush1.msra.mxu0 0.0
    %1125 = vmatprep.subr.mxu0 0.0
    %1126 = vmatpush1.msra.mxu0 0.0
    %1127 = vmatprep.subr.mxu0 0.0
    %1128 = vmatpush1.msra.mxu0 0.0
    %1129 = vmatprep.subr.mxu0 0.0
    %1130 = vmatpush1.msra.mxu0 0.0
    %1131 = vmatprep.subr.mxu0 0.0
    %1132 = vmatpush1.msra.mxu0 0.0
    %1133 = vmatprep.subr.mxu0 0.0
    %1134 = vmatpush1.msra.mxu0 0.0
    %1135 = vmatprep.subr.mxu0 0.0
    %1136 = vmatpush1.msra.mxu0 0.0
    %1137 = vmatprep.subr.mxu0 0.0
    %1138 = vmatpush1.msra.mxu0 0.0
    %1139 = vmatprep.subr.mxu0 0.0
    %1140 = vmatpush1.msra.mxu0 0.0
    %1141 = vmatprep.subr.mxu0 0.0
    %1142 = vmatpush1.msra.mxu0 0.0
    %1143 = vmatprep.subr.mxu0 0.0
    %1144 = vmatpush1.msra.mxu0 0.0
    %1145 = vmatprep.subr.mxu0 0.0
    %1146 = vmatpush1.msra.mxu0 0.0
    %1147 = vmatprep.subr.mxu0 0.0
    %1148 = vmatpush1.msra.mxu0 0.0
    %1149 = vmatprep.subr.mxu0 0.0
    %1150 = vmatpush1.msra.mxu0 0.0
    %1151 = vmatprep.subr.mxu0 0.0
    %1152 = vmatpush1.msra.mxu0 0.0
    %1153 = vmatprep.subr.mxu0 0.0
    %1154 = vmatpush1.msra.mxu0 0.0
    %1155 = vmatprep.subr.mxu0 0.0
    %1156 = vmatpush1.msra.mxu0 0.0
    %1157 = vmatprep.subr.mxu0 0.0
    %1158 = vmatpush1.msra.mxu0 0.0
    %1159 = vmatprep.subr.mxu0 0.0
    %1160 = vmatpush1.msra.mxu0 0.0
    %1161 = vmatprep.subr.mxu0 0.0
    %1162 = vmatpush1.msra.mxu0 0.0
    %1163 = vmatprep.subr.mxu0 0.0
    %1164 = vmatpush1.msra.mxu0 0.0
    %1165 = vmatprep.subr.mxu0 0.0
    %1166 = vmatpush1.msra.mxu0 0.0
    %1167 = vmatprep.subr.mxu0 0.0
    %1168 = vmatpush1.msra.mxu0 0.0
    %1169 = vmatprep.mubr.f32.mxu0 0.0
    %1170 = vmatmul.mubr.f32.gmra.mrb[0].mxu0 %v1103
    %v1171 = vpop.f32.mrb[0].mxu0
    %v1172 = vadd.f32 %v1100, %v1171
    %v1173 = vpop.f32.mrb[0].mxu0
    %1174 = vdwg.mxu0
    %v1175 = vxor.u32 %v1172, 2147483648
    %v1176 = vmul.f32 %v1175, 1.442695
    %v1177 = vpow.pop %v1176
    %v1178 = vadd.f32 %v1177, 1.0
    %v1179 = vrcp.pop %v1178
    %v1180 = vmul.f32 1.0, %v1179
    %v1181 = vtanh.pop %v1172
    %v1182 = vld [vmem:[#allocation4] sm:$0xff]
    %1184 = vrot.lane.b32.xlu0 %v1182, 32
    %v1185 = vpop.permute.xlu0 %1184
    %v1187 = vmul.f32 %v1180, %v1185
    %1189 = vrot.lane.b32.xlu0 %v1181, 64
    %v1190 = vpop.permute.xlu0 %1189
    %v1192 = vmul.f32 %v1180, %v1190
    %1194 = vrot.lane.b32.xlu0 %v1192, 32
    %v1195 = vpop.permute.xlu0 %1194
    %v1197 = vadd.f32 %v1187, %v1195
    %v1198 = vtanh.pop %v1197
    %1200 = vrot.lane.b32.xlu0 %v1198, 64
    %v1201 = vpop.permute.xlu0 %1200
    %v1203 = vmul.f32 %v1180, %v1201
    %1205 = vrot.lane.b32.xlu0 %v1197, 96
    %v1206 = vpop.permute.xlu0 %1205
    %1208 = vst.msk [vmem:[#allocation4] sm:$0xff] %vm85, %v1206
    %1210 = vrot.lane.b32.xlu0 %v1203, 32
    %v1211 = vpop.permute.xlu0 %1210
    %1213 = vst.msk [vmem:[#allocation3] sm:$0xff] %vm85, %v1211
    %1214 = vst.msk [vmem:[#allocation2] sm:$0xff] %vm85, %v1211
    %v1215 = vld [vmem:[%s344] sm:$0xff]
    %v1216 = vld [vmem:[#allocation3] sm:$0xff]
    %1218 = vrot.lane.b32.xlu0 %v1216, 32
    %v1219 = vpop.permute.xlu0 %1218
    %v1221 = vsel %vm85, %v1215, %v1219
    %v1223 = vsel %vm110, %v1221, 0
    %1225 = vmatprep.subr.mxu0 0.0
    %1226 = vmatpush1.msra.mxu0 %v1080
    %1227 = vmatprep.subr.mxu0 0.0
    %1228 = vmatpush1.msra.mxu0 %v1081
    %1229 = vmatprep.subr.mxu0 0.0
    %1230 = vmatpush1.msra.mxu0 %v1082
    %1231 = vmatprep.subr.mxu0 0.0
    %1232 = vmatpush1.msra.mxu0 %v1083
    %1233 = vmatprep.subr.mxu0 0.0
    %1234 = vmatpush1.msra.mxu0 %v1084
    %1235 = vmatprep.subr.mxu0 0.0
    %1236 = vmatpush1.msra.mxu0 %v1085
    %1237 = vmatprep.subr.mxu0 0.0
    %1238 = vmatpush1.msra.mxu0 %v1086
    %1239 = vmatprep.subr.mxu0 0.0
    %1240 = vmatpush1.msra.mxu0 %v1087
    %1241 = vmatprep.subr.mxu0 0.0
    %1242 = vmatpush1.msra.mxu0 0.0
    %1243 = vmatprep.subr.mxu0 0.0
    %1244 = vmatpush1.msra.mxu0 0.0
    %1245 = vmatprep.subr.mxu0 0.0
    %1246 = vmatpush1.msra.mxu0 0.0
    %1247 = vmatprep.subr.mxu0 0.0
    %1248 = vmatpush1.msra.mxu0 0.0
    %1249 = vmatprep.subr.mxu0 0.0
    %1250 = vmatpush1.msra.mxu0 0.0
    %1251 = vmatprep.subr.mxu0 0.0
    %1252 = vmatpush1.msra.mxu0 0.0
    %1253 = vmatprep.subr.mxu0 0.0
    %1254 = vmatpush1.msra.mxu0 0.0
    %1255 = vmatprep.subr.mxu0 0.0
    %1256 = vmatpush1.msra.mxu0 0.0
    %1257 = vmatprep.subr.mxu0 0.0
    %1258 = vmatpush1.msra.mxu0 0.0
    %1259 = vmatprep.subr.mxu0 0.0
    %1260 = vmatpush1.msra.mxu0 0.0
    %1261 = vmatprep.subr.mxu0 0.0
    %1262 = vmatpush1.msra.mxu0 0.0
    %1263 = vmatprep.subr.mxu0 0.0
    %1264 = vmatpush1.msra.mxu0 0.0
    %1265 = vmatprep.subr.mxu0 0.0
    %1266 = vmatpush1.msra.mxu0 0.0
    %1267 = vmatprep.subr.mxu0 0.0
    %1268 = vmatpush1.msra.mxu0 0.0
    %1269 = vmatprep.subr.mxu0 0.0
    %1270 = vmatpush1.msra.mxu0 0.0
    %1271 = vmatprep.subr.mxu0 0.0
    %1272 = vmatpush1.msra.mxu0 0.0
    %1273 = vmatprep.subr.mxu0 0.0
    %1274 = vmatpush1.msra.mxu0 0.0
    %1275 = vmatprep.subr.mxu0 0.0
    %1276 = vmatpush1.msra.mxu0 0.0
    %1277 = vmatprep.subr.mxu0 0.0
    %1278 = vmatpush1.msra.mxu0 0.0
    %1279 = vmatprep.subr.mxu0 0.0
    %1280 = vmatpush1.msra.mxu0 0.0
    %1281 = vmatprep.subr.mxu0 0.0
    %1282 = vmatpush1.msra.mxu0 0.0
    %1283 = vmatprep.subr.mxu0 0.0
    %1284 = vmatpush1.msra.mxu0 0.0
    %1285 = vmatprep.subr.mxu0 0.0
    %1286 = vmatpush1.msra.mxu0 0.0
    %1287 = vmatprep.subr.mxu0 0.0
    %1288 = vmatpush1.msra.mxu0 0.0
    %1289 = vmatprep.mubr.f32.mxu0 0.0
    %1290 = vmatmul.mubr.f32.gmra.mrb[0].mxu0 %v1223
    %v1291 = vpop.f32.mrb[0].mxu0
    %v1292 = vadd.f32 %v1100, %v1291
    %v1293 = vpop.f32.mrb[0].mxu0
    %1294 = vdwg.mxu0
    %v1295 = vxor.u32 %v1292, 2147483648
    %v1296 = vmul.f32 %v1295, 1.442695
    %v1297 = vpow.pop %v1296
    %v1298 = vadd.f32 %v1297, 1.0
    %v1299 = vrcp.pop %v1298
    %v1300 = vmul.f32 1.0, %v1299
    %v1301 = vtanh.pop %v1292
    %v1302 = vld [vmem:[#allocation4] sm:$0xff]
    %1304 = vrot.lane.b32.xlu0 %v1302, 32
    %v1305 = vpop.permute.xlu0 %1304
    %v1307 = vmul.f32 %v1300, %v1305
    %1309 = vrot.lane.b32.xlu0 %v1301, 64
    %v1310 = vpop.permute.xlu0 %1309
    %v1312 = vmul.f32 %v1300, %v1310
    %1314 = vrot.lane.b32.xlu0 %v1312, 32
    %v1315 = vpop.permute.xlu0 %1314
    %v1317 = vadd.f32 %v1307, %v1315
    %v1318 = vtanh.pop %v1317
    %1320 = vrot.lane.b32.xlu0 %v1318, 64
    %v1321 = vpop.permute.xlu0 %1320
    %v1323 = vmul.f32 %v1300, %v1321
    %1325 = vrot.lane.b32.xlu0 %v1317, 96
    %v1326 = vpop.permute.xlu0 %1325
    %1328 = vst.msk [vmem:[#allocation4] sm:$0xff] %vm85, %v1326
    %1330 = vrot.lane.b32.xlu0 %v1323, 32
    %v1331 = vpop.permute.xlu0 %1330
    %1333 = vst.msk [vmem:[#allocation3] sm:$0xff] %vm85, %v1331
    %1334 = vst.msk [vmem:[%s344] sm:$0xff] %vm85, %v1331
    %v1335 = vld [vmem:[%s466] sm:$0xff]
    %v1336 = vld [vmem:[#allocation3] sm:$0xff]
    %1338 = vrot.lane.b32.xlu0 %v1336, 32
    %v1339 = vpop.permute.xlu0 %1338
    %v1341 = vsel %vm85, %v1335, %v1339
    %v1343 = vsel %vm110, %v1341, 0
    %1345 = vmatprep.subr.mxu0 0.0
    %1346 = vmatpush1.msra.mxu0 %v1080
    %1347 = vmatprep.subr.mxu0 0.0
    %1348 = vmatpush1.msra.mxu0 %v1081
    %1349 = vmatprep.subr.mxu0 0.0
    %1350 = vmatpush1.msra.mxu0 %v1082
    %1351 = vmatprep.subr.mxu0 0.0
    %1352 = vmatpush1.msra.mxu0 %v1083
    %1353 = vmatprep.subr.mxu0 0.0
    %1354 = vmatpush1.msra.mxu0 %v1084
    %1355 = vmatprep.subr.mxu0 0.0
    %1356 = vmatpush1.msra.mxu0 %v1085
    %1357 = vmatprep.subr.mxu0 0.0
    %1358 = vmatpush1.msra.mxu0 %v1086
    %1359 = vmatprep.subr.mxu0 0.0
    %1360 = vmatpush1.msra.mxu0 %v1087
    %1361 = vmatprep.subr.mxu0 0.0
    %1362 = vmatpush1.msra.mxu0 0.0
    %1363 = vmatprep.subr.mxu0 0.0
    %1364 = vmatpush1.msra.mxu0 0.0
    %1365 = vmatprep.subr.mxu0 0.0
    %1366 = vmatpush1.msra.mxu0 0.0
    %1367 = vmatprep.subr.mxu0 0.0
    %1368 = vmatpush1.msra.mxu0 0.0
    %1369 = vmatprep.subr.mxu0 0.0
    %1370 = vmatpush1.msra.mxu0 0.0
    %1371 = vmatprep.subr.mxu0 0.0
    %1372 = vmatpush1.msra.mxu0 0.0
    %1373 = vmatprep.subr.mxu0 0.0
    %1374 = vmatpush1.msra.mxu0 0.0
    %1375 = vmatprep.subr.mxu0 0.0
    %1376 = vmatpush1.msra.mxu0 0.0
    %1377 = vmatprep.subr.mxu0 0.0
    %1378 = vmatpush1.msra.mxu0 0.0
    %1379 = vmatprep.subr.mxu0 0.0
    %1380 = vmatpush1.msra.mxu0 0.0
    %1381 = vmatprep.subr.mxu0 0.0
    %1382 = vmatpush1.msra.mxu0 0.0
    %1383 = vmatprep.subr.mxu0 0.0
    %1384 = vmatpush1.msra.mxu0 0.0
    %1385 = vmatprep.subr.mxu0 0.0
    %1386 = vmatpush1.msra.mxu0 0.0
    %1387 = vmatprep.subr.mxu0 0.0
    %1388 = vmatpush1.msra.mxu0 0.0
    %1389 = vmatprep.subr.mxu0 0.0
    %1390 = vmatpush1.msra.mxu0 0.0
    %1391 = vmatprep.subr.mxu0 0.0
    %1392 = vmatpush1.msra.mxu0 0.0
    %1393 = vmatprep.subr.mxu0 0.0
    %1394 = vmatpush1.msra.mxu0 0.0
    %1395 = vmatprep.subr.mxu0 0.0
    %1396 = vmatpush1.msra.mxu0 0.0
    %1397 = vmatprep.subr.mxu0 0.0
    %1398 = vmatpush1.msra.mxu0 0.0
    %1399 = vmatprep.subr.mxu0 0.0
    %1400 = vmatpush1.msra.mxu0 0.0
    %1401 = vmatprep.subr.mxu0 0.0
    %1402 = vmatpush1.msra.mxu0 0.0
    %1403 = vmatprep.subr.mxu0 0.0
    %1404 = vmatpush1.msra.mxu0 0.0
    %1405 = vmatprep.subr.mxu0 0.0
    %1406 = vmatpush1.msra.mxu0 0.0
    %1407 = vmatprep.subr.mxu0 0.0
    %1408 = vmatpush1.msra.mxu0 0.0
    %1409 = vmatprep.mubr.f32.mxu0 0.0
    %1410 = vmatmul.mubr.f32.gmra.mrb[0].mxu0 %v1343
    %v1411 = vpop.f32.mrb[0].mxu0
    %v1412 = vadd.f32 %v1100, %v1411
    %v1413 = vpop.f32.mrb[0].mxu0
    %1414 = vdwg.mxu0
    %v1415 = vxor.u32 %v1412, 2147483648
    %v1416 = vmul.f32 %v1415, 1.442695
    %v1417 = vpow.pop %v1416
    %v1418 = vadd.f32 %v1417, 1.0
    %v1419 = vrcp.pop %v1418
    %v1420 = vmul.f32 1.0, %v1419
    %v1421 = vtanh.pop %v1412
    %v1422 = vld [vmem:[#allocation4] sm:$0xff]
    %1424 = vrot.lane.b32.xlu0 %v1422, 32
    %v1425 = vpop.permute.xlu0 %1424
    %v1427 = vmul.f32 %v1420, %v1425
    %1429 = vrot.lane.b32.xlu0 %v1421, 64
    %v1430 = vpop.permute.xlu0 %1429
    %v1432 = vmul.f32 %v1420, %v1430
    %1434 = vrot.lane.b32.xlu0 %v1432, 32
    %v1435 = vpop.permute.xlu0 %1434
    %v1437 = vadd.f32 %v1427, %v1435
    %v1438 = vtanh.pop %v1437
    %1440 = vrot.lane.b32.xlu0 %v1438, 64
    %v1441 = vpop.permute.xlu0 %1440
    %v1443 = vmul.f32 %v1420, %v1441
    %1445 = vrot.lane.b32.xlu0 %v1437, 96
    %v1446 = vpop.permute.xlu0 %1445
    %1448 = vst.msk [vmem:[#allocation4] sm:$0xff] %vm85, %v1446
    %1450 = vrot.lane.b32.xlu0 %v1443, 32
    %v1451 = vpop.permute.xlu0 %1450
    %1453 = vst.msk [vmem:[#allocation3] sm:$0xff] %vm85, %v1451
    %1454 = vst.msk [vmem:[%s466] sm:$0xff] %vm85, %v1451
    %v1455 = vld [vmem:[%s588] sm:$0xff]
    %v1456 = vld [vmem:[#allocation3] sm:$0xff]
    %1458 = vrot.lane.b32.xlu0 %v1456, 32
    %v1459 = vpop.permute.xlu0 %1458
    %v1461 = vsel %vm85, %v1455, %v1459
    %v1463 = vsel %vm110, %v1461, 0
    %1465 = vmatprep.subr.mxu0 0.0
    %1466 = vmatpush1.msra.mxu0 %v1080
    %1467 = vmatprep.subr.mxu0 0.0
    %1468 = vmatpush1.msra.mxu0 %v1081
    %1469 = vmatprep.subr.mxu0 0.0
    %1470 = vmatpush1.msra.mxu0 %v1082
    %1471 = vmatprep.subr.mxu0 0.0
    %1472 = vmatpush1.msra.mxu0 %v1083
    %1473 = vmatprep.subr.mxu0 0.0
    %1474 = vmatpush1.msra.mxu0 %v1084
    %1475 = vmatprep.subr.mxu0 0.0
    %1476 = vmatpush1.msra.mxu0 %v1085
    %1477 = vmatprep.subr.mxu0 0.0
    %1478 = vmatpush1.msra.mxu0 %v1086
    %1479 = vmatprep.subr.mxu0 0.0
    %1480 = vmatpush1.msra.mxu0 %v1087
    %1481 = vmatprep.subr.mxu0 0.0
    %1482 = vmatpush1.msra.mxu0 0.0
    %1483 = vmatprep.subr.mxu0 0.0
    %1484 = vmatpush1.msra.mxu0 0.0
    %1485 = vmatprep.subr.mxu0 0.0
    %1486 = vmatpush1.msra.mxu0 0.0
    %1487 = vmatprep.subr.mxu0 0.0
    %1488 = vmatpush1.msra.mxu0 0.0
    %1489 = vmatprep.subr.mxu0 0.0
    %1490 = vmatpush1.msra.mxu0 0.0
    %1491 = vmatprep.subr.mxu0 0.0
    %1492 = vmatpush1.msra.mxu0 0.0
    %1493 = vmatprep.subr.mxu0 0.0
    %1494 = vmatpush1.msra.mxu0 0.0
    %1495 = vmatprep.subr.mxu0 0.0
    %1496 = vmatpush1.msra.mxu0 0.0
    %1497 = vmatprep.subr.mxu0 0.0
    %1498 = vmatpush1.msra.mxu0 0.0
    %1499 = vmatprep.subr.mxu0 0.0
    %1500 = vmatpush1.msra.mxu0 0.0
    %1501 = vmatprep.subr.mxu0 0.0
    %1502 = vmatpush1.msra.mxu0 0.0
    %1503 = vmatprep.subr.mxu0 0.0
    %1504 = vmatpush1.msra.mxu0 0.0
    %1505 = vmatprep.subr.mxu0 0.0
    %1506 = vmatpush1.msra.mxu0 0.0
    %1507 = vmatprep.subr.mxu0 0.0
    %1508 = vmatpush1.msra.mxu0 0.0
    %1509 = vmatprep.subr.mxu0 0.0
    %1510 = vmatpush1.msra.mxu0 0.0
    %1511 = vmatprep.subr.mxu0 0.0
    %1512 = vmatpush1.msra.mxu0 0.0
    %1513 = vmatprep.subr.mxu0 0.0
    %1514 = vmatpush1.msra.mxu0 0.0
    %1515 = vmatprep.subr.mxu0 0.0
    %1516 = vmatpush1.msra.mxu0 0.0
    %1517 = vmatprep.subr.mxu0 0.0
    %1518 = vmatpush1.msra.mxu0 0.0
    %1519 = vmatprep.subr.mxu0 0.0
    %1520 = vmatpush1.msra.mxu0 0.0
    %1521 = vmatprep.subr.mxu0 0.0
    %1522 = vmatpush1.msra.mxu0 0.0
    %1523 = vmatprep.subr.mxu0 0.0
    %1524 = vmatpush1.msra.mxu0 0.0
    %1525 = vmatprep.subr.mxu0 0.0
    %1526 = vmatpush1.msra.mxu0 0.0
    %1527 = vmatprep.subr.mxu0 0.0
    %1528 = vmatpush1.msra.mxu0 0.0
    %1529 = vmatprep.mubr.f32.mxu0 0.0
    %1530 = vmatmul.mubr.f32.gmra.mrb[0].mxu0 %v1463
    %v1531 = vpop.f32.mrb[0].mxu0
    %v1532 = vadd.f32 %v1100, %v1531
    %v1533 = vpop.f32.mrb[0].mxu0
    %1534 = vdwg.mxu0
    %v1535 = vxor.u32 %v1532, 2147483648
    %v1536 = vmul.f32 %v1535, 1.442695
    %v1537 = vpow.pop %v1536
    %v1538 = vadd.f32 %v1537, 1.0
    %v1539 = vrcp.pop %v1538
    %v1540 = vmul.f32 1.0, %v1539
    %v1541 = vtanh.pop %v1532
    %v1542 = vld [vmem:[#allocation4] sm:$0xff]
    %1544 = vrot.lane.b32.xlu0 %v1542, 32
    %v1545 = vpop.permute.xlu0 %1544
    %v1547 = vmul.f32 %v1540, %v1545
    %1549 = vrot.lane.b32.xlu0 %v1541, 64
    %v1550 = vpop.permute.xlu0 %1549
    %v1552 = vmul.f32 %v1540, %v1550
    %1554 = vrot.lane.b32.xlu0 %v1552, 32
    %v1555 = vpop.permute.xlu0 %1554
    %v1557 = vadd.f32 %v1547, %v1555
    %v1558 = vtanh.pop %v1557
    %1560 = vrot.lane.b32.xlu0 %v1558, 64
    %v1561 = vpop.permute.xlu0 %1560
    %v1563 = vmul.f32 %v1540, %v1561
    %1565 = vrot.lane.b32.xlu0 %v1557, 96
    %v1566 = vpop.permute.xlu0 %1565
    %1568 = vst.msk [vmem:[#allocation4] sm:$0xff] %vm85, %v1566
    %1570 = vrot.lane.b32.xlu0 %v1563, 32
    %v1571 = vpop.permute.xlu0 %1570
    %1573 = vst.msk [vmem:[#allocation3] sm:$0xff] %vm85, %v1571
    %1574 = vst.msk [vmem:[%s588] sm:$0xff] %vm85, %v1571
    %v1575 = vld [vmem:[%s710] sm:$0xff]
    %v1576 = vld [vmem:[#allocation3] sm:$0xff]
    %1578 = vrot.lane.b32.xlu0 %v1576, 32
    %v1579 = vpop.permute.xlu0 %1578
    %v1581 = vsel %vm85, %v1575, %v1579
    %v1583 = vsel %vm110, %v1581, 0
    %1585 = vmatprep.subr.mxu0 0.0
    %1586 = vmatpush1.msra.mxu0 %v1080
    %1587 = vmatprep.subr.mxu0 0.0
    %1588 = vmatpush1.msra.mxu0 %v1081
    %1589 = vmatprep.subr.mxu0 0.0
    %1590 = vmatpush1.msra.mxu0 %v1082
    %1591 = vmatprep.subr.mxu0 0.0
    %1592 = vmatpush1.msra.mxu0 %v1083
    %1593 = vmatprep.subr.mxu0 0.0
    %1594 = vmatpush1.msra.mxu0 %v1084
    %1595 = vmatprep.subr.mxu0 0.0
    %1596 = vmatpush1.msra.mxu0 %v1085
    %1597 = vmatprep.subr.mxu0 0.0
    %1598 = vmatpush1.msra.mxu0 %v1086
    %1599 = vmatprep.subr.mxu0 0.0
    %1600 = vmatpush1.msra.mxu0 %v1087
    %1601 = vmatprep.subr.mxu0 0.0
    %1602 = vmatpush1.msra.mxu0 0.0
    %1603 = vmatprep.subr.mxu0 0.0
    %1604 = vmatpush1.msra.mxu0 0.0
    %1605 = vmatprep.subr.mxu0 0.0
    %1606 = vmatpush1.msra.mxu0 0.0
    %1607 = vmatprep.subr.mxu0 0.0
    %1608 = vmatpush1.msra.mxu0 0.0
    %1609 = vmatprep.subr.mxu0 0.0
    %1610 = vmatpush1.msra.mxu0 0.0
    %1611 = vmatprep.subr.mxu0 0.0
    %1612 = vmatpush1.msra.mxu0 0.0
    %1613 = vmatprep.subr.mxu0 0.0
    %1614 = vmatpush1.msra.mxu0 0.0
    %1615 = vmatprep.subr.mxu0 0.0
    %1616 = vmatpush1.msra.mxu0 0.0
    %1617 = vmatprep.subr.mxu0 0.0
    %1618 = vmatpush1.msra.mxu0 0.0
    %1619 = vmatprep.subr.mxu0 0.0
    %1620 = vmatpush1.msra.mxu0 0.0
    %1621 = vmatprep.subr.mxu0 0.0
    %1622 = vmatpush1.msra.mxu0 0.0
    %1623 = vmatprep.subr.mxu0 0.0
    %1624 = vmatpush1.msra.mxu0 0.0
    %1625 = vmatprep.subr.mxu0 0.0
    %1626 = vmatpush1.msra.mxu0 0.0
    %1627 = vmatprep.subr.mxu0 0.0
    %1628 = vmatpush1.msra.mxu0 0.0
    %1629 = vmatprep.subr.mxu0 0.0
    %1630 = vmatpush1.msra.mxu0 0.0
    %1631 = vmatprep.subr.mxu0 0.0
    %1632 = vmatpush1.msra.mxu0 0.0
    %1633 = vmatprep.subr.mxu0 0.0
    %1634 = vmatpush1.msra.mxu0 0.0
    %1635 = vmatprep.subr.mxu0 0.0
    %1636 = vmatpush1.msra.mxu0 0.0
    %1637 = vmatprep.subr.mxu0 0.0
    %1638 = vmatpush1.msra.mxu0 0.0
    %1639 = vmatprep.subr.mxu0 0.0
    %1640 = vmatpush1.msra.mxu0 0.0
    %1641 = vmatprep.subr.mxu0 0.0
    %1642 = vmatpush1.msra.mxu0 0.0
    %1643 = vmatprep.subr.mxu0 0.0
    %1644 = vmatpush1.msra.mxu0 0.0
    %1645 = vmatprep.subr.mxu0 0.0
    %1646 = vmatpush1.msra.mxu0 0.0
    %1647 = vmatprep.subr.mxu0 0.0
    %1648 = vmatpush1.msra.mxu0 0.0
    %1649 = vmatprep.mubr.f32.mxu0 0.0
    %1650 = vmatmul.mubr.f32.gmra.mrb[0].mxu0 %v1583
    %v1651 = vpop.f32.mrb[0].mxu0
    %v1652 = vadd.f32 %v1100, %v1651
    %v1653 = vpop.f32.mrb[0].mxu0
    %1654 = vdwg.mxu0
    %v1655 = vxor.u32 %v1652, 2147483648
    %v1656 = vmul.f32 %v1655, 1.442695
    %v1657 = vpow.pop %v1656
    %v1658 = vadd.f32 %v1657, 1.0
    %v1659 = vrcp.pop %v1658
    %v1660 = vmul.f32 1.0, %v1659
    %v1661 = vtanh.pop %v1652
    %v1662 = vld [vmem:[#allocation4] sm:$0xff]
    %1664 = vrot.lane.b32.xlu0 %v1662, 32
    %v1665 = vpop.permute.xlu0 %1664
    %v1667 = vmul.f32 %v1660, %v1665
    %1669 = vrot.lane.b32.xlu0 %v1661, 64
    %v1670 = vpop.permute.xlu0 %1669
    %v1672 = vmul.f32 %v1660, %v1670
    %1674 = vrot.lane.b32.xlu0 %v1672, 32
    %v1675 = vpop.permute.xlu0 %1674
    %v1677 = vadd.f32 %v1667, %v1675
    %v1678 = vtanh.pop %v1677
    %1680 = vrot.lane.b32.xlu0 %v1678, 64
    %v1681 = vpop.permute.xlu0 %1680
    %v1683 = vmul.f32 %v1660, %v1681
    %1685 = vrot.lane.b32.xlu0 %v1677, 96
    %v1686 = vpop.permute.xlu0 %1685
    %1688 = vst.msk [vmem:[#allocation4] sm:$0xff] %vm85, %v1686
    %1690 = vrot.lane.b32.xlu0 %v1683, 32
    %v1691 = vpop.permute.xlu0 %1690
    %1693 = vst.msk [vmem:[#allocation3] sm:$0xff] %vm85, %v1691
    %1694 = vst.msk [vmem:[%s710] sm:$0xff] %vm85, %v1691
    %v1695 = vld [vmem:[%s832] sm:$0xff]
    %v1696 = vld [vmem:[#allocation3] sm:$0xff]
    %1698 = vrot.lane.b32.xlu0 %v1696, 32
    %v1699 = vpop.permute.xlu0 %1698
    %v1701 = vsel %vm85, %v1695, %v1699
    %v1703 = vsel %vm110, %v1701, 0
    %1705 = vmatprep.subr.mxu0 0.0
    %1706 = vmatpush1.msra.mxu0 %v1080
    %1707 = vmatprep.subr.mxu0 0.0
    %1708 = vmatpush1.msra.mxu0 %v1081
    %1709 = vmatprep.subr.mxu0 0.0
    %1710 = vmatpush1.msra.mxu0 %v1082
    %1711 = vmatprep.subr.mxu0 0.0
    %1712 = vmatpush1.msra.mxu0 %v1083
    %1713 = vmatprep.subr.mxu0 0.0
    %1714 = vmatpush1.msra.mxu0 %v1084
    %1715 = vmatprep.subr.mxu0 0.0
    %1716 = vmatpush1.msra.mxu0 %v1085
    %1717 = vmatprep.subr.mxu0 0.0
    %1718 = vmatpush1.msra.mxu0 %v1086
    %1719 = vmatprep.subr.mxu0 0.0
    %1720 = vmatpush1.msra.mxu0 %v1087
    %1721 = vmatprep.subr.mxu0 0.0
    %1722 = vmatpush1.msra.mxu0 0.0
    %1723 = vmatprep.subr.mxu0 0.0
    %1724 = vmatpush1.msra.mxu0 0.0
    %1725 = vmatprep.subr.mxu0 0.0
    %1726 = vmatpush1.msra.mxu0 0.0
    %1727 = vmatprep.subr.mxu0 0.0
    %1728 = vmatpush1.msra.mxu0 0.0
    %1729 = vmatprep.subr.mxu0 0.0
    %1730 = vmatpush1.msra.mxu0 0.0
    %1731 = vmatprep.subr.mxu0 0.0
    %1732 = vmatpush1.msra.mxu0 0.0
    %1733 = vmatprep.subr.mxu0 0.0
    %1734 = vmatpush1.msra.mxu0 0.0
    %1735 = vmatprep.subr.mxu0 0.0
    %1736 = vmatpush1.msra.mxu0 0.0
    %1737 = vmatprep.subr.mxu0 0.0
    %1738 = vmatpush1.msra.mxu0 0.0
    %1739 = vmatprep.subr.mxu0 0.0
    %1740 = vmatpush1.msra.mxu0 0.0
    %1741 = vmatprep.subr.mxu0 0.0
    %1742 = vmatpush1.msra.mxu0 0.0
    %1743 = vmatprep.subr.mxu0 0.0
    %1744 = vmatpush1.msra.mxu0 0.0
    %1745 = vmatprep.subr.mxu0 0.0
    %1746 = vmatpush1.msra.mxu0 0.0
    %1747 = vmatprep.subr.mxu0 0.0
    %1748 = vmatpush1.msra.mxu0 0.0
    %1749 = vmatprep.subr.mxu0 0.0
    %1750 = vmatpush1.msra.mxu0 0.0
    %1751 = vmatprep.subr.mxu0 0.0
    %1752 = vmatpush1.msra.mxu0 0.0
    %1753 = vmatprep.subr.mxu0 0.0
    %1754 = vmatpush1.msra.mxu0 0.0
    %1755 = vmatprep.subr.mxu0 0.0
    %1756 = vmatpush1.msra.mxu0 0.0
    %1757 = vmatprep.subr.mxu0 0.0
    %1758 = vmatpush1.msra.mxu0 0.0
    %1759 = vmatprep.subr.mxu0 0.0
    %1760 = vmatpush1.msra.mxu0 0.0
    %1761 = vmatprep.subr.mxu0 0.0
    %1762 = vmatpush1.msra.mxu0 0.0
    %1763 = vmatprep.subr.mxu0 0.0
    %1764 = vmatpush1.msra.mxu0 0.0
    %1765 = vmatprep.subr.mxu0 0.0
    %1766 = vmatpush1.msra.mxu0 0.0
    %1767 = vmatprep.subr.mxu0 0.0
    %1768 = vmatpush1.msra.mxu0 0.0
    %1769 = vmatprep.mubr.f32.mxu0 0.0
    %1770 = vmatmul.mubr.f32.gmra.mrb[0].mxu0 %v1703
    %v1771 = vpop.f32.mrb[0].mxu0
    %v1772 = vadd.f32 %v1100, %v1771
    %v1773 = vpop.f32.mrb[0].mxu0
    %1774 = vdwg.mxu0
    %v1775 = vxor.u32 %v1772, 2147483648
    %v1776 = vmul.f32 %v1775, 1.442695
    %v1777 = vpow.pop %v1776
    %v1778 = vadd.f32 %v1777, 1.0
    %v1779 = vrcp.pop %v1778
    %v1780 = vmul.f32 1.0, %v1779
    %v1781 = vtanh.pop %v1772
    %v1782 = vld [vmem:[#allocation4] sm:$0xff]
    %1784 = vrot.lane.b32.xlu0 %v1782, 32
    %v1785 = vpop.permute.xlu0 %1784
    %v1787 = vmul.f32 %v1780, %v1785
    %1789 = vrot.lane.b32.xlu0 %v1781, 64
    %v1790 = vpop.permute.xlu0 %1789
    %v1792 = vmul.f32 %v1780, %v1790
    %1794 = vrot.lane.b32.xlu0 %v1792, 32
    %v1795 = vpop.permute.xlu0 %1794
    %v1797 = vadd.f32 %v1787, %v1795
    %v1798 = vtanh.pop %v1797
    %1800 = vrot.lane.b32.xlu0 %v1798, 64
    %v1801 = vpop.permute.xlu0 %1800
    %v1803 = vmul.f32 %v1780, %v1801
    %1805 = vrot.lane.b32.xlu0 %v1797, 96
    %v1806 = vpop.permute.xlu0 %1805
    %1808 = vst.msk [vmem:[#allocation4] sm:$0xff] %vm85, %v1806
    %1810 = vrot.lane.b32.xlu0 %v1803, 32
    %v1811 = vpop.permute.xlu0 %1810
    %1813 = vst.msk [vmem:[#allocation3] sm:$0xff] %vm85, %v1811
    %1814 = vst.msk [vmem:[%s832] sm:$0xff] %vm85, %v1811
    %v1815 = vld [vmem:[%s954] sm:$0xff]
    %v1816 = vld [vmem:[#allocation3] sm:$0xff]
    %1818 = vrot.lane.b32.xlu0 %v1816, 32
    %v1819 = vpop.permute.xlu0 %1818
    %v1821 = vsel %vm85, %v1815, %v1819
    %v1823 = vsel %vm110, %v1821, 0
    %1825 = vmatprep.subr.mxu0 0.0
    %1826 = vmatpush1.msra.mxu0 %v1080
    %1827 = vmatprep.subr.mxu0 0.0
    %1828 = vmatpush1.msra.mxu0 %v1081
    %1829 = vmatprep.subr.mxu0 0.0
    %1830 = vmatpush1.msra.mxu0 %v1082
    %1831 = vmatprep.subr.mxu0 0.0
    %1832 = vmatpush1.msra.mxu0 %v1083
    %1833 = vmatprep.subr.mxu0 0.0
    %1834 = vmatpush1.msra.mxu0 %v1084
    %1835 = vmatprep.subr.mxu0 0.0
    %1836 = vmatpush1.msra.mxu0 %v1085
    %1837 = vmatprep.subr.mxu0 0.0
    %1838 = vmatpush1.msra.mxu0 %v1086
    %1839 = vmatprep.subr.mxu0 0.0
    %1840 = vmatpush1.msra.mxu0 %v1087
    %1841 = vmatprep.subr.mxu0 0.0
    %1842 = vmatpush1.msra.mxu0 0.0
    %1843 = vmatprep.subr.mxu0 0.0
    %1844 = vmatpush1.msra.mxu0 0.0
    %1845 = vmatprep.subr.mxu0 0.0
    %1846 = vmatpush1.msra.mxu0 0.0
    %1847 = vmatprep.subr.mxu0 0.0
    %1848 = vmatpush1.msra.mxu0 0.0
    %1849 = vmatprep.subr.mxu0 0.0
    %1850 = vmatpush1.msra.mxu0 0.0
    %1851 = vmatprep.subr.mxu0 0.0
    %1852 = vmatpush1.msra.mxu0 0.0
    %1853 = vmatprep.subr.mxu0 0.0
    %1854 = vmatpush1.msra.mxu0 0.0
    %1855 = vmatprep.subr.mxu0 0.0
    %1856 = vmatpush1.msra.mxu0 0.0
    %1857 = vmatprep.subr.mxu0 0.0
    %1858 = vmatpush1.msra.mxu0 0.0
    %1859 = vmatprep.subr.mxu0 0.0
    %1860 = vmatpush1.msra.mxu0 0.0
    %1861 = vmatprep.subr.mxu0 0.0
    %1862 = vmatpush1.msra.mxu0 0.0
    %1863 = vmatprep.subr.mxu0 0.0
    %1864 = vmatpush1.msra.mxu0 0.0
    %1865 = vmatprep.subr.mxu0 0.0
    %1866 = vmatpush1.msra.mxu0 0.0
    %1867 = vmatprep.subr.mxu0 0.0
    %1868 = vmatpush1.msra.mxu0 0.0
    %1869 = vmatprep.subr.mxu0 0.0
    %1870 = vmatpush1.msra.mxu0 0.0
    %1871 = vmatprep.subr.mxu0 0.0
    %1872 = vmatpush1.msra.mxu0 0.0
    %1873 = vmatprep.subr.mxu0 0.0
    %1874 = vmatpush1.msra.mxu0 0.0
    %1875 = vmatprep.subr.mxu0 0.0
    %1876 = vmatpush1.msra.mxu0 0.0
    %1877 = vmatprep.subr.mxu0 0.0
    %1878 = vmatpush1.msra.mxu0 0.0
    %1879 = vmatprep.subr.mxu0 0.0
    %1880 = vmatpush1.msra.mxu0 0.0
    %1881 = vmatprep.subr.mxu0 0.0
    %1882 = vmatpush1.msra.mxu0 0.0
    %1883 = vmatprep.subr.mxu0 0.0
    %1884 = vmatpush1.msra.mxu0 0.0
    %1885 = vmatprep.subr.mxu0 0.0
    %1886 = vmatpush1.msra.mxu0 0.0
    %1887 = vmatprep.subr.mxu0 0.0
    %1888 = vmatpush1.msra.mxu0 0.0
    %1889 = vmatprep.mubr.f32.mxu0 0.0
    %1890 = vmatmul.mubr.f32.gmra.mrb[0].mxu0 %v1823
    %v1891 = vpop.f32.mrb[0].mxu0
    %v1892 = vadd.f32 %v1100, %v1891
    %v1893 = vpop.f32.mrb[0].mxu0
    %1894 = vdwg.mxu0
    %v1895 = vxor.u32 %v1892, 2147483648
    %v1896 = vmul.f32 %v1895, 1.442695
    %v1897 = vpow.pop %v1896
    %v1898 = vadd.f32 %v1897, 1.0
    %v1899 = vrcp.pop %v1898
    %v1900 = vmul.f32 1.0, %v1899
    %v1901 = vtanh.pop %v1892
    %v1902 = vld [vmem:[#allocation4] sm:$0xff]
    %1904 = vrot.lane.b32.xlu0 %v1902, 32
    %v1905 = vpop.permute.xlu0 %1904
    %v1907 = vmul.f32 %v1900, %v1905
    %1909 = vrot.lane.b32.xlu0 %v1901, 64
    %v1910 = vpop.permute.xlu0 %1909
    %v1912 = vmul.f32 %v1900, %v1910
    %1914 = vrot.lane.b32.xlu0 %v1912, 32
    %v1915 = vpop.permute.xlu0 %1914
    %v1917 = vadd.f32 %v1907, %v1915
    %v1918 = vtanh.pop %v1917
    %1920 = vrot.lane.b32.xlu0 %v1918, 64
    %v1921 = vpop.permute.xlu0 %1920
    %v1923 = vmul.f32 %v1900, %v1921
    %1925 = vrot.lane.b32.xlu0 %v1917, 96
    %v1926 = vpop.permute.xlu0 %1925
    %1928 = vst.msk [vmem:[#allocation4] sm:$0xff] %vm85, %v1926
    %1930 = vrot.lane.b32.xlu0 %v1923, 32
    %v1931 = vpop.permute.xlu0 %1930
    %1933 = vst.msk [vmem:[#allocation3] sm:$0xff] %vm85, %v1931
    %1934 = vst.msk [vmem:[%s954] sm:$0xff] %vm85, %v1931
    %v1935 = vld [vmem:[%s1076] sm:$0xff]
    %v1936 = vld [vmem:[#allocation3] sm:$0xff]
    %1938 = vrot.lane.b32.xlu0 %v1936, 32
    %v1939 = vpop.permute.xlu0 %1938
    %v1941 = vsel %vm85, %v1935, %v1939
    %v1943 = vsel %vm110, %v1941, 0
    %1945 = vmatprep.subr.mxu0 0.0
    %1946 = vmatpush1.msra.mxu0 %v1080
    %1947 = vmatprep.subr.mxu0 0.0
    %1948 = vmatpush1.msra.mxu0 %v1081
    %1949 = vmatprep.subr.mxu0 0.0
    %1950 = vmatpush1.msra.mxu0 %v1082
    %1951 = vmatprep.subr.mxu0 0.0
    %1952 = vmatpush1.msra.mxu0 %v1083
    %1953 = vmatprep.subr.mxu0 0.0
    %1954 = vmatpush1.msra.mxu0 %v1084
    %1955 = vmatprep.subr.mxu0 0.0
    %1956 = vmatpush1.msra.mxu0 %v1085
    %1957 = vmatprep.subr.mxu0 0.0
    %1958 = vmatpush1.msra.mxu0 %v1086
    %1959 = vmatprep.subr.mxu0 0.0
    %1960 = vmatpush1.msra.mxu0 %v1087
    %1961 = vmatprep.subr.mxu0 0.0
    %1962 = vmatpush1.msra.mxu0 0.0
    %1963 = vmatprep.subr.mxu0 0.0
    %1964 = vmatpush1.msra.mxu0 0.0
    %1965 = vmatprep.subr.mxu0 0.0
    %1966 = vmatpush1.msra.mxu0 0.0
    %1967 = vmatprep.subr.mxu0 0.0
    %1968 = vmatpush1.msra.mxu0 0.0
    %1969 = vmatprep.subr.mxu0 0.0
    %1970 = vmatpush1.msra.mxu0 0.0
    %1971 = vmatprep.subr.mxu0 0.0
    %1972 = vmatpush1.msra.mxu0 0.0
    %1973 = vmatprep.subr.mxu0 0.0
    %1974 = vmatpush1.msra.mxu0 0.0
    %1975 = vmatprep.subr.mxu0 0.0
    %1976 = vmatpush1.msra.mxu0 0.0
    %1977 = vmatprep.subr.mxu0 0.0
    %1978 = vmatpush1.msra.mxu0 0.0
    %1979 = vmatprep.subr.mxu0 0.0
    %1980 = vmatpush1.msra.mxu0 0.0
    %1981 = vmatprep.subr.mxu0 0.0
    %1982 = vmatpush1.msra.mxu0 0.0
    %1983 = vmatprep.subr.mxu0 0.0
    %1984 = vmatpush1.msra.mxu0 0.0
    %1985 = vmatprep.subr.mxu0 0.0
    %1986 = vmatpush1.msra.mxu0 0.0
    %1987 = vmatprep.subr.mxu0 0.0
    %1988 = vmatpush1.msra.mxu0 0.0
    %1989 = vmatprep.subr.mxu0 0.0
    %1990 = vmatpush1.msra.mxu0 0.0
    %1991 = vmatprep.subr.mxu0 0.0
    %1992 = vmatpush1.msra.mxu0 0.0
    %1993 = vmatprep.subr.mxu0 0.0
    %1994 = vmatpush1.msra.mxu0 0.0
    %1995 = vmatprep.subr.mxu0 0.0
    %1996 = vmatpush1.msra.mxu0 0.0
    %1997 = vmatprep.subr.mxu0 0.0
    %1998 = vmatpush1.msra.mxu0 0.0
    %1999 = vmatprep.subr.mxu0 0.0
    %2000 = vmatpush1.msra.mxu0 0.0
    %2001 = vmatprep.subr.mxu0 0.0
    %2002 = vmatpush1.msra.mxu0 0.0
    %2003 = vmatprep.subr.mxu0 0.0
    %2004 = vmatpush1.msra.mxu0 0.0
    %2005 = vmatprep.subr.mxu0 0.0
    %2006 = vmatpush1.msra.mxu0 0.0
    %2007 = vmatprep.subr.mxu0 0.0
    %2008 = vmatpush1.msra.mxu0 0.0
    %2009 = vmatprep.mubr.f32.mxu0 0.0
    %2010 = vmatmul.mubr.f32.gmra.mrb[0].mxu0 %v1943
    %v2011 = vpop.f32.mrb[0].mxu0
    %v2012 = vadd.f32 %v1100, %v2011
    %v2013 = vpop.f32.mrb[0].mxu0
    %2014 = vdwg.mxu0
    %v2015 = vxor.u32 %v2012, 2147483648
    %v2016 = vmul.f32 %v2015, 1.442695
    %v2017 = vpow.pop %v2016
    %v2018 = vadd.f32 %v2017, 1.0
    %v2019 = vrcp.pop %v2018
    %v2020 = vmul.f32 1.0, %v2019
    %v2021 = vtanh.pop %v2012
    %v2022 = vld [vmem:[#allocation4] sm:$0xff]
    %2024 = vrot.lane.b32.xlu0 %v2022, 32
    %v2025 = vpop.permute.xlu0 %2024
    %v2027 = vmul.f32 %v2020, %v2025
    %2029 = vrot.lane.b32.xlu0 %v2021, 64
    %v2030 = vpop.permute.xlu0 %2029
    %v2032 = vmul.f32 %v2020, %v2030
    %2034 = vrot.lane.b32.xlu0 %v2032, 32
    %v2035 = vpop.permute.xlu0 %2034
    %v2037 = vadd.f32 %v2027, %v2035
    %v2038 = vtanh.pop %v2037
    %2040 = vrot.lane.b32.xlu0 %v2038, 64
    %v2041 = vpop.permute.xlu0 %2040
    %v2043 = vmul.f32 %v2020, %v2041
    %2045 = vrot.lane.b32.xlu0 %v2037, 96
    %v2046 = vpop.permute.xlu0 %2045
    %2048 = vst.msk [vmem:[#allocation4] sm:$0xff] %vm85, %v2046
    %2050 = vrot.lane.b32.xlu0 %v2043, 32
    %v2051 = vpop.permute.xlu0 %2050
    %2053 = vst.msk [vmem:[#allocation3] sm:$0xff] %vm85, %v2051
    %2054 = vst.msk [vmem:[%s1076] sm:$0xff] %vm85, %v2051
    %2055 = vst.msk [vmem:[#allocation3] sm:$0xff] %vm85, 0.0
    %2056 = vst.msk [vmem:[#allocation4] sm:$0xff] %vm85, 0.0
    %v2057 = vld [vmem:[%s5] sm:$0xff]
    %v2058 = vld [vmem:[%s5 + $0x8] sm:$0xff]
    %v2059 = vld [vmem:[%s5 + $0x10] sm:$0xff]
    %v2060 = vld [vmem:[%s5 + $0x18] sm:$0xff]
    %v2061 = vld [vmem:[%s5 + $0x20] sm:$0xff]
    %v2062 = vld [vmem:[%s5 + $0x28] sm:$0xff]
    %v2063 = vld [vmem:[%s5 + $0x30] sm:$0xff]
    %v2064 = vld [vmem:[%s5 + $0x38] sm:$0xff]
    %v2065 = vld [vmem:[%s6] sm:$0x1]
    %v2066 = vld [vmem:[#allocation2] sm:$0xff]
    %v2067 = vld [vmem:[#allocation3] sm:$0xff]
    %2069 = vrot.lane.b32.xlu0 %v2067, 32
    %v2070 = vpop.permute.xlu0 %2069
    %v2072 = vsel %vm85, %v2066, %v2070
    %v2074 = vlaneseq
    %v2075 = vshrl.u32 %v2074, 7
    %v2076 = vsub.s32 0, %v2075
    %v2077 = vrot.slane %v2065, %v2076
    %v2080 = vsel %vm110, %v2072, 0
    %2082 = vmatprep.subr.mxu0 0.0
    %2083 = vmatpush1.msra.mxu0 %v2057
    %2084 = vmatprep.subr.mxu0 0.0
    %2085 = vmatpush1.msra.mxu0 %v2058
    %2086 = vmatprep.subr.mxu0 0.0
    %2087 = vmatpush1.msra.mxu0 %v2059
    %2088 = vmatprep.subr.mxu0 0.0
    %2089 = vmatpush1.msra.mxu0 %v2060
    %2090 = vmatprep.subr.mxu0 0.0
    %2091 = vmatpush1.msra.mxu0 %v2061
    %2092 = vmatprep.subr.mxu0 0.0
    %2093 = vmatpush1.msra.mxu0 %v2062
    %2094 = vmatprep.subr.mxu0 0.0
    %2095 = vmatpush1.msra.mxu0 %v2063
    %2096 = vmatprep.subr.mxu0 0.0
    %2097 = vmatpush1.msra.mxu0 %v2064
    %2098 = vmatprep.subr.mxu0 0.0
    %2099 = vmatpush1.msra.mxu0 0.0
    %2100 = vmatprep.subr.mxu0 0.0
    %2101 = vmatpush1.msra.mxu0 0.0
    %2102 = vmatprep.subr.mxu0 0.0
    %2103 = vmatpush1.msra.mxu0 0.0
    %2104 = vmatprep.subr.mxu0 0.0
    %2105 = vmatpush1.msra.mxu0 0.0
    %2106 = vmatprep.subr.mxu0 0.0
    %2107 = vmatpush1.msra.mxu0 0.0
    %2108 = vmatprep.subr.mxu0 0.0
    %2109 = vmatpush1.msra.mxu0 0.0
    %2110 = vmatprep.subr.mxu0 0.0
    %2111 = vmatpush1.msra.mxu0 0.0
    %2112 = vmatprep.subr.mxu0 0.0
    %2113 = vmatpush1.msra.mxu0 0.0
    %2114 = vmatprep.subr.mxu0 0.0
    %2115 = vmatpush1.msra.mxu0 0.0
    %2116 = vmatprep.subr.mxu0 0.0
    %2117 = vmatpush1.msra.mxu0 0.0
    %2118 = vmatprep.subr.mxu0 0.0
    %2119 = vmatpush1.msra.mxu0 0.0
    %2120 = vmatprep.subr.mxu0 0.0
    %2121 = vmatpush1.msra.mxu0 0.0
    %2122 = vmatprep.subr.mxu0 0.0
    %2123 = vmatpush1.msra.mxu0 0.0
    %2124 = vmatprep.subr.mxu0 0.0
    %2125 = vmatpush1.msra.mxu0 0.0
    %2126 = vmatprep.subr.mxu0 0.0
    %2127 = vmatpush1.msra.mxu0 0.0
    %2128 = vmatprep.subr.mxu0 0.0
    %2129 = vmatpush1.msra.mxu0 0.0
    %2130 = vmatprep.subr.mxu0 0.0
    %2131 = vmatpush1.msra.mxu0 0.0
    %2132 = vmatprep.subr.mxu0 0.0
    %2133 = vmatpush1.msra.mxu0 0.0
    %2134 = vmatprep.subr.mxu0 0.0
    %2135 = vmatpush1.msra.mxu0 0.0
    %2136 = vmatprep.subr.mxu0 0.0
    %2137 = vmatpush1.msra.mxu0 0.0
    %2138 = vmatprep.subr.mxu0 0.0
    %2139 = vmatpush1.msra.mxu0 0.0
    %2140 = vmatprep.subr.mxu0 0.0
    %2141 = vmatpush1.msra.mxu0 0.0
    %2142 = vmatprep.subr.mxu0 0.0
    %2143 = vmatpush1.msra.mxu0 0.0
    %2144 = vmatprep.subr.mxu0 0.0
    %2145 = vmatpush1.msra.mxu0 0.0
    %2146 = vmatprep.mubr.f32.mxu0 0.0
    %2147 = vmatmul.mubr.f32.gmra.mrb[0].mxu0 %v2080
    %v2148 = vpop.f32.mrb[0].mxu0
    %v2149 = vadd.f32 %v2077, %v2148
    %v2150 = vpop.f32.mrb[0].mxu0
    %2151 = vdwg.mxu0
    %v2152 = vxor.u32 %v2149, 2147483648
    %v2153 = vmul.f32 %v2152, 1.442695
    %v2154 = vpow.pop %v2153
    %v2155 = vadd.f32 %v2154, 1.0
    %v2156 = vrcp.pop %v2155
    %v2157 = vmul.f32 1.0, %v2156
    %v2158 = vtanh.pop %v2149
    %v2159 = vld [vmem:[#allocation4] sm:$0xff]
    %2161 = vrot.lane.b32.xlu0 %v2159, 32
    %v2162 = vpop.permute.xlu0 %2161
    %v2164 = vmul.f32 %v2157, %v2162
    %2166 = vrot.lane.b32.xlu0 %v2158, 64
    %v2167 = vpop.permute.xlu0 %2166
    %v2169 = vmul.f32 %v2157, %v2167
    %2171 = vrot.lane.b32.xlu0 %v2169, 32
    %v2172 = vpop.permute.xlu0 %2171
    %v2174 = vadd.f32 %v2164, %v2172
    %v2175 = vtanh.pop %v2174
    %2177 = vrot.lane.b32.xlu0 %v2175, 64
    %v2178 = vpop.permute.xlu0 %2177
    %v2180 = vmul.f32 %v2157, %v2178
    %2182 = vrot.lane.b32.xlu0 %v2174, 96
    %v2183 = vpop.permute.xlu0 %2182
    %2185 = vst.msk [vmem:[#allocation4] sm:$0xff] %vm85, %v2183
    %2187 = vrot.lane.b32.xlu0 %v2180, 32
    %v2188 = vpop.permute.xlu0 %2187
    %2190 = vst.msk [vmem:[#allocation3] sm:$0xff] %vm85, %v2188
    %2191 = vst.msk [vmem:[#allocation2] sm:$0xff] %vm85, %v2188
    %v2192 = vld [vmem:[%s344] sm:$0xff]
    %v2193 = vld [vmem:[#allocation3] sm:$0xff]
    %2195 = vrot.lane.b32.xlu0 %v2193, 32
    %v2196 = vpop.permute.xlu0 %2195
    %v2198 = vsel %vm85, %v2192, %v2196
    %v2200 = vsel %vm110, %v2198, 0
    %2202 = vmatprep.subr.mxu0 0.0
    %2203 = vmatpush1.msra.mxu0 %v2057
    %2204 = vmatprep.subr.mxu0 0.0
    %2205 = vmatpush1.msra.mxu0 %v2058
    %2206 = vmatprep.subr.mxu0 0.0
    %2207 = vmatpush1.msra.mxu0 %v2059
    %2208 = vmatprep.subr.mxu0 0.0
    %2209 = vmatpush1.msra.mxu0 %v2060
    %2210 = vmatprep.subr.mxu0 0.0
    %2211 = vmatpush1.msra.mxu0 %v2061
    %2212 = vmatprep.subr.mxu0 0.0
    %2213 = vmatpush1.msra.mxu0 %v2062
    %2214 = vmatprep.subr.mxu0 0.0
    %2215 = vmatpush1.msra.mxu0 %v2063
    %2216 = vmatprep.subr.mxu0 0.0
    %2217 = vmatpush1.msra.mxu0 %v2064
    %2218 = vmatprep.subr.mxu0 0.0
    %2219 = vmatpush1.msra.mxu0 0.0
    %2220 = vmatprep.subr.mxu0 0.0
    %2221 = vmatpush1.msra.mxu0 0.0
    %2222 = vmatprep.subr.mxu0 0.0
    %2223 = vmatpush1.msra.mxu0 0.0
    %2224 = vmatprep.subr.mxu0 0.0
    %2225 = vmatpush1.msra.mxu0 0.0
    %2226 = vmatprep.subr.mxu0 0.0
    %2227 = vmatpush1.msra.mxu0 0.0
    %2228 = vmatprep.subr.mxu0 0.0
    %2229 = vmatpush1.msra.mxu0 0.0
    %2230 = vmatprep.subr.mxu0 0.0
    %2231 = vmatpush1.msra.mxu0 0.0
    %2232 = vmatprep.subr.mxu0 0.0
    %2233 = vmatpush1.msra.mxu0 0.0
    %2234 = vmatprep.subr.mxu0 0.0
    %2235 = vmatpush1.msra.mxu0 0.0
    %2236 = vmatprep.subr.mxu0 0.0
    %2237 = vmatpush1.msra.mxu0 0.0
    %2238 = vmatprep.subr.mxu0 0.0
    %2239 = vmatpush1.msra.mxu0 0.0
    %2240 = vmatprep.subr.mxu0 0.0
    %2241 = vmatpush1.msra.mxu0 0.0
    %2242 = vmatprep.subr.mxu0 0.0
    %2243 = vmatpush1.msra.mxu0 0.0
    %2244 = vmatprep.subr.mxu0 0.0
    %2245 = vmatpush1.msra.mxu0 0.0
    %2246 = vmatprep.subr.mxu0 0.0
    %2247 = vmatpush1.msra.mxu0 0.0
    %2248 = vmatprep.subr.mxu0 0.0
    %2249 = vmatpush1.msra.mxu0 0.0
    %2250 = vmatprep.subr.mxu0 0.0
    %2251 = vmatpush1.msra.mxu0 0.0
    %2252 = vmatprep.subr.mxu0 0.0
    %2253 = vmatpush1.msra.mxu0 0.0
    %2254 = vmatprep.subr.mxu0 0.0
    %2255 = vmatpush1.msra.mxu0 0.0
    %2256 = vmatprep.subr.mxu0 0.0
    %2257 = vmatpush1.msra.mxu0 0.0
    %2258 = vmatprep.subr.mxu0 0.0
    %2259 = vmatpush1.msra.mxu0 0.0
    %2260 = vmatprep.subr.mxu0 0.0
    %2261 = vmatpush1.msra.mxu0 0.0
    %2262 = vmatprep.subr.mxu0 0.0
    %2263 = vmatpush1.msra.mxu0 0.0
    %2264 = vmatprep.subr.mxu0 0.0
    %2265 = vmatpush1.msra.mxu0 0.0
    %2266 = vmatprep.mubr.f32.mxu0 0.0
    %2267 = vmatmul.mubr.f32.gmra.mrb[0].mxu0 %v2200
    %v2268 = vpop.f32.mrb[0].mxu0
    %v2269 = vadd.f32 %v2077, %v2268
    %v2270 = vpop.f32.mrb[0].mxu0
    %2271 = vdwg.mxu0
    %v2272 = vxor.u32 %v2269, 2147483648
    %v2273 = vmul.f32 %v2272, 1.442695
    %v2274 = vpow.pop %v2273
    %v2275 = vadd.f32 %v2274, 1.0
    %v2276 = vrcp.pop %v2275
    %v2277 = vmul.f32 1.0, %v2276
    %v2278 = vtanh.pop %v2269
    %v2279 = vld [vmem:[#allocation4] sm:$0xff]
    %2281 = vrot.lane.b32.xlu0 %v2279, 32
    %v2282 = vpop.permute.xlu0 %2281
    %v2284 = vmul.f32 %v2277, %v2282
    %2286 = vrot.lane.b32.xlu0 %v2278, 64
    %v2287 = vpop.permute.xlu0 %2286
    %v2289 = vmul.f32 %v2277, %v2287
    %2291 = vrot.lane.b32.xlu0 %v2289, 32
    %v2292 = vpop.permute.xlu0 %2291
    %v2294 = vadd.f32 %v2284, %v2292
    %v2295 = vtanh.pop %v2294
    %2297 = vrot.lane.b32.xlu0 %v2295, 64
    %v2298 = vpop.permute.xlu0 %2297
    %v2300 = vmul.f32 %v2277, %v2298
    %2302 = vrot.lane.b32.xlu0 %v2294, 96
    %v2303 = vpop.permute.xlu0 %2302
    %2305 = vst.msk [vmem:[#allocation4] sm:$0xff] %vm85, %v2303
    %2307 = vrot.lane.b32.xlu0 %v2300, 32
    %v2308 = vpop.permute.xlu0 %2307
    %2310 = vst.msk [vmem:[#allocation3] sm:$0xff] %vm85, %v2308
    %2311 = vst.msk [vmem:[%s344] sm:$0xff] %vm85, %v2308
    %v2312 = vld [vmem:[%s466] sm:$0xff]
    %v2313 = vld [vmem:[#allocation3] sm:$0xff]
    %2315 = vrot.lane.b32.xlu0 %v2313, 32
    %v2316 = vpop.permute.xlu0 %2315
    %v2318 = vsel %vm85, %v2312, %v2316
    %v2320 = vsel %vm110, %v2318, 0
    %2322 = vmatprep.subr.mxu0 0.0
    %2323 = vmatpush1.msra.mxu0 %v2057
    %2324 = vmatprep.subr.mxu0 0.0
    %2325 = vmatpush1.msra.mxu0 %v2058
    %2326 = vmatprep.subr.mxu0 0.0
    %2327 = vmatpush1.msra.mxu0 %v2059
    %2328 = vmatprep.subr.mxu0 0.0
    %2329 = vmatpush1.msra.mxu0 %v2060
    %2330 = vmatprep.subr.mxu0 0.0
    %2331 = vmatpush1.msra.mxu0 %v2061
    %2332 = vmatprep.subr.mxu0 0.0
    %2333 = vmatpush1.msra.mxu0 %v2062
    %2334 = vmatprep.subr.mxu0 0.0
    %2335 = vmatpush1.msra.mxu0 %v2063
    %2336 = vmatprep.subr.mxu0 0.0
    %2337 = vmatpush1.msra.mxu0 %v2064
    %2338 = vmatprep.subr.mxu0 0.0
    %2339 = vmatpush1.msra.mxu0 0.0
    %2340 = vmatprep.subr.mxu0 0.0
    %2341 = vmatpush1.msra.mxu0 0.0
    %2342 = vmatprep.subr.mxu0 0.0
    %2343 = vmatpush1.msra.mxu0 0.0
    %2344 = vmatprep.subr.mxu0 0.0
    %2345 = vmatpush1.msra.mxu0 0.0
    %2346 = vmatprep.subr.mxu0 0.0
    %2347 = vmatpush1.msra.mxu0 0.0
    %2348 = vmatprep.subr.mxu0 0.0
    %2349 = vmatpush1.msra.mxu0 0.0
    %2350 = vmatprep.subr.mxu0 0.0
    %2351 = vmatpush1.msra.mxu0 0.0
    %2352 = vmatprep.subr.mxu0 0.0
    %2353 = vmatpush1.msra.mxu0 0.0
    %2354 = vmatprep.subr.mxu0 0.0
    %2355 = vmatpush1.msra.mxu0 0.0
    %2356 = vmatprep.subr.mxu0 0.0
    %2357 = vmatpush1.msra.mxu0 0.0
    %2358 = vmatprep.subr.mxu0 0.0
    %2359 = vmatpush1.msra.mxu0 0.0
    %2360 = vmatprep.subr.mxu0 0.0
    %2361 = vmatpush1.msra.mxu0 0.0
    %2362 = vmatprep.subr.mxu0 0.0
    %2363 = vmatpush1.msra.mxu0 0.0
    %2364 = vmatprep.subr.mxu0 0.0
    %2365 = vmatpush1.msra.mxu0 0.0
    %2366 = vmatprep.subr.mxu0 0.0
    %2367 = vmatpush1.msra.mxu0 0.0
    %2368 = vmatprep.subr.mxu0 0.0
    %2369 = vmatpush1.msra.mxu0 0.0
    %2370 = vmatprep.subr.mxu0 0.0
    %2371 = vmatpush1.msra.mxu0 0.0
    %2372 = vmatprep.subr.mxu0 0.0
    %2373 = vmatpush1.msra.mxu0 0.0
    %2374 = vmatprep.subr.mxu0 0.0
    %2375 = vmatpush1.msra.mxu0 0.0
    %2376 = vmatprep.subr.mxu0 0.0
    %2377 = vmatpush1.msra.mxu0 0.0
    %2378 = vmatprep.subr.mxu0 0.0
    %2379 = vmatpush1.msra.mxu0 0.0
    %2380 = vmatprep.subr.mxu0 0.0
    %2381 = vmatpush1.msra.mxu0 0.0
    %2382 = vmatprep.subr.mxu0 0.0
    %2383 = vmatpush1.msra.mxu0 0.0
    %2384 = vmatprep.subr.mxu0 0.0
    %2385 = vmatpush1.msra.mxu0 0.0
    %2386 = vmatprep.mubr.f32.mxu0 0.0
    %2387 = vmatmul.mubr.f32.gmra.mrb[0].mxu0 %v2320
    %v2388 = vpop.f32.mrb[0].mxu0
    %v2389 = vadd.f32 %v2077, %v2388
    %v2390 = vpop.f32.mrb[0].mxu0
    %2391 = vdwg.mxu0
    %v2392 = vxor.u32 %v2389, 2147483648
    %v2393 = vmul.f32 %v2392, 1.442695
    %v2394 = vpow.pop %v2393
    %v2395 = vadd.f32 %v2394, 1.0
    %v2396 = vrcp.pop %v2395
    %v2397 = vmul.f32 1.0, %v2396
    %v2398 = vtanh.pop %v2389
    %v2399 = vld [vmem:[#allocation4] sm:$0xff]
    %2401 = vrot.lane.b32.xlu0 %v2399, 32
    %v2402 = vpop.permute.xlu0 %2401
    %v2404 = vmul.f32 %v2397, %v2402
    %2406 = vrot.lane.b32.xlu0 %v2398, 64
    %v2407 = vpop.permute.xlu0 %2406
    %v2409 = vmul.f32 %v2397, %v2407
    %2411 = vrot.lane.b32.xlu0 %v2409, 32
    %v2412 = vpop.permute.xlu0 %2411
    %v2414 = vadd.f32 %v2404, %v2412
    %v2415 = vtanh.pop %v2414
    %2417 = vrot.lane.b32.xlu0 %v2415, 64
    %v2418 = vpop.permute.xlu0 %2417
    %v2420 = vmul.f32 %v2397, %v2418
    %2422 = vrot.lane.b32.xlu0 %v2414, 96
    %v2423 = vpop.permute.xlu0 %2422
    %2425 = vst.msk [vmem:[#allocation4] sm:$0xff] %vm85, %v2423
    %2427 = vrot.lane.b32.xlu0 %v2420, 32
    %v2428 = vpop.permute.xlu0 %2427
    %2430 = vst.msk [vmem:[#allocation3] sm:$0xff] %vm85, %v2428
    %2431 = vst.msk [vmem:[%s466] sm:$0xff] %vm85, %v2428
    %v2432 = vld [vmem:[%s588] sm:$0xff]
    %v2433 = vld [vmem:[#allocation3] sm:$0xff]
    %2435 = vrot.lane.b32.xlu0 %v2433, 32
    %v2436 = vpop.permute.xlu0 %2435
    %v2438 = vsel %vm85, %v2432, %v2436
    %v2440 = vsel %vm110, %v2438, 0
    %2442 = vmatprep.subr.mxu0 0.0
    %2443 = vmatpush1.msra.mxu0 %v2057
    %2444 = vmatprep.subr.mxu0 0.0
    %2445 = vmatpush1.msra.mxu0 %v2058
    %2446 = vmatprep.subr.mxu0 0.0
    %2447 = vmatpush1.msra.mxu0 %v2059
    %2448 = vmatprep.subr.mxu0 0.0
    %2449 = vmatpush1.msra.mxu0 %v2060
    %2450 = vmatprep.subr.mxu0 0.0
    %2451 = vmatpush1.msra.mxu0 %v2061
    %2452 = vmatprep.subr.mxu0 0.0
    %2453 = vmatpush1.msra.mxu0 %v2062
    %2454 = vmatprep.subr.mxu0 0.0
    %2455 = vmatpush1.msra.mxu0 %v2063
    %2456 = vmatprep.subr.mxu0 0.0
    %2457 = vmatpush1.msra.mxu0 %v2064
    %2458 = vmatprep.subr.mxu0 0.0
    %2459 = vmatpush1.msra.mxu0 0.0
    %2460 = vmatprep.subr.mxu0 0.0
    %2461 = vmatpush1.msra.mxu0 0.0
    %2462 = vmatprep.subr.mxu0 0.0
    %2463 = vmatpush1.msra.mxu0 0.0
    %2464 = vmatprep.subr.mxu0 0.0
    %2465 = vmatpush1.msra.mxu0 0.0
    %2466 = vmatprep.subr.mxu0 0.0
    %2467 = vmatpush1.msra.mxu0 0.0
    %2468 = vmatprep.subr.mxu0 0.0
    %2469 = vmatpush1.msra.mxu0 0.0
    %2470 = vmatprep.subr.mxu0 0.0
    %2471 = vmatpush1.msra.mxu0 0.0
    %2472 = vmatprep.subr.mxu0 0.0
    %2473 = vmatpush1.msra.mxu0 0.0
    %2474 = vmatprep.subr.mxu0 0.0
    %2475 = vmatpush1.msra.mxu0 0.0
    %2476 = vmatprep.subr.mxu0 0.0
    %2477 = vmatpush1.msra.mxu0 0.0
    %2478 = vmatprep.subr.mxu0 0.0
    %2479 = vmatpush1.msra.mxu0 0.0
    %2480 = vmatprep.subr.mxu0 0.0
    %2481 = vmatpush1.msra.mxu0 0.0
    %2482 = vmatprep.subr.mxu0 0.0
    %2483 = vmatpush1.msra.mxu0 0.0
    %2484 = vmatprep.subr.mxu0 0.0
    %2485 = vmatpush1.msra.mxu0 0.0
    %2486 = vmatprep.subr.mxu0 0.0
    %2487 = vmatpush1.msra.mxu0 0.0
    %2488 = vmatprep.subr.mxu0 0.0
    %2489 = vmatpush1.msra.mxu0 0.0
    %2490 = vmatprep.subr.mxu0 0.0
    %2491 = vmatpush1.msra.mxu0 0.0
    %2492 = vmatprep.subr.mxu0 0.0
    %2493 = vmatpush1.msra.mxu0 0.0
    %2494 = vmatprep.subr.mxu0 0.0
    %2495 = vmatpush1.msra.mxu0 0.0
    %2496 = vmatprep.subr.mxu0 0.0
    %2497 = vmatpush1.msra.mxu0 0.0
    %2498 = vmatprep.subr.mxu0 0.0
    %2499 = vmatpush1.msra.mxu0 0.0
    %2500 = vmatprep.subr.mxu0 0.0
    %2501 = vmatpush1.msra.mxu0 0.0
    %2502 = vmatprep.subr.mxu0 0.0
    %2503 = vmatpush1.msra.mxu0 0.0
    %2504 = vmatprep.subr.mxu0 0.0
    %2505 = vmatpush1.msra.mxu0 0.0
    %2506 = vmatprep.mubr.f32.mxu0 0.0
    %2507 = vmatmul.mubr.f32.gmra.mrb[0].mxu0 %v2440
    %v2508 = vpop.f32.mrb[0].mxu0
    %v2509 = vadd.f32 %v2077, %v2508
    %v2510 = vpop.f32.mrb[0].mxu0
    %2511 = vdwg.mxu0
    %v2512 = vxor.u32 %v2509, 2147483648
    %v2513 = vmul.f32 %v2512, 1.442695
    %v2514 = vpow.pop %v2513
    %v2515 = vadd.f32 %v2514, 1.0
    %v2516 = vrcp.pop %v2515
    %v2517 = vmul.f32 1.0, %v2516
    %v2518 = vtanh.pop %v2509
    %v2519 = vld [vmem:[#allocation4] sm:$0xff]
    %2521 = vrot.lane.b32.xlu0 %v2519, 32
    %v2522 = vpop.permute.xlu0 %2521
    %v2524 = vmul.f32 %v2517, %v2522
    %2526 = vrot.lane.b32.xlu0 %v2518, 64
    %v2527 = vpop.permute.xlu0 %2526
    %v2529 = vmul.f32 %v2517, %v2527
    %2531 = vrot.lane.b32.xlu0 %v2529, 32
    %v2532 = vpop.permute.xlu0 %2531
    %v2534 = vadd.f32 %v2524, %v2532
    %v2535 = vtanh.pop %v2534
    %2537 = vrot.lane.b32.xlu0 %v2535, 64
    %v2538 = vpop.permute.xlu0 %2537
    %v2540 = vmul.f32 %v2517, %v2538
    %2542 = vrot.lane.b32.xlu0 %v2534, 96
    %v2543 = vpop.permute.xlu0 %2542
    %2545 = vst.msk [vmem:[#allocation4] sm:$0xff] %vm85, %v2543
    %2547 = vrot.lane.b32.xlu0 %v2540, 32
    %v2548 = vpop.permute.xlu0 %2547
    %2550 = vst.msk [vmem:[#allocation3] sm:$0xff] %vm85, %v2548
    %2551 = vst.msk [vmem:[%s588] sm:$0xff] %vm85, %v2548
    %v2552 = vld [vmem:[%s710] sm:$0xff]
    %v2553 = vld [vmem:[#allocation3] sm:$0xff]
    %2555 = vrot.lane.b32.xlu0 %v2553, 32
    %v2556 = vpop.permute.xlu0 %2555
    %v2558 = vsel %vm85, %v2552, %v2556
    %v2560 = vsel %vm110, %v2558, 0
    %2562 = vmatprep.subr.mxu0 0.0
    %2563 = vmatpush1.msra.mxu0 %v2057
    %2564 = vmatprep.subr.mxu0 0.0
    %2565 = vmatpush1.msra.mxu0 %v2058
    %2566 = vmatprep.subr.mxu0 0.0
    %2567 = vmatpush1.msra.mxu0 %v2059
    %2568 = vmatprep.subr.mxu0 0.0
    %2569 = vmatpush1.msra.mxu0 %v2060
    %2570 = vmatprep.subr.mxu0 0.0
    %2571 = vmatpush1.msra.mxu0 %v2061
    %2572 = vmatprep.subr.mxu0 0.0
    %2573 = vmatpush1.msra.mxu0 %v2062
    %2574 = vmatprep.subr.mxu0 0.0
    %2575 = vmatpush1.msra.mxu0 %v2063
    %2576 = vmatprep.subr.mxu0 0.0
    %2577 = vmatpush1.msra.mxu0 %v2064
    %2578 = vmatprep.subr.mxu0 0.0
    %2579 = vmatpush1.msra.mxu0 0.0
    %2580 = vmatprep.subr.mxu0 0.0
    %2581 = vmatpush1.msra.mxu0 0.0
    %2582 = vmatprep.subr.mxu0 0.0
    %2583 = vmatpush1.msra.mxu0 0.0
    %2584 = vmatprep.subr.mxu0 0.0
    %2585 = vmatpush1.msra.mxu0 0.0
    %2586 = vmatprep.subr.mxu0 0.0
    %2587 = vmatpush1.msra.mxu0 0.0
    %2588 = vmatprep.subr.mxu0 0.0
    %2589 = vmatpush1.msra.mxu0 0.0
    %2590 = vmatprep.subr.mxu0 0.0
    %2591 = vmatpush1.msra.mxu0 0.0
    %2592 = vmatprep.subr.mxu0 0.0
    %2593 = vmatpush1.msra.mxu0 0.0
    %2594 = vmatprep.subr.mxu0 0.0
    %2595 = vmatpush1.msra.mxu0 0.0
    %2596 = vmatprep.subr.mxu0 0.0
    %2597 = vmatpush1.msra.mxu0 0.0
    %2598 = vmatprep.subr.mxu0 0.0
    %2599 = vmatpush1.msra.mxu0 0.0
    %2600 = vmatprep.subr.mxu0 0.0
    %2601 = vmatpush1.msra.mxu0 0.0
    %2602 = vmatprep.subr.mxu0 0.0
    %2603 = vmatpush1.msra.mxu0 0.0
    %2604 = vmatprep.subr.mxu0 0.0
    %2605 = vmatpush1.msra.mxu0 0.0
    %2606 = vmatprep.subr.mxu0 0.0
    %2607 = vmatpush1.msra.mxu0 0.0
    %2608 = vmatprep.subr.mxu0 0.0
    %2609 = vmatpush1.msra.mxu0 0.0
    %2610 = vmatprep.subr.mxu0 0.0
    %2611 = vmatpush1.msra.mxu0 0.0
    %2612 = vmatprep.subr.mxu0 0.0
    %2613 = vmatpush1.msra.mxu0 0.0
    %2614 = vmatprep.subr.mxu0 0.0
    %2615 = vmatpush1.msra.mxu0 0.0
    %2616 = vmatprep.subr.mxu0 0.0
    %2617 = vmatpush1.msra.mxu0 0.0
    %2618 = vmatprep.subr.mxu0 0.0
    %2619 = vmatpush1.msra.mxu0 0.0
    %2620 = vmatprep.subr.mxu0 0.0
    %2621 = vmatpush1.msra.mxu0 0.0
    %2622 = vmatprep.subr.mxu0 0.0
    %2623 = vmatpush1.msra.mxu0 0.0
    %2624 = vmatprep.subr.mxu0 0.0
    %2625 = vmatpush1.msra.mxu0 0.0
    %2626 = vmatprep.mubr.f32.mxu0 0.0
    %2627 = vmatmul.mubr.f32.gmra.mrb[0].mxu0 %v2560
    %v2628 = vpop.f32.mrb[0].mxu0
    %v2629 = vadd.f32 %v2077, %v2628
    %v2630 = vpop.f32.mrb[0].mxu0
    %2631 = vdwg.mxu0
    %v2632 = vxor.u32 %v2629, 2147483648
    %v2633 = vmul.f32 %v2632, 1.442695
    %v2634 = vpow.pop %v2633
    %v2635 = vadd.f32 %v2634, 1.0
    %v2636 = vrcp.pop %v2635
    %v2637 = vmul.f32 1.0, %v2636
    %v2638 = vtanh.pop %v2629
    %v2639 = vld [vmem:[#allocation4] sm:$0xff]
    %2641 = vrot.lane.b32.xlu0 %v2639, 32
    %v2642 = vpop.permute.xlu0 %2641
    %v2644 = vmul.f32 %v2637, %v2642
    %2646 = vrot.lane.b32.xlu0 %v2638, 64
    %v2647 = vpop.permute.xlu0 %2646
    %v2649 = vmul.f32 %v2637, %v2647
    %2651 = vrot.lane.b32.xlu0 %v2649, 32
    %v2652 = vpop.permute.xlu0 %2651
    %v2654 = vadd.f32 %v2644, %v2652
    %v2655 = vtanh.pop %v2654
    %2657 = vrot.lane.b32.xlu0 %v2655, 64
    %v2658 = vpop.permute.xlu0 %2657
    %v2660 = vmul.f32 %v2637, %v2658
    %2662 = vrot.lane.b32.xlu0 %v2654, 96
    %v2663 = vpop.permute.xlu0 %2662
    %2665 = vst.msk [vmem:[#allocation4] sm:$0xff] %vm85, %v2663
    %2667 = vrot.lane.b32.xlu0 %v2660, 32
    %v2668 = vpop.permute.xlu0 %2667
    %2670 = vst.msk [vmem:[#allocation3] sm:$0xff] %vm85, %v2668
    %2671 = vst.msk [vmem:[%s710] sm:$0xff] %vm85, %v2668
    %v2672 = vld [vmem:[%s832] sm:$0xff]
    %v2673 = vld [vmem:[#allocation3] sm:$0xff]
    %2675 = vrot.lane.b32.xlu0 %v2673, 32
    %v2676 = vpop.permute.xlu0 %2675
    %v2678 = vsel %vm85, %v2672, %v2676
    %v2680 = vsel %vm110, %v2678, 0
    %2682 = vmatprep.subr.mxu0 0.0
    %2683 = vmatpush1.msra.mxu0 %v2057
    %2684 = vmatprep.subr.mxu0 0.0
    %2685 = vmatpush1.msra.mxu0 %v2058
    %2686 = vmatprep.subr.mxu0 0.0
    %2687 = vmatpush1.msra.mxu0 %v2059
    %2688 = vmatprep.subr.mxu0 0.0
    %2689 = vmatpush1.msra.mxu0 %v2060
    %2690 = vmatprep.subr.mxu0 0.0
    %2691 = vmatpush1.msra.mxu0 %v2061
    %2692 = vmatprep.subr.mxu0 0.0
    %2693 = vmatpush1.msra.mxu0 %v2062
    %2694 = vmatprep.subr.mxu0 0.0
    %2695 = vmatpush1.msra.mxu0 %v2063
    %2696 = vmatprep.subr.mxu0 0.0
    %2697 = vmatpush1.msra.mxu0 %v2064
    %2698 = vmatprep.subr.mxu0 0.0
    %2699 = vmatpush1.msra.mxu0 0.0
    %2700 = vmatprep.subr.mxu0 0.0
    %2701 = vmatpush1.msra.mxu0 0.0
    %2702 = vmatprep.subr.mxu0 0.0
    %2703 = vmatpush1.msra.mxu0 0.0
    %2704 = vmatprep.subr.mxu0 0.0
    %2705 = vmatpush1.msra.mxu0 0.0
    %2706 = vmatprep.subr.mxu0 0.0
    %2707 = vmatpush1.msra.mxu0 0.0
    %2708 = vmatprep.subr.mxu0 0.0
    %2709 = vmatpush1.msra.mxu0 0.0
    %2710 = vmatprep.subr.mxu0 0.0
    %2711 = vmatpush1.msra.mxu0 0.0
    %2712 = vmatprep.subr.mxu0 0.0
    %2713 = vmatpush1.msra.mxu0 0.0
    %2714 = vmatprep.subr.mxu0 0.0
    %2715 = vmatpush1.msra.mxu0 0.0
    %2716 = vmatprep.subr.mxu0 0.0
    %2717 = vmatpush1.msra.mxu0 0.0
    %2718 = vmatprep.subr.mxu0 0.0
    %2719 = vmatpush1.msra.mxu0 0.0
    %2720 = vmatprep.subr.mxu0 0.0
    %2721 = vmatpush1.msra.mxu0 0.0
    %2722 = vmatprep.subr.mxu0 0.0
    %2723 = vmatpush1.msra.mxu0 0.0
    %2724 = vmatprep.subr.mxu0 0.0
    %2725 = vmatpush1.msra.mxu0 0.0
    %2726 = vmatprep.subr.mxu0 0.0
    %2727 = vmatpush1.msra.mxu0 0.0
    %2728 = vmatprep.subr.mxu0 0.0
    %2729 = vmatpush1.msra.mxu0 0.0
    %2730 = vmatprep.subr.mxu0 0.0
    %2731 = vmatpush1.msra.mxu0 0.0
    %2732 = vmatprep.subr.mxu0 0.0
    %2733 = vmatpush1.msra.mxu0 0.0
    %2734 = vmatprep.subr.mxu0 0.0
    %2735 = vmatpush1.msra.mxu0 0.0
    %2736 = vmatprep.subr.mxu0 0.0
    %2737 = vmatpush1.msra.mxu0 0.0
    %2738 = vmatprep.subr.mxu0 0.0
    %2739 = vmatpush1.msra.mxu0 0.0
    %2740 = vmatprep.subr.mxu0 0.0
    %2741 = vmatpush1.msra.mxu0 0.0
    %2742 = vmatprep.subr.mxu0 0.0
    %2743 = vmatpush1.msra.mxu0 0.0
    %2744 = vmatprep.subr.mxu0 0.0
    %2745 = vmatpush1.msra.mxu0 0.0
    %2746 = vmatprep.mubr.f32.mxu0 0.0
    %2747 = vmatmul.mubr.f32.gmra.mrb[0].mxu0 %v2680
    %v2748 = vpop.f32.mrb[0].mxu0
    %v2749 = vadd.f32 %v2077, %v2748
    %v2750 = vpop.f32.mrb[0].mxu0
    %2751 = vdwg.mxu0
    %v2752 = vxor.u32 %v2749, 2147483648
    %v2753 = vmul.f32 %v2752, 1.442695
    %v2754 = vpow.pop %v2753
    %v2755 = vadd.f32 %v2754, 1.0
    %v2756 = vrcp.pop %v2755
    %v2757 = vmul.f32 1.0, %v2756
    %v2758 = vtanh.pop %v2749
    %v2759 = vld [vmem:[#allocation4] sm:$0xff]
    %2761 = vrot.lane.b32.xlu0 %v2759, 32
    %v2762 = vpop.permute.xlu0 %2761
    %v2764 = vmul.f32 %v2757, %v2762
    %2766 = vrot.lane.b32.xlu0 %v2758, 64
    %v2767 = vpop.permute.xlu0 %2766
    %v2769 = vmul.f32 %v2757, %v2767
    %2771 = vrot.lane.b32.xlu0 %v2769, 32
    %v2772 = vpop.permute.xlu0 %2771
    %v2774 = vadd.f32 %v2764, %v2772
    %v2775 = vtanh.pop %v2774
    %2777 = vrot.lane.b32.xlu0 %v2775, 64
    %v2778 = vpop.permute.xlu0 %2777
    %v2780 = vmul.f32 %v2757, %v2778
    %2782 = vrot.lane.b32.xlu0 %v2774, 96
    %v2783 = vpop.permute.xlu0 %2782
    %2785 = vst.msk [vmem:[#allocation4] sm:$0xff] %vm85, %v2783
    %2787 = vrot.lane.b32.xlu0 %v2780, 32
    %v2788 = vpop.permute.xlu0 %2787
    %2790 = vst.msk [vmem:[#allocation3] sm:$0xff] %vm85, %v2788
    %2791 = vst.msk [vmem:[%s832] sm:$0xff] %vm85, %v2788
    %v2792 = vld [vmem:[%s954] sm:$0xff]
    %v2793 = vld [vmem:[#allocation3] sm:$0xff]
    %2795 = vrot.lane.b32.xlu0 %v2793, 32
    %v2796 = vpop.permute.xlu0 %2795
    %v2798 = vsel %vm85, %v2792, %v2796
    %v2800 = vsel %vm110, %v2798, 0
    %2802 = vmatprep.subr.mxu0 0.0
    %2803 = vmatpush1.msra.mxu0 %v2057
    %2804 = vmatprep.subr.mxu0 0.0
    %2805 = vmatpush1.msra.mxu0 %v2058
    %2806 = vmatprep.subr.mxu0 0.0
    %2807 = vmatpush1.msra.mxu0 %v2059
    %2808 = vmatprep.subr.mxu0 0.0
    %2809 = vmatpush1.msra.mxu0 %v2060
    %2810 = vmatprep.subr.mxu0 0.0
    %2811 = vmatpush1.msra.mxu0 %v2061
    %2812 = vmatprep.subr.mxu0 0.0
    %2813 = vmatpush1.msra.mxu0 %v2062
    %2814 = vmatprep.subr.mxu0 0.0
    %2815 = vmatpush1.msra.mxu0 %v2063
    %2816 = vmatprep.subr.mxu0 0.0
    %2817 = vmatpush1.msra.mxu0 %v2064
    %2818 = vmatprep.subr.mxu0 0.0
    %2819 = vmatpush1.msra.mxu0 0.0
    %2820 = vmatprep.subr.mxu0 0.0
    %2821 = vmatpush1.msra.mxu0 0.0
    %2822 = vmatprep.subr.mxu0 0.0
    %2823 = vmatpush1.msra.mxu0 0.0
    %2824 = vmatprep.subr.mxu0 0.0
    %2825 = vmatpush1.msra.mxu0 0.0
    %2826 = vmatprep.subr.mxu0 0.0
    %2827 = vmatpush1.msra.mxu0 0.0
    %2828 = vmatprep.subr.mxu0 0.0
    %2829 = vmatpush1.msra.mxu0 0.0
    %2830 = vmatprep.subr.mxu0 0.0
    %2831 = vmatpush1.msra.mxu0 0.0
    %2832 = vmatprep.subr.mxu0 0.0
    %2833 = vmatpush1.msra.mxu0 0.0
    %2834 = vmatprep.subr.mxu0 0.0
    %2835 = vmatpush1.msra.mxu0 0.0
    %2836 = vmatprep.subr.mxu0 0.0
    %2837 = vmatpush1.msra.mxu0 0.0
    %2838 = vmatprep.subr.mxu0 0.0
    %2839 = vmatpush1.msra.mxu0 0.0
    %2840 = vmatprep.subr.mxu0 0.0
    %2841 = vmatpush1.msra.mxu0 0.0
    %2842 = vmatprep.subr.mxu0 0.0
    %2843 = vmatpush1.msra.mxu0 0.0
    %2844 = vmatprep.subr.mxu0 0.0
    %2845 = vmatpush1.msra.mxu0 0.0
    %2846 = vmatprep.subr.mxu0 0.0
    %2847 = vmatpush1.msra.mxu0 0.0
    %2848 = vmatprep.subr.mxu0 0.0
    %2849 = vmatpush1.msra.mxu0 0.0
    %2850 = vmatprep.subr.mxu0 0.0
    %2851 = vmatpush1.msra.mxu0 0.0
    %2852 = vmatprep.subr.mxu0 0.0
    %2853 = vmatpush1.msra.mxu0 0.0
    %2854 = vmatprep.subr.mxu0 0.0
    %2855 = vmatpush1.msra.mxu0 0.0
    %2856 = vmatprep.subr.mxu0 0.0
    %2857 = vmatpush1.msra.mxu0 0.0
    %2858 = vmatprep.subr.mxu0 0.0
    %2859 = vmatpush1.msra.mxu0 0.0
    %2860 = vmatprep.subr.mxu0 0.0
    %2861 = vmatpush1.msra.mxu0 0.0
    %2862 = vmatprep.subr.mxu0 0.0
    %2863 = vmatpush1.msra.mxu0 0.0
    %2864 = vmatprep.subr.mxu0 0.0
    %2865 = vmatpush1.msra.mxu0 0.0
    %2866 = vmatprep.mubr.f32.mxu0 0.0
    %2867 = vmatmul.mubr.f32.gmra.mrb[0].mxu0 %v2800
    %v2868 = vpop.f32.mrb[0].mxu0
    %v2869 = vadd.f32 %v2077, %v2868
    %v2870 = vpop.f32.mrb[0].mxu0
    %2871 = vdwg.mxu0
    %v2872 = vxor.u32 %v2869, 2147483648
    %v2873 = vmul.f32 %v2872, 1.442695
    %v2874 = vpow.pop %v2873
    %v2875 = vadd.f32 %v2874, 1.0
    %v2876 = vrcp.pop %v2875
    %v2877 = vmul.f32 1.0, %v2876
    %v2878 = vtanh.pop %v2869
    %v2879 = vld [vmem:[#allocation4] sm:$0xff]
    %2881 = vrot.lane.b32.xlu0 %v2879, 32
    %v2882 = vpop.permute.xlu0 %2881
    %v2884 = vmul.f32 %v2877, %v2882
    %2886 = vrot.lane.b32.xlu0 %v2878, 64
    %v2887 = vpop.permute.xlu0 %2886
    %v2889 = vmul.f32 %v2877, %v2887
    %2891 = vrot.lane.b32.xlu0 %v2889, 32
    %v2892 = vpop.permute.xlu0 %2891
    %v2894 = vadd.f32 %v2884, %v2892
    %v2895 = vtanh.pop %v2894
    %2897 = vrot.lane.b32.xlu0 %v2895, 64
    %v2898 = vpop.permute.xlu0 %2897
    %v2900 = vmul.f32 %v2877, %v2898
    %2902 = vrot.lane.b32.xlu0 %v2894, 96
    %v2903 = vpop.permute.xlu0 %2902
    %2905 = vst.msk [vmem:[#allocation4] sm:$0xff] %vm85, %v2903
    %2907 = vrot.lane.b32.xlu0 %v2900, 32
    %v2908 = vpop.permute.xlu0 %2907
    %2910 = vst.msk [vmem:[#allocation3] sm:$0xff] %vm85, %v2908
    %2911 = vst.msk [vmem:[%s954] sm:$0xff] %vm85, %v2908
    %v2912 = vld [vmem:[%s1076] sm:$0xff]
    %v2913 = vld [vmem:[#allocation3] sm:$0xff]
    %2915 = vrot.lane.b32.xlu0 %v2913, 32
    %v2916 = vpop.permute.xlu0 %2915
    %v2918 = vsel %vm85, %v2912, %v2916
    %v2920 = vsel %vm110, %v2918, 0
    %2922 = vmatprep.subr.mxu0 0.0
    %2923 = vmatpush1.msra.mxu0 %v2057
    %2924 = vmatprep.subr.mxu0 0.0
    %2925 = vmatpush1.msra.mxu0 %v2058
    %2926 = vmatprep.subr.mxu0 0.0
    %2927 = vmatpush1.msra.mxu0 %v2059
    %2928 = vmatprep.subr.mxu0 0.0
    %2929 = vmatpush1.msra.mxu0 %v2060
    %2930 = vmatprep.subr.mxu0 0.0
    %2931 = vmatpush1.msra.mxu0 %v2061
    %2932 = vmatprep.subr.mxu0 0.0
    %2933 = vmatpush1.msra.mxu0 %v2062
    %2934 = vmatprep.subr.mxu0 0.0
    %2935 = vmatpush1.msra.mxu0 %v2063
    %2936 = vmatprep.subr.mxu0 0.0
    %2937 = vmatpush1.msra.mxu0 %v2064
    %2938 = vmatprep.subr.mxu0 0.0
    %2939 = vmatpush1.msra.mxu0 0.0
    %2940 = vmatprep.subr.mxu0 0.0
    %2941 = vmatpush1.msra.mxu0 0.0
    %2942 = vmatprep.subr.mxu0 0.0
    %2943 = vmatpush1.msra.mxu0 0.0
    %2944 = vmatprep.subr.mxu0 0.0
    %2945 = vmatpush1.msra.mxu0 0.0
    %2946 = vmatprep.subr.mxu0 0.0
    %2947 = vmatpush1.msra.mxu0 0.0
    %2948 = vmatprep.subr.mxu0 0.0
    %2949 = vmatpush1.msra.mxu0 0.0
    %2950 = vmatprep.subr.mxu0 0.0
    %2951 = vmatpush1.msra.mxu0 0.0
    %2952 = vmatprep.subr.mxu0 0.0
    %2953 = vmatpush1.msra.mxu0 0.0
    %2954 = vmatprep.subr.mxu0 0.0
    %2955 = vmatpush1.msra.mxu0 0.0
    %2956 = vmatprep.subr.mxu0 0.0
    %2957 = vmatpush1.msra.mxu0 0.0
    %2958 = vmatprep.subr.mxu0 0.0
    %2959 = vmatpush1.msra.mxu0 0.0
    %2960 = vmatprep.subr.mxu0 0.0
    %2961 = vmatpush1.msra.mxu0 0.0
    %2962 = vmatprep.subr.mxu0 0.0
    %2963 = vmatpush1.msra.mxu0 0.0
    %2964 = vmatprep.subr.mxu0 0.0
    %2965 = vmatpush1.msra.mxu0 0.0
    %2966 = vmatprep.subr.mxu0 0.0
    %2967 = vmatpush1.msra.mxu0 0.0
    %2968 = vmatprep.subr.mxu0 0.0
    %2969 = vmatpush1.msra.mxu0 0.0
    %2970 = vmatprep.subr.mxu0 0.0
    %2971 = vmatpush1.msra.mxu0 0.0
    %2972 = vmatprep.subr.mxu0 0.0
    %2973 = vmatpush1.msra.mxu0 0.0
    %2974 = vmatprep.subr.mxu0 0.0
    %2975 = vmatpush1.msra.mxu0 0.0
    %2976 = vmatprep.subr.mxu0 0.0
    %2977 = vmatpush1.msra.mxu0 0.0
    %2978 = vmatprep.subr.mxu0 0.0
    %2979 = vmatpush1.msra.mxu0 0.0
    %2980 = vmatprep.subr.mxu0 0.0
    %2981 = vmatpush1.msra.mxu0 0.0
    %2982 = vmatprep.subr.mxu0 0.0
    %2983 = vmatpush1.msra.mxu0 0.0
    %2984 = vmatprep.subr.mxu0 0.0
    %2985 = vmatpush1.msra.mxu0 0.0
    %2986 = vmatprep.mubr.f32.mxu0 0.0
    %2987 = vmatmul.mubr.f32.gmra.mrb[0].mxu0 %v2920
    %v2988 = vpop.f32.mrb[0].mxu0
    %v2989 = vadd.f32 %v2077, %v2988
    %v2990 = vpop.f32.mrb[0].mxu0
    %2991 = vdwg.mxu0
    %v2992 = vxor.u32 %v2989, 2147483648
    %v2993 = vmul.f32 %v2992, 1.442695
    %v2994 = vpow.pop %v2993
    %v2995 = vadd.f32 %v2994, 1.0
    %v2996 = vrcp.pop %v2995
    %v2997 = vmul.f32 1.0, %v2996
    %v2998 = vtanh.pop %v2989
    %v2999 = vld [vmem:[#allocation4] sm:$0xff]
    %3001 = vrot.lane.b32.xlu0 %v2999, 32
    %v3002 = vpop.permute.xlu0 %3001
    %v3004 = vmul.f32 %v2997, %v3002
    %3006 = vrot.lane.b32.xlu0 %v2998, 64
    %v3007 = vpop.permute.xlu0 %3006
    %v3009 = vmul.f32 %v2997, %v3007
    %3011 = vrot.lane.b32.xlu0 %v3009, 32
    %v3012 = vpop.permute.xlu0 %3011
    %v3014 = vadd.f32 %v3004, %v3012
    %v3015 = vtanh.pop %v3014
    %3017 = vrot.lane.b32.xlu0 %v3015, 64
    %v3018 = vpop.permute.xlu0 %3017
    %v3020 = vmul.f32 %v2997, %v3018
    %3022 = vrot.lane.b32.xlu0 %v3014, 96
    %v3023 = vpop.permute.xlu0 %3022
    %3025 = vst.msk [vmem:[#allocation4] sm:$0xff] %vm85, %v3023
    %3027 = vrot.lane.b32.xlu0 %v3020, 32
    %v3028 = vpop.permute.xlu0 %3027
    %3030 = vst.msk [vmem:[#allocation3] sm:$0xff] %vm85, %v3028
    %3031 = vst.msk [vmem:[%s1076] sm:$0xff] %vm85, %v3028
    %v3032 = vld [vmem:[#allocation3] sm:$0xff]
    %v3033 = vld [vmem:[#allocation11] sm:$0xff]
    %v3034 = vld [vmem:[#allocation11 + $0x8] sm:$0xff]
    %v3035 = vld [vmem:[#allocation11 + $0x10] sm:$0xff]
    %v3036 = vld [vmem:[#allocation11 + $0x18] sm:$0xff]
    %v3037 = vld [vmem:[#allocation5] sm:$0x1]
    %v3039 = vlaneseq
    %v3040 = vshrl.u32 %v3039, 7
    %v3041 = vsub.s32 0, %v3040
    %v3042 = vrot.slane %v3037, %v3041
    %v3045 = vsel %vm85, %v3032, 0
    %3047 = vmatprep.subr.mxu0 0.0
    %3048 = vmatpush1.msra.mxu0 %v3033
    %3049 = vmatprep.subr.mxu0 0.0
    %3050 = vmatpush1.msra.mxu0 %v3034
    %3051 = vmatprep.subr.mxu0 0.0
    %3052 = vmatpush1.msra.mxu0 %v3035
    %3053 = vmatprep.subr.mxu0 0.0
    %3054 = vmatpush1.msra.mxu0 %v3036
    %3055 = vmatprep.subr.mxu0 0.0
    %3056 = vmatpush1.msra.mxu0 0.0
    %3057 = vmatprep.subr.mxu0 0.0
    %3058 = vmatpush1.msra.mxu0 0.0
    %3059 = vmatprep.subr.mxu0 0.0
    %3060 = vmatpush1.msra.mxu0 0.0
    %3061 = vmatprep.subr.mxu0 0.0
    %3062 = vmatpush1.msra.mxu0 0.0
    %3063 = vmatprep.subr.mxu0 0.0
    %3064 = vmatpush1.msra.mxu0 0.0
    %3065 = vmatprep.subr.mxu0 0.0
    %3066 = vmatpush1.msra.mxu0 0.0
    %3067 = vmatprep.subr.mxu0 0.0
    %3068 = vmatpush1.msra.mxu0 0.0
    %3069 = vmatprep.subr.mxu0 0.0
    %3070 = vmatpush1.msra.mxu0 0.0
    %3071 = vmatprep.subr.mxu0 0.0
    %3072 = vmatpush1.msra.mxu0 0.0
    %3073 = vmatprep.subr.mxu0 0.0
    %3074 = vmatpush1.msra.mxu0 0.0
    %3075 = vmatprep.subr.mxu0 0.0
    %3076 = vmatpush1.msra.mxu0 0.0
    %3077 = vmatprep.subr.mxu0 0.0
    %3078 = vmatpush1.msra.mxu0 0.0
    %3079 = vmatprep.subr.mxu0 0.0
    %3080 = vmatpush1.msra.mxu0 0.0
    %3081 = vmatprep.subr.mxu0 0.0
    %3082 = vmatpush1.msra.mxu0 0.0
    %3083 = vmatprep.subr.mxu0 0.0
    %3084 = vmatpush1.msra.mxu0 0.0
    %3085 = vmatprep.subr.mxu0 0.0
    %3086 = vmatpush1.msra.mxu0 0.0
    %3087 = vmatprep.subr.mxu0 0.0
    %3088 = vmatpush1.msra.mxu0 0.0
    %3089 = vmatprep.subr.mxu0 0.0
    %3090 = vmatpush1.msra.mxu0 0.0
    %3091 = vmatprep.subr.mxu0 0.0
    %3092 = vmatpush1.msra.mxu0 0.0
    %3093 = vmatprep.subr.mxu0 0.0
    %3094 = vmatpush1.msra.mxu0 0.0
    %3095 = vmatprep.subr.mxu0 0.0
    %3096 = vmatpush1.msra.mxu0 0.0
    %3097 = vmatprep.subr.mxu0 0.0
    %3098 = vmatpush1.msra.mxu0 0.0
    %3099 = vmatprep.subr.mxu0 0.0
    %3100 = vmatpush1.msra.mxu0 0.0
    %3101 = vmatprep.subr.mxu0 0.0
    %3102 = vmatpush1.msra.mxu0 0.0
    %3103 = vmatprep.subr.mxu0 0.0
    %3104 = vmatpush1.msra.mxu0 0.0
    %3105 = vmatprep.subr.mxu0 0.0
    %3106 = vmatpush1.msra.mxu0 0.0
    %3107 = vmatprep.subr.mxu0 0.0
    %3108 = vmatpush1.msra.mxu0 0.0
    %3109 = vmatprep.subr.mxu0 0.0
    %3110 = vmatpush1.msra.mxu0 0.0
    %3111 = vmatprep.mubr.f32.mxu0 0.0
    %3112 = vmatmul.mubr.f32.gmra.mrb[0].mxu0 %v3045
    %v3113 = vpop.f32.mrb[0].mxu0
    %v3114 = vadd.f32 %v3042, %v3113
    %v3115 = vpop.f32.mrb[0].mxu0
    %3116 = vdwg.mxu0
    %v3117 = vxor.u32 %v3114, 2147483648
    %v3118 = vmul.f32 %v3117, 1.442695
    %v3119 = vpow.pop %v3118
    %v3120 = vadd.f32 %v3119, 1.0
    %v3121 = vrcp.pop %v3120
    %v3122 = vmul.f32 1.0, %v3121
    %vm3123 = vcmask 7168
    %3124 = vst.msk [vmem:[%s9] sm:$0xff] %vm3123, %v3122
    // Predicated region
    $region54: #{rnn_forward.1} parent=1 // pred_check
      _
    $region55: #{rnn_forward.1} parent=1 // pred_check_branch
      %3126 = sbr.rel (0) target = $region57
    $region56: #{rnn_forward.1} parent=1 // pred_region
      _
    $region57: #{rnn_forward.1} parent=1 // pred_fallthru
      _
    // Predicated region
    $region58: #{rnn_forward.1} parent=1 // pred_check
      _
    $region59: #{rnn_forward.1} parent=1 // pred_check_branch
      %3128 = sbr.rel (0) target = $region61
    $region60: #{rnn_forward.1} parent=1 // pred_region
      _
    $region61: #{rnn_forward.1} parent=1 // pred_fallthru
      _
    %3129 = vsyncpa [#allocation7], 1
    %3130 = vsyncpa [#allocation9], 1
    %3131 = vsyncpa [#allocation12], 1

</llo_original>
